<compile_context>
chip_gen: v5e
topology: v5e:2x2
jax: 0.10.0
libtpu: 0.0.40
codegen_flags: <defaults>
</compile_context>

<pallas_src>
import jax
import jax.numpy as jnp
import numpy as np
from jax.experimental import pallas as pl
from jax.experimental.pallas import tpu as pltpu


def _round_up(x, m):
    return ((x + m - 1) // m) * m


def _pad_gates_mat(w, H, Hp):
    """(H, 3H) torch-gate-order [r|z|n] weights -> (Hp, 3Hp), each gate padded to Hp lanes."""
    out = jnp.zeros((Hp, 3 * Hp), w.dtype)
    for g in range(3):
        out = out.at[:H, g * Hp:g * Hp + H].set(w[:, g * H:(g + 1) * H])
    return out


def _pad_gates_vec(b, H, Hp):
    """(3H,) -> (3Hp,), each gate padded to Hp lanes."""
    out = jnp.zeros((3 * Hp,), b.dtype)
    for g in range(3):
        out = out.at[g * Hp:g * Hp + H].set(b[g * H:(g + 1) * H])
    return out


def _make_bigru_kernel(C, T, needs_mask):
    """Build the chunked bidirectional-GRU recurrence kernel.

    One grid step = one chunk of C time steps (statically unrolled), both
    directions advanced per step with independent per-direction matmuls.

    Refs:
      gi_f_ref : (C, Bp, 3Hp) bf16  forward input projections (biases folded)
      gi_b_ref : (C, Bp, 3Hp) bf16  backward projections, time-padded at front,
                 read at in-chunk index C-1-j (block index nC-1-c)
      h0_ref   : (2, Bp, Hp) f32    initial hidden [fwd, bwd]
      whh_*_ref: (Hp, 3Hp) bf16     recurrent weights (transposed, gate-padded)
      bhn_ref  : (2, Bp, Hp) f32    b_hh_n per direction (broadcast per row)
      out_f/out_b : (C, Bp, Hp) f32 time-major per-chunk outputs
      hlast_ref   : (2, Bp, Hp) f32 final hidden
      h_scr    : (2, Bp, Hp) f32    carried hidden state
    """

    def kernel(gi_f_ref, gi_b_ref, h0_ref, whh_f_ref, whh_b_ref, bhn_ref,
               out_f_ref, out_b_ref, hlast_ref, h_scr):
        c = pl.program_id(0)

        @pl.when(c == 0)
        def _():
            h_scr[...] = h0_ref[...]

        Hp = h_scr.shape[-1]
        # Grid-invariant operands: hoisted out of the unrolled loop.
        whh_f = whh_f_ref[...]
        whh_b = whh_b_ref[...]
        bhn_f = bhn_ref[0]
        bhn_b = bhn_ref[1]
        h_f = h_scr[0]
        h_b = h_scr[1]

        def gru_cell(gi, gh, bhn, h):
            # torch.nn.GRU equations, gate order [r, z, n]; b_ih + b_hh_{r,z}
            # are folded into gi, only b_hh_n stays inside the r* term.
            r = jax.nn.sigmoid(gi[:, 0:Hp] + gh[:, 0:Hp])
            z = jax.nn.sigmoid(gi[:, Hp:2 * Hp] + gh[:, Hp:2 * Hp])
            n = jnp.tanh(gi[:, 2 * Hp:3 * Hp] + r * (gh[:, 2 * Hp:3 * Hp] + bhn))
            return (1.0 - z) * n + z * h

        for j in range(C):                 # static unroll -> LLO sees the chunk
            gi_f = gi_f_ref[j]             # bf16; promoted to f32 on add
            gi_b = gi_b_ref[C - 1 - j]
            # Per-direction matmuls: no discarded columns, no jnp.where select.
            gh_f = jnp.dot(h_f.astype(jnp.bfloat16), whh_f,
                           preferred_element_type=jnp.float32)
            gh_b = jnp.dot(h_b.astype(jnp.bfloat16), whh_b,
                           preferred_element_type=jnp.float32)
            hf_new = gru_cell(gi_f, gh_f, bhn_f, h_f)
            hb_new = gru_cell(gi_b, gh_b, bhn_b, h_b)
            if needs_mask:                 # only emitted when T % C != 0
                valid = (c * C + j) < T
                hf_new = jnp.where(valid, hf_new, h_f)
                hb_new = jnp.where(valid, hb_new, h_b)
            h_f, h_b = hf_new, hb_new
            # Time-major, full-tile unmasked stores.
            out_f_ref[j] = h_f
            out_b_ref[C - 1 - j] = h_b

        # One carry store per chunk, not per step.
        h_scr[0] = h_f
        h_scr[1] = h_b

        @pl.when(c == pl.num_programs(0) - 1)
        def _():
            hlast_ref[0] = h_f
            hlast_ref[1] = h_b

    return kernel


@jax.jit
def encoder_rnn_forward(tokens, hidden, params):
    """Mirrors EncoderRNN.forward: tokens (B,T) int -> (output (B,T,2H), hidden (2,B,H))."""
    B, T = tokens.shape
    H = params["embedding"].shape[1]
    Hp = _round_up(H, 128)                 # lane-dense hidden
    Bp = _round_up(B, 8)                   # sublane-dense batch
    C = max(1, min(16, T))                 # time-chunk per grid step
    nC = pl.cdiv(T, C)
    Tp = nC * C
    pad_t = Tp - T
    needs_mask = pad_t != 0
    f32, bf16 = jnp.float32, jnp.bfloat16

    # ---- glue: embedding lookup (gather) in plain JAX ---------------------
    tokens = tokens.astype(jnp.int32)                                     # inputs.long()
    emb_tm = jnp.take(params["embedding"], tokens.T, axis=0).astype(f32)  # (T, B, H)
    emb_pad = jnp.pad(emb_tm, ((0, 0), (0, Bp - B), (0, Hp - H)))         # (T, Bp, Hp)

    # ---- hoisted input projection: one large bf16 matmul for both dirs ----
    wih_cat = jnp.concatenate([_pad_gates_mat(params["wih_f"], H, Hp),
                               _pad_gates_mat(params["wih_b"], H, Hp)], axis=1)  # (Hp, 6Hp)
    gi_both = jnp.dot(emb_pad.reshape(T * Bp, Hp).astype(bf16),
                      wih_cat.astype(bf16),
                      preferred_element_type=f32)                          # (T*Bp, 6Hp)

    zeros_h = jnp.zeros((H,), f32)
    bias_f = _pad_gates_vec(params["bih_f"]
                            + jnp.concatenate([params["bhh_f"][:2 * H], zeros_h]), H, Hp)
    bias_b = _pad_gates_vec(params["bih_b"]
                            + jnp.concatenate([params["bhh_b"][:2 * H], zeros_h]), H, Hp)
    # Stream gi in bf16 (halves the dominant HBM stream); gate math stays f32.
    gi_f = (gi_both[:, :3 * Hp].reshape(T, Bp, 3 * Hp) + bias_f).astype(bf16)
    gi_b = (gi_both[:, 3 * Hp:].reshape(T, Bp, 3 * Hp) + bias_b).astype(bf16)

    # Time padding: forward at the end, backward at the front, so the backward
    # reversal is expressible with index_map (nC-1-c) + static in-chunk C-1-j.
    gi_f_pad = jnp.pad(gi_f, ((0, pad_t), (0, 0), (0, 0)))                 # (Tp, Bp, 3Hp)
    gi_b_pad = jnp.pad(gi_b, ((pad_t, 0), (0, 0), (0, 0)))                 # (Tp, Bp, 3Hp)

    # ---- small constants for the recurrent kernel -------------------------
    whh_f_p = _pad_gates_mat(params["whh_f"], H, Hp).astype(bf16)          # (Hp, 3Hp)
    whh_b_p = _pad_gates_mat(params["whh_b"], H, Hp).astype(bf16)          # (Hp, 3Hp)

    bhn_f = jnp.zeros((Hp,), f32).at[:H].set(params["bhh_f"][2 * H:])
    bhn_b = jnp.zeros((Hp,), f32).at[:H].set(params["bhh_b"][2 * H:])
    bhn_cat = jnp.stack([jnp.broadcast_to(bhn_f, (Bp, Hp)),
                         jnp.broadcast_to(bhn_b, (Bp, Hp))], axis=0)       # (2, Bp, Hp)

    h0_cat = jnp.zeros((2, Bp, Hp), f32).at[:, :B, :H].set(hidden.astype(f32))

    kernel = _make_bigru_kernel(C, T, needs_mask)

    out_f, out_b, h_last = pl.pallas_call(
        kernel,
        out_shape=(jax.ShapeDtypeStruct((Tp, Bp, Hp), f32),
                   jax.ShapeDtypeStruct((Tp, Bp, Hp), f32),
                   jax.ShapeDtypeStruct((2, Bp, Hp), f32)),
        grid_spec=pltpu.PrefetchScalarGridSpec(
            num_scalar_prefetch=0,
            grid=(nC,),
            in_specs=[
                pl.BlockSpec((C, Bp, 3 * Hp), lambda c: (c, 0, 0)),           # gi_f
                pl.BlockSpec((C, Bp, 3 * Hp), lambda c: (nC - 1 - c, 0, 0)),  # gi_b (reversed)
                pl.BlockSpec((2, Bp, Hp), lambda c: (0, 0, 0)),               # h0
                pl.BlockSpec((Hp, 3 * Hp), lambda c: (0, 0)),                 # whh_f
                pl.BlockSpec((Hp, 3 * Hp), lambda c: (0, 0)),                 # whh_b
                pl.BlockSpec((2, Bp, Hp), lambda c: (0, 0, 0)),               # bhh_n
            ],
            out_specs=[
                pl.BlockSpec((C, Bp, Hp), lambda c: (c, 0, 0)),               # out_f, time-major
                pl.BlockSpec((C, Bp, Hp), lambda c: (nC - 1 - c, 0, 0)),      # out_b, reversed
                pl.BlockSpec((2, Bp, Hp), lambda c: (0, 0, 0)),               # final hidden
            ],
            scratch_shapes=[pltpu.VMEM((2, Bp, Hp), f32)],
        ),
        compiler_params=pltpu.CompilerParams(
            dimension_semantics=("arbitrary",)),   # sequential recurrence
    )(gi_f_pad, gi_b_pad, h0_cat, whh_f_p, whh_b_p, bhn_cat)

    # Slice off padding; transpose the small un-padded result to batch-first.
    out_f_t = out_f[:T, :B, :H]                      # (T, B, H)
    out_b_t = out_b[pad_t:, :B, :H]                  # (T, B, H)
    output = jnp.transpose(jnp.concatenate([out_f_t, out_b_t], axis=-1), (1, 0, 2))
    h_n = h_last[:, :B, :H]                          # (2, B, H)
    return output, h_n


# ----------------------------- pure-JAX reference -----------------------------

def _gru_ref_direction(gi_seq, h0, whh, bhh_n):
    """Reference GRU scan over precomputed (bf16-quantized) input projections."""
    H = h0.shape[-1]
    bf16 = jnp.bfloat16

    def step(h, gi):
        gh = jnp.dot(h.astype(bf16), whh.astype(bf16),
                     preferred_element_type=jnp.float32)
        r = jax.nn.sigmoid(gi[:, :H] + gh[:, :H])
        z = jax.nn.sigmoid(gi[:, H:2 * H] + gh[:, H:2 * H])
        n = jnp.tanh(gi[:, 2 * H:] + r * (gh[:, 2 * H:] + bhh_n))
        h_new = (1.0 - z) * n + z * h
        return h_new, h_new

    h_last, outs = jax.lax.scan(step, h0, gi_seq)
    return outs, h_last


def _reference_forward(tokens, hidden, params):
    H = params["embedding"].shape[1]
    emb = jnp.take(params["embedding"], tokens.astype(jnp.int32), axis=0)   # (B, T, H)
    x_tm = jnp.transpose(emb, (1, 0, 2)).astype(jnp.float32)                # (T, B, H)
    zeros_h = jnp.zeros((H,), jnp.float32)

    def gi_seq(wih, bih, bhh):
        # Mirror the kernel path: bias fold + bf16 streaming quantization.
        bias = bih + jnp.concatenate([bhh[:2 * H], zeros_h])
        gi = jnp.einsum("tbh,hg->tbg", x_tm.astype(jnp.bfloat16), wih.astype(jnp.bfloat16),
                        preferred_element_type=jnp.float32) + bias
        return gi.astype(jnp.bfloat16).astype(jnp.float32)

    gi_f = gi_seq(params["wih_f"], params["bih_f"], params["bhh_f"])
    gi_b = gi_seq(params["wih_b"], params["bih_b"], params["bhh_b"])
    out_f, hf = _gru_ref_direction(gi_f, hidden[0], params["whh_f"], params["bhh_f"][2 * H:])
    out_b_rev, hb = _gru_ref_direction(gi_b[::-1], hidden[1],
                                       params["whh_b"], params["bhh_b"][2 * H:])
    out_b = out_b_rev[::-1]
    output = jnp.transpose(jnp.concatenate([out_f, out_b], axis=-1), (1, 0, 2))
    return output, jnp.stack([hf, hb], axis=0)


if __name__ == "__main__":
    B, T, H, V = 2, 8, 32, 10   # batch, seq, hidden_size, input_size(vocab)

    key = jax.random.PRNGKey(0)
    ks = jax.random.split(key, 12)
    bound = 1.0 / np.sqrt(H)

    def uinit(k_, shape):
        return jax.random.uniform(k_, shape, jnp.float32, -bound, bound)

    params = {
        "embedding": uinit(ks[0], (V, H)),
        # torch stores weight_ih/hh as (3H, H); we keep the transposed (H, 3H)
        # layout (gate order r, z, n) so the hot path is x @ W.
        "wih_f": uinit(ks[1], (H, 3 * H)),
        "whh_f": uinit(ks[2], (H, 3 * H)),
        "bih_f": uinit(ks[3], (3 * H,)),
        "bhh_f": uinit(ks[4], (3 * H,)),
        "wih_b": uinit(ks[5], (H, 3 * H)),
        "whh_b": uinit(ks[6], (H, 3 * H)),
        "bih_b": uinit(ks[7], (3 * H,)),
        "bhh_b": uinit(ks[8], (3 * H,)),
    }

    tokens = jax.random.randint(ks[9], (B, T), 0, V, dtype=jnp.int32)
    hidden0 = jnp.zeros((2, B, H), jnp.float32)   # GRU-correct init_hidden

    output, h_n = encoder_rnn_forward(tokens, hidden0, params)
    jax.block_until_ready((output, h_n))

    assert output.shape == (B, T, 2 * H), output.shape
    assert h_n.shape == (2, B, H), h_n.shape

    ref_out, ref_h = _reference_forward(tokens, hidden0, params)
    # Both paths use bf16 MXU matmuls with f32 accumulation and stream bf16
    # gate pre-activations; residual differences are accumulation-order /
    # bf16 rounding only, so a 1e-2 tolerance (h is O(1)) still catches any
    # structural bug.
    np.testing.assert_allclose(np.asarray(output), np.asarray(ref_out), atol=1e-2, rtol=1e-2)
    np.testing.assert_allclose(np.asarray(h_n), np.asarray(ref_h), atol=1e-2, rtol=1e-2)

    print("KERNEL_OK")
</pallas_src>

<mosaic_0001>
module attributes {stable_mosaic.version = 11 : i64} {
  func.func @kernel(%arg0: i32, %arg1: memref<8x8x384xbf16, #tpu.memory_space<vmem>>, %arg2: memref<8x8x384xbf16, #tpu.memory_space<vmem>>, %arg3: memref<2x8x128xf32, #tpu.memory_space<vmem>>, %arg4: memref<128x384xbf16, #tpu.memory_space<vmem>>, %arg5: memref<128x384xbf16, #tpu.memory_space<vmem>>, %arg6: memref<2x8x128xf32, #tpu.memory_space<vmem>>, %arg7: memref<8x8x128xf32, #tpu.memory_space<vmem>>, %arg8: memref<8x8x128xf32, #tpu.memory_space<vmem>>, %arg9: memref<2x8x128xf32, #tpu.memory_space<vmem>>, %arg10: memref<2x8x128xf32, #tpu.memory_space<vmem>>) attributes {dimension_semantics = [#tpu.dimension_semantics<arbitrary>], iteration_bounds = array<i64: 1>, scalar_prefetch = 0 : i64, scratch_operands = 1 : i64, tpu.core_type = #tpu.core_type<tc>, window_params = [{transform_indices = @transform_0, window_bounds = array<i64: 8, 8, 384>}, {transform_indices = @transform_1, window_bounds = array<i64: 8, 8, 384>}, {pipeline_mode = #tpu.pipeline_mode<synchronous>, transform_indices = @transform_2, window_bounds = array<i64: 2, 8, 128>}, {pipeline_mode = #tpu.pipeline_mode<synchronous>, transform_indices = @transform_3, window_bounds = array<i64: 128, 384>}, {pipeline_mode = #tpu.pipeline_mode<synchronous>, transform_indices = @transform_4, window_bounds = array<i64: 128, 384>}, {pipeline_mode = #tpu.pipeline_mode<synchronous>, transform_indices = @transform_5, window_bounds = array<i64: 2, 8, 128>}, {transform_indices = @transform_6, window_bounds = array<i64: 8, 8, 128>}, {transform_indices = @transform_7, window_bounds = array<i64: 8, 8, 128>}, {pipeline_mode = #tpu.pipeline_mode<synchronous>, transform_indices = @transform_8, window_bounds = array<i64: 2, 8, 128>}]} {
    %c0_i32 = arith.constant 0 : i32
    %0 = arith.cmpi eq, %arg0, %c0_i32 : i32
    %1 = arith.extui %0 : i1 to i32
    %c0_i32_0 = arith.constant 0 : i32
    %2 = arith.cmpi ne, %1, %c0_i32_0 : i32
    scf.if %2 {
      %c0_176 = arith.constant 0 : index
      %c0_177 = arith.constant 0 : index
      %c0_178 = arith.constant 0 : index
      %614 = vector.load %arg3[%c0_176, %c0_177, %c0_178] : memref<2x8x128xf32, #tpu.memory_space<vmem>>, vector<2x8x128xf32>
      %c0_179 = arith.constant 0 : index
      %c0_180 = arith.constant 0 : index
      %c0_181 = arith.constant 0 : index
      %615 = vector.load %arg10[%c0_179, %c0_180, %c0_181] : memref<2x8x128xf32, #tpu.memory_space<vmem>>, vector<2x8x128xf32>
      tpu.vector_store %arg10[%c0_179, %c0_180, %c0_181], %614 {strides = array<i32>} : memref<2x8x128xf32, #tpu.memory_space<vmem>>, vector<2x8x128xf32>,
    } else {
    }
    %c0 = arith.constant 0 : index
    %c0_1 = arith.constant 0 : index
    %3 = vector.load %arg4[%c0, %c0_1] : memref<128x384xbf16, #tpu.memory_space<vmem>>, vector<128x384xbf16>
    %c0_2 = arith.constant 0 : index
    %c0_3 = arith.constant 0 : index
    %4 = vector.load %arg5[%c0_2, %c0_3] : memref<128x384xbf16, #tpu.memory_space<vmem>>, vector<128x384xbf16>
    %c0_4 = arith.constant 0 : index
    %c0_5 = arith.constant 0 : index
    %c0_6 = arith.constant 0 : index
    %5 = vector.load %arg6[%c0_4, %c0_5, %c0_6] : memref<2x8x128xf32, #tpu.memory_space<vmem>>, vector<1x8x128xf32>
    %6 = vector.shape_cast %5 : vector<1x8x128xf32> to vector<8x128xf32>
    %c1 = arith.constant 1 : index
    %c0_7 = arith.constant 0 : index
    %c0_8 = arith.constant 0 : index
    %7 = vector.load %arg6[%c1, %c0_7, %c0_8] : memref<2x8x128xf32, #tpu.memory_space<vmem>>, vector<1x8x128xf32>
    %8 = vector.shape_cast %7 : vector<1x8x128xf32> to vector<8x128xf32>
    %c0_9 = arith.constant 0 : index
    %c0_10 = arith.constant 0 : index
    %c0_11 = arith.constant 0 : index
    %9 = vector.load %arg10[%c0_9, %c0_10, %c0_11] : memref<2x8x128xf32, #tpu.memory_space<vmem>>, vector<1x8x128xf32>
    %10 = vector.shape_cast %9 : vector<1x8x128xf32> to vector<8x128xf32>
    %c1_12 = arith.constant 1 : index
    %c0_13 = arith.constant 0 : index
    %c0_14 = arith.constant 0 : index
    %11 = vector.load %arg10[%c1_12, %c0_13, %c0_14] : memref<2x8x128xf32, #tpu.memory_space<vmem>>, vector<1x8x128xf32>
    %12 = vector.shape_cast %11 : vector<1x8x128xf32> to vector<8x128xf32>
    %c0_15 = arith.constant 0 : index
    %c0_16 = arith.constant 0 : index
    %c0_17 = arith.constant 0 : index
    %13 = vector.load %arg1[%c0_15, %c0_16, %c0_17] : memref<8x8x384xbf16, #tpu.memory_space<vmem>>, vector<1x8x384xbf16>
    %14 = vector.shape_cast %13 : vector<1x8x384xbf16> to vector<8x384xbf16>
    %c7 = arith.constant 7 : index
    %c0_18 = arith.constant 0 : index
    %c0_19 = arith.constant 0 : index
    %15 = vector.load %arg2[%c7, %c0_18, %c0_19] : memref<8x8x384xbf16, #tpu.memory_space<vmem>>, vector<1x8x384xbf16>
    %16 = vector.shape_cast %15 : vector<1x8x384xbf16> to vector<8x384xbf16>
    %17 = arith.truncf %10 : vector<8x128xf32> to vector<8x128xbf16>
    %cst = arith.constant dense<0.000000e+00> : vector<8x384xf32>
    %18 = tpu.matmul %17, %3, %cst {dimension_numbers = #tpu.dot_dimension_numbers<[1], [0], [0], [1], [0, 0, 1, 1], [], []>} : vector<8x128xbf16>, vector<128x384xbf16>, vector<8x384xf32> -> vector<8x384xf32>
    %19 = arith.truncf %12 : vector<8x128xf32> to vector<8x128xbf16>
    %cst_20 = arith.constant dense<0.000000e+00> : vector<8x384xf32>
    %20 = tpu.matmul %19, %4, %cst_20 {dimension_numbers = #tpu.dot_dimension_numbers<[1], [0], [0], [1], [0, 0, 1, 1], [], []>} : vector<8x128xbf16>, vector<128x384xbf16>, vector<8x384xf32> -> vector<8x384xf32>
    %21 = vector.extract_strided_slice %14 {offsets = [0, 0], sizes = [8, 128], strides = [1, 1]} : vector<8x384xbf16> to vector<8x128xbf16>
    %22 = vector.extract_strided_slice %18 {offsets = [0, 0], sizes = [8, 128], strides = [1, 1]} : vector<8x384xf32> to vector<8x128xf32>
    %23 = arith.extf %21 : vector<8x128xbf16> to vector<8x128xf32>
    %24 = arith.addf %23, %22 : vector<8x128xf32>
    %25 = arith.negf %24 : vector<8x128xf32>
    %26 = math.exp %25 : vector<8x128xf32>
    %cst_21 = arith.constant 1.000000e+00 : f32
    %27 = vector.broadcast %cst_21 : f32 to vector<8x128xf32>
    %28 = arith.addf %27, %26 : vector<8x128xf32>
    %29 = arith.divf %27, %28 : vector<8x128xf32>
    %30 = vector.extract_strided_slice %14 {offsets = [0, 128], sizes = [8, 128], strides = [1, 1]} : vector<8x384xbf16> to vector<8x128xbf16>
    %31 = vector.extract_strided_slice %18 {offsets = [0, 128], sizes = [8, 128], strides = [1, 1]} : vector<8x384xf32> to vector<8x128xf32>
    %32 = arith.extf %30 : vector<8x128xbf16> to vector<8x128xf32>
    %33 = arith.addf %32, %31 : vector<8x128xf32>
    %34 = arith.negf %33 : vector<8x128xf32>
    %35 = math.exp %34 : vector<8x128xf32>
    %cst_22 = arith.constant 1.000000e+00 : f32
    %36 = vector.broadcast %cst_22 : f32 to vector<8x128xf32>
    %37 = arith.addf %36, %35 : vector<8x128xf32>
    %38 = arith.divf %36, %37 : vector<8x128xf32>
    %39 = vector.extract_strided_slice %14 {offsets = [0, 256], sizes = [8, 128], strides = [1, 1]} : vector<8x384xbf16> to vector<8x128xbf16>
    %40 = vector.extract_strided_slice %18 {offsets = [0, 256], sizes = [8, 128], strides = [1, 1]} : vector<8x384xf32> to vector<8x128xf32>
    %41 = arith.addf %40, %6 : vector<8x128xf32>
    %42 = arith.mulf %29, %41 : vector<8x128xf32>
    %43 = arith.extf %39 : vector<8x128xbf16> to vector<8x128xf32>
    %44 = arith.addf %43, %42 : vector<8x128xf32>
    %45 = math.tanh %44 : vector<8x128xf32>
    %cst_23 = arith.constant 1.000000e+00 : f32
    %46 = vector.broadcast %cst_23 : f32 to vector<8x128xf32>
    %47 = arith.subf %46, %38 : vector<8x128xf32>
    %48 = arith.mulf %47, %45 : vector<8x128xf32>
    %49 = arith.mulf %38, %10 : vector<8x128xf32>
    %50 = arith.addf %48, %49 : vector<8x128xf32>
    %51 = vector.extract_strided_slice %16 {offsets = [0, 0], sizes = [8, 128], strides = [1, 1]} : vector<8x384xbf16> to vector<8x128xbf16>
    %52 = vector.extract_strided_slice %20 {offsets = [0, 0], sizes = [8, 128], strides = [1, 1]} : vector<8x384xf32> to vector<8x128xf32>
    %53 = arith.extf %51 : vector<8x128xbf16> to vector<8x128xf32>
    %54 = arith.addf %53, %52 : vector<8x128xf32>
    %55 = arith.negf %54 : vector<8x128xf32>
    %56 = math.exp %55 : vector<8x128xf32>
    %cst_24 = arith.constant 1.000000e+00 : f32
    %57 = vector.broadcast %cst_24 : f32 to vector<8x128xf32>
    %58 = arith.addf %57, %56 : vector<8x128xf32>
    %59 = arith.divf %57, %58 : vector<8x128xf32>
    %60 = vector.extract_strided_slice %16 {offsets = [0, 128], sizes = [8, 128], strides = [1, 1]} : vector<8x384xbf16> to vector<8x128xbf16>
    %61 = vector.extract_strided_slice %20 {offsets = [0, 128], sizes = [8, 128], strides = [1, 1]} : vector<8x384xf32> to vector<8x128xf32>
    %62 = arith.extf %60 : vector<8x128xbf16> to vector<8x128xf32>
    %63 = arith.addf %62, %61 : vector<8x128xf32>
    %64 = arith.negf %63 : vector<8x128xf32>
    %65 = math.exp %64 : vector<8x128xf32>
    %cst_25 = arith.constant 1.000000e+00 : f32
    %66 = vector.broadcast %cst_25 : f32 to vector<8x128xf32>
    %67 = arith.addf %66, %65 : vector<8x128xf32>
    %68 = arith.divf %66, %67 : vector<8x128xf32>
    %69 = vector.extract_strided_slice %16 {offsets = [0, 256], sizes = [8, 128], strides = [1, 1]} : vector<8x384xbf16> to vector<8x128xbf16>
    %70 = vector.extract_strided_slice %20 {offsets = [0, 256], sizes = [8, 128], strides = [1, 1]} : vector<8x384xf32> to vector<8x128xf32>
    %71 = arith.addf %70, %8 : vector<8x128xf32>
    %72 = arith.mulf %59, %71 : vector<8x128xf32>
    %73 = arith.extf %69 : vector<8x128xbf16> to vector<8x128xf32>
    %74 = arith.addf %73, %72 : vector<8x128xf32>
    %75 = math.tanh %74 : vector<8x128xf32>
    %cst_26 = arith.constant 1.000000e+00 : f32
    %76 = vector.broadcast %cst_26 : f32 to vector<8x128xf32>
    %77 = arith.subf %76, %68 : vector<8x128xf32>
    %78 = arith.mulf %77, %75 : vector<8x128xf32>
    %79 = arith.mulf %68, %12 : vector<8x128xf32>
    %80 = arith.addf %78, %79 : vector<8x128xf32>
    %c0_27 = arith.constant 0 : index
    %c0_28 = arith.constant 0 : index
    %c0_29 = arith.constant 0 : index
    %81 = vector.load %arg7[%c0_27, %c0_28, %c0_29] : memref<8x8x128xf32, #tpu.memory_space<vmem>>, vector<1x8x128xf32>
    %82 = vector.shape_cast %81 : vector<1x8x128xf32> to vector<8x128xf32>
    %83 = vector.shape_cast %50 : vector<8x128xf32> to vector<1x8x128xf32>
    tpu.vector_store %arg7[%c0_27, %c0_28, %c0_29], %83 {strides = array<i32>} : memref<8x8x128xf32, #tpu.memory_space<vmem>>, vector<1x8x128xf32>,
    %c7_30 = arith.constant 7 : index
    %c0_31 = arith.constant 0 : index
    %c0_32 = arith.constant 0 : index
    %84 = vector.load %arg8[%c7_30, %c0_31, %c0_32] : memref<8x8x128xf32, #tpu.memory_space<vmem>>, vector<1x8x128xf32>
    %85 = vector.shape_cast %84 : vector<1x8x128xf32> to vector<8x128xf32>
    %86 = vector.shape_cast %80 : vector<8x128xf32> to vector<1x8x128xf32>
    tpu.vector_store %arg8[%c7_30, %c0_31, %c0_32], %86 {strides = array<i32>} : memref<8x8x128xf32, #tpu.memory_space<vmem>>, vector<1x8x128xf32>,
    %c1_33 = arith.constant 1 : index
    %c0_34 = arith.constant 0 : index
    %c0_35 = arith.constant 0 : index
    %87 = vector.load %arg1[%c1_33, %c0_34, %c0_35] : memref<8x8x384xbf16, #tpu.memory_space<vmem>>, vector<1x8x384xbf16>
    %88 = vector.shape_cast %87 : vector<1x8x384xbf16> to vector<8x384xbf16>
    %c6 = arith.constant 6 : index
    %c0_36 = arith.constant 0 : index
    %c0_37 = arith.constant 0 : index
    %89 = vector.load %arg2[%c6, %c0_36, %c0_37] : memref<8x8x384xbf16, #tpu.memory_space<vmem>>, vector<1x8x384xbf16>
    %90 = vector.shape_cast %89 : vector<1x8x384xbf16> to vector<8x384xbf16>
    %91 = arith.truncf %50 : vector<8x128xf32> to vector<8x128xbf16>
    %cst_38 = arith.constant dense<0.000000e+00> : vector<8x384xf32>
    %92 = tpu.matmul %91, %3, %cst_38 {dimension_numbers = #tpu.dot_dimension_numbers<[1], [0], [0], [1], [0, 0, 1, 1], [], []>} : vector<8x128xbf16>, vector<128x384xbf16>, vector<8x384xf32> -> vector<8x384xf32>
    %93 = arith.truncf %80 : vector<8x128xf32> to vector<8x128xbf16>
    %cst_39 = arith.constant dense<0.000000e+00> : vector<8x384xf32>
    %94 = tpu.matmul %93, %4, %cst_39 {dimension_numbers = #tpu.dot_dimension_numbers<[1], [0], [0], [1], [0, 0, 1, 1], [], []>} : vector<8x128xbf16>, vector<128x384xbf16>, vector<8x384xf32> -> vector<8x384xf32>
    %95 = vector.extract_strided_slice %88 {offsets = [0, 0], sizes = [8, 128], strides = [1, 1]} : vector<8x384xbf16> to vector<8x128xbf16>
    %96 = vector.extract_strided_slice %92 {offsets = [0, 0], sizes = [8, 128], strides = [1, 1]} : vector<8x384xf32> to vector<8x128xf32>
    %97 = arith.extf %95 : vector<8x128xbf16> to vector<8x128xf32>
    %98 = arith.addf %97, %96 : vector<8x128xf32>
    %99 = arith.negf %98 : vector<8x128xf32>
    %100 = math.exp %99 : vector<8x128xf32>
    %cst_40 = arith.constant 1.000000e+00 : f32
    %101 = vector.broadcast %cst_40 : f32 to vector<8x128xf32>
    %102 = arith.addf %101, %100 : vector<8x128xf32>
    %103 = arith.divf %101, %102 : vector<8x128xf32>
    %104 = vector.extract_strided_slice %88 {offsets = [0, 128], sizes = [8, 128], strides = [1, 1]} : vector<8x384xbf16> to vector<8x128xbf16>
    %105 = vector.extract_strided_slice %92 {offsets = [0, 128], sizes = [8, 128], strides = [1, 1]} : vector<8x384xf32> to vector<8x128xf32>
    %106 = arith.extf %104 : vector<8x128xbf16> to vector<8x128xf32>
    %107 = arith.addf %106, %105 : vector<8x128xf32>
    %108 = arith.negf %107 : vector<8x128xf32>
    %109 = math.exp %108 : vector<8x128xf32>
    %cst_41 = arith.constant 1.000000e+00 : f32
    %110 = vector.broadcast %cst_41 : f32 to vector<8x128xf32>
    %111 = arith.addf %110, %109 : vector<8x128xf32>
    %112 = arith.divf %110, %111 : vector<8x128xf32>
    %113 = vector.extract_strided_slice %88 {offsets = [0, 256], sizes = [8, 128], strides = [1, 1]} : vector<8x384xbf16> to vector<8x128xbf16>
    %114 = vector.extract_strided_slice %92 {offsets = [0, 256], sizes = [8, 128], strides = [1, 1]} : vector<8x384xf32> to vector<8x128xf32>
    %115 = arith.addf %114, %6 : vector<8x128xf32>
    %116 = arith.mulf %103, %115 : vector<8x128xf32>
    %117 = arith.extf %113 : vector<8x128xbf16> to vector<8x128xf32>
    %118 = arith.addf %117, %116 : vector<8x128xf32>
    %119 = math.tanh %118 : vector<8x128xf32>
    %cst_42 = arith.constant 1.000000e+00 : f32
    %120 = vector.broadcast %cst_42 : f32 to vector<8x128xf32>
    %121 = arith.subf %120, %112 : vector<8x128xf32>
    %122 = arith.mulf %121, %119 : vector<8x128xf32>
    %123 = arith.mulf %112, %50 : vector<8x128xf32>
    %124 = arith.addf %122, %123 : vector<8x128xf32>
    %125 = vector.extract_strided_slice %90 {offsets = [0, 0], sizes = [8, 128], strides = [1, 1]} : vector<8x384xbf16> to vector<8x128xbf16>
    %126 = vector.extract_strided_slice %94 {offsets = [0, 0], sizes = [8, 128], strides = [1, 1]} : vector<8x384xf32> to vector<8x128xf32>
    %127 = arith.extf %125 : vector<8x128xbf16> to vector<8x128xf32>
    %128 = arith.addf %127, %126 : vector<8x128xf32>
    %129 = arith.negf %128 : vector<8x128xf32>
    %130 = math.exp %129 : vector<8x128xf32>
    %cst_43 = arith.constant 1.000000e+00 : f32
    %131 = vector.broadcast %cst_43 : f32 to vector<8x128xf32>
    %132 = arith.addf %131, %130 : vector<8x128xf32>
    %133 = arith.divf %131, %132 : vector<8x128xf32>
    %134 = vector.extract_strided_slice %90 {offsets = [0, 128], sizes = [8, 128], strides = [1, 1]} : vector<8x384xbf16> to vector<8x128xbf16>
    %135 = vector.extract_strided_slice %94 {offsets = [0, 128], sizes = [8, 128], strides = [1, 1]} : vector<8x384xf32> to vector<8x128xf32>
    %136 = arith.extf %134 : vector<8x128xbf16> to vector<8x128xf32>
    %137 = arith.addf %136, %135 : vector<8x128xf32>
    %138 = arith.negf %137 : vector<8x128xf32>
    %139 = math.exp %138 : vector<8x128xf32>
    %cst_44 = arith.constant 1.000000e+00 : f32
    %140 = vector.broadcast %cst_44 : f32 to vector<8x128xf32>
    %141 = arith.addf %140, %139 : vector<8x128xf32>
    %142 = arith.divf %140, %141 : vector<8x128xf32>
    %143 = vector.extract_strided_slice %90 {offsets = [0, 256], sizes = [8, 128], strides = [1, 1]} : vector<8x384xbf16> to vector<8x128xbf16>
    %144 = vector.extract_strided_slice %94 {offsets = [0, 256], sizes = [8, 128], strides = [1, 1]} : vector<8x384xf32> to vector<8x128xf32>
    %145 = arith.addf %144, %8 : vector<8x128xf32>
    %146 = arith.mulf %133, %145 : vector<8x128xf32>
    %147 = arith.extf %143 : vector<8x128xbf16> to vector<8x128xf32>
    %148 = arith.addf %147, %146 : vector<8x128xf32>
    %149 = math.tanh %148 : vector<8x128xf32>
    %cst_45 = arith.constant 1.000000e+00 : f32
    %150 = vector.broadcast %cst_45 : f32 to vector<8x128xf32>
    %151 = arith.subf %150, %142 : vector<8x128xf32>
    %152 = arith.mulf %151, %149 : vector<8x128xf32>
    %153 = arith.mulf %142, %80 : vector<8x128xf32>
    %154 = arith.addf %152, %153 : vector<8x128xf32>
    %c1_46 = arith.constant 1 : index
    %c0_47 = arith.constant 0 : index
    %c0_48 = arith.constant 0 : index
    %155 = vector.load %arg7[%c1_46, %c0_47, %c0_48] : memref<8x8x128xf32, #tpu.memory_space<vmem>>, vector<1x8x128xf32>
    %156 = vector.shape_cast %155 : vector<1x8x128xf32> to vector<8x128xf32>
    %157 = vector.shape_cast %124 : vector<8x128xf32> to vector<1x8x128xf32>
    tpu.vector_store %arg7[%c1_46, %c0_47, %c0_48], %157 {strides = array<i32>} : memref<8x8x128xf32, #tpu.memory_space<vmem>>, vector<1x8x128xf32>,
    %c6_49 = arith.constant 6 : index
    %c0_50 = arith.constant 0 : index
    %c0_51 = arith.constant 0 : index
    %158 = vector.load %arg8[%c6_49, %c0_50, %c0_51] : memref<8x8x128xf32, #tpu.memory_space<vmem>>, vector<1x8x128xf32>
    %159 = vector.shape_cast %158 : vector<1x8x128xf32> to vector<8x128xf32>
    %160 = vector.shape_cast %154 : vector<8x128xf32> to vector<1x8x128xf32>
    tpu.vector_store %arg8[%c6_49, %c0_50, %c0_51], %160 {strides = array<i32>} : memref<8x8x128xf32, #tpu.memory_space<vmem>>, vector<1x8x128xf32>,
    %c2 = arith.constant 2 : index
    %c0_52 = arith.constant 0 : index
    %c0_53 = arith.constant 0 : index
    %161 = vector.load %arg1[%c2, %c0_52, %c0_53] : memref<8x8x384xbf16, #tpu.memory_space<vmem>>, vector<1x8x384xbf16>
    %162 = vector.shape_cast %161 : vector<1x8x384xbf16> to vector<8x384xbf16>
    %c5 = arith.constant 5 : index
    %c0_54 = arith.constant 0 : index
    %c0_55 = arith.constant 0 : index
    %163 = vector.load %arg2[%c5, %c0_54, %c0_55] : memref<8x8x384xbf16, #tpu.memory_space<vmem>>, vector<1x8x384xbf16>
    %164 = vector.shape_cast %163 : vector<1x8x384xbf16> to vector<8x384xbf16>
    %165 = arith.truncf %124 : vector<8x128xf32> to vector<8x128xbf16>
    %cst_56 = arith.constant dense<0.000000e+00> : vector<8x384xf32>
    %166 = tpu.matmul %165, %3, %cst_56 {dimension_numbers = #tpu.dot_dimension_numbers<[1], [0], [0], [1], [0, 0, 1, 1], [], []>} : vector<8x128xbf16>, vector<128x384xbf16>, vector<8x384xf32> -> vector<8x384xf32>
    %167 = arith.truncf %154 : vector<8x128xf32> to vector<8x128xbf16>
    %cst_57 = arith.constant dense<0.000000e+00> : vector<8x384xf32>
    %168 = tpu.matmul %167, %4, %cst_57 {dimension_numbers = #tpu.dot_dimension_numbers<[1], [0], [0], [1], [0, 0, 1, 1], [], []>} : vector<8x128xbf16>, vector<128x384xbf16>, vector<8x384xf32> -> vector<8x384xf32>
    %169 = vector.extract_strided_slice %162 {offsets = [0, 0], sizes = [8, 128], strides = [1, 1]} : vector<8x384xbf16> to vector<8x128xbf16>
    %170 = vector.extract_strided_slice %166 {offsets = [0, 0], sizes = [8, 128], strides = [1, 1]} : vector<8x384xf32> to vector<8x128xf32>
    %171 = arith.extf %169 : vector<8x128xbf16> to vector<8x128xf32>
    %172 = arith.addf %171, %170 : vector<8x128xf32>
    %173 = arith.negf %172 : vector<8x128xf32>
    %174 = math.exp %173 : vector<8x128xf32>
    %cst_58 = arith.constant 1.000000e+00 : f32
    %175 = vector.broadcast %cst_58 : f32 to vector<8x128xf32>
    %176 = arith.addf %175, %174 : vector<8x128xf32>
    %177 = arith.divf %175, %176 : vector<8x128xf32>
    %178 = vector.extract_strided_slice %162 {offsets = [0, 128], sizes = [8, 128], strides = [1, 1]} : vector<8x384xbf16> to vector<8x128xbf16>
    %179 = vector.extract_strided_slice %166 {offsets = [0, 128], sizes = [8, 128], strides = [1, 1]} : vector<8x384xf32> to vector<8x128xf32>
    %180 = arith.extf %178 : vector<8x128xbf16> to vector<8x128xf32>
    %181 = arith.addf %180, %179 : vector<8x128xf32>
    %182 = arith.negf %181 : vector<8x128xf32>
    %183 = math.exp %182 : vector<8x128xf32>
    %cst_59 = arith.constant 1.000000e+00 : f32
    %184 = vector.broadcast %cst_59 : f32 to vector<8x128xf32>
    %185 = arith.addf %184, %183 : vector<8x128xf32>
    %186 = arith.divf %184, %185 : vector<8x128xf32>
    %187 = vector.extract_strided_slice %162 {offsets = [0, 256], sizes = [8, 128], strides = [1, 1]} : vector<8x384xbf16> to vector<8x128xbf16>
    %188 = vector.extract_strided_slice %166 {offsets = [0, 256], sizes = [8, 128], strides = [1, 1]} : vector<8x384xf32> to vector<8x128xf32>
    %189 = arith.addf %188, %6 : vector<8x128xf32>
    %190 = arith.mulf %177, %189 : vector<8x128xf32>
    %191 = arith.extf %187 : vector<8x128xbf16> to vector<8x128xf32>
    %192 = arith.addf %191, %190 : vector<8x128xf32>
    %193 = math.tanh %192 : vector<8x128xf32>
    %cst_60 = arith.constant 1.000000e+00 : f32
    %194 = vector.broadcast %cst_60 : f32 to vector<8x128xf32>
    %195 = arith.subf %194, %186 : vector<8x128xf32>
    %196 = arith.mulf %195, %193 : vector<8x128xf32>
    %197 = arith.mulf %186, %124 : vector<8x128xf32>
    %198 = arith.addf %196, %197 : vector<8x128xf32>
    %199 = vector.extract_strided_slice %164 {offsets = [0, 0], sizes = [8, 128], strides = [1, 1]} : vector<8x384xbf16> to vector<8x128xbf16>
    %200 = vector.extract_strided_slice %168 {offsets = [0, 0], sizes = [8, 128], strides = [1, 1]} : vector<8x384xf32> to vector<8x128xf32>
    %201 = arith.extf %199 : vector<8x128xbf16> to vector<8x128xf32>
    %202 = arith.addf %201, %200 : vector<8x128xf32>
    %203 = arith.negf %202 : vector<8x128xf32>
    %204 = math.exp %203 : vector<8x128xf32>
    %cst_61 = arith.constant 1.000000e+00 : f32
    %205 = vector.broadcast %cst_61 : f32 to vector<8x128xf32>
    %206 = arith.addf %205, %204 : vector<8x128xf32>
    %207 = arith.divf %205, %206 : vector<8x128xf32>
    %208 = vector.extract_strided_slice %164 {offsets = [0, 128], sizes = [8, 128], strides = [1, 1]} : vector<8x384xbf16> to vector<8x128xbf16>
    %209 = vector.extract_strided_slice %168 {offsets = [0, 128], sizes = [8, 128], strides = [1, 1]} : vector<8x384xf32> to vector<8x128xf32>
    %210 = arith.extf %208 : vector<8x128xbf16> to vector<8x128xf32>
    %211 = arith.addf %210, %209 : vector<8x128xf32>
    %212 = arith.negf %211 : vector<8x128xf32>
    %213 = math.exp %212 : vector<8x128xf32>
    %cst_62 = arith.constant 1.000000e+00 : f32
    %214 = vector.broadcast %cst_62 : f32 to vector<8x128xf32>
    %215 = arith.addf %214, %213 : vector<8x128xf32>
    %216 = arith.divf %214, %215 : vector<8x128xf32>
    %217 = vector.extract_strided_slice %164 {offsets = [0, 256], sizes = [8, 128], strides = [1, 1]} : vector<8x384xbf16> to vector<8x128xbf16>
    %218 = vector.extract_strided_slice %168 {offsets = [0, 256], sizes = [8, 128], strides = [1, 1]} : vector<8x384xf32> to vector<8x128xf32>
    %219 = arith.addf %218, %8 : vector<8x128xf32>
    %220 = arith.mulf %207, %219 : vector<8x128xf32>
    %221 = arith.extf %217 : vector<8x128xbf16> to vector<8x128xf32>
    %222 = arith.addf %221, %220 : vector<8x128xf32>
    %223 = math.tanh %222 : vector<8x128xf32>
    %cst_63 = arith.constant 1.000000e+00 : f32
    %224 = vector.broadcast %cst_63 : f32 to vector<8x128xf32>
    %225 = arith.subf %224, %216 : vector<8x128xf32>
    %226 = arith.mulf %225, %223 : vector<8x128xf32>
    %227 = arith.mulf %216, %154 : vector<8x128xf32>
    %228 = arith.addf %226, %227 : vector<8x128xf32>
    %c2_64 = arith.constant 2 : index
    %c0_65 = arith.constant 0 : index
    %c0_66 = arith.constant 0 : index
    %229 = vector.load %arg7[%c2_64, %c0_65, %c0_66] : memref<8x8x128xf32, #tpu.memory_space<vmem>>, vector<1x8x128xf32>
    %230 = vector.shape_cast %229 : vector<1x8x128xf32> to vector<8x128xf32>
    %231 = vector.shape_cast %198 : vector<8x128xf32> to vector<1x8x128xf32>
    tpu.vector_store %arg7[%c2_64, %c0_65, %c0_66], %231 {strides = array<i32>} : memref<8x8x128xf32, #tpu.memory_space<vmem>>, vector<1x8x128xf32>,
    %c5_67 = arith.constant 5 : index
    %c0_68 = arith.constant 0 : index
    %c0_69 = arith.constant 0 : index
    %232 = vector.load %arg8[%c5_67, %c0_68, %c0_69] : memref<8x8x128xf32, #tpu.memory_space<vmem>>, vector<1x8x128xf32>
    %233 = vector.shape_cast %232 : vector<1x8x128xf32> to vector<8x128xf32>
    %234 = vector.shape_cast %228 : vector<8x128xf32> to vector<1x8x128xf32>
    tpu.vector_store %arg8[%c5_67, %c0_68, %c0_69], %234 {strides = array<i32>} : memref<8x8x128xf32, #tpu.memory_space<vmem>>, vector<1x8x128xf32>,
    %c3 = arith.constant 3 : index
    %c0_70 = arith.constant 0 : index
    %c0_71 = arith.constant 0 : index
    %235 = vector.load %arg1[%c3, %c0_70, %c0_71] : memref<8x8x384xbf16, #tpu.memory_space<vmem>>, vector<1x8x384xbf16>
    %236 = vector.shape_cast %235 : vector<1x8x384xbf16> to vector<8x384xbf16>
    %c4 = arith.constant 4 : index
    %c0_72 = arith.constant 0 : index
    %c0_73 = arith.constant 0 : index
    %237 = vector.load %arg2[%c4, %c0_72, %c0_73] : memref<8x8x384xbf16, #tpu.memory_space<vmem>>, vector<1x8x384xbf16>
    %238 = vector.shape_cast %237 : vector<1x8x384xbf16> to vector<8x384xbf16>
    %239 = arith.truncf %198 : vector<8x128xf32> to vector<8x128xbf16>
    %cst_74 = arith.constant dense<0.000000e+00> : vector<8x384xf32>
    %240 = tpu.matmul %239, %3, %cst_74 {dimension_numbers = #tpu.dot_dimension_numbers<[1], [0], [0], [1], [0, 0, 1, 1], [], []>} : vector<8x128xbf16>, vector<128x384xbf16>, vector<8x384xf32> -> vector<8x384xf32>
    %241 = arith.truncf %228 : vector<8x128xf32> to vector<8x128xbf16>
    %cst_75 = arith.constant dense<0.000000e+00> : vector<8x384xf32>
    %242 = tpu.matmul %241, %4, %cst_75 {dimension_numbers = #tpu.dot_dimension_numbers<[1], [0], [0], [1], [0, 0, 1, 1], [], []>} : vector<8x128xbf16>, vector<128x384xbf16>, vector<8x384xf32> -> vector<8x384xf32>
    %243 = vector.extract_strided_slice %236 {offsets = [0, 0], sizes = [8, 128], strides = [1, 1]} : vector<8x384xbf16> to vector<8x128xbf16>
    %244 = vector.extract_strided_slice %240 {offsets = [0, 0], sizes = [8, 128], strides = [1, 1]} : vector<8x384xf32> to vector<8x128xf32>
    %245 = arith.extf %243 : vector<8x128xbf16> to vector<8x128xf32>
    %246 = arith.addf %245, %244 : vector<8x128xf32>
    %247 = arith.negf %246 : vector<8x128xf32>
    %248 = math.exp %247 : vector<8x128xf32>
    %cst_76 = arith.constant 1.000000e+00 : f32
    %249 = vector.broadcast %cst_76 : f32 to vector<8x128xf32>
    %250 = arith.addf %249, %248 : vector<8x128xf32>
    %251 = arith.divf %249, %250 : vector<8x128xf32>
    %252 = vector.extract_strided_slice %236 {offsets = [0, 128], sizes = [8, 128], strides = [1, 1]} : vector<8x384xbf16> to vector<8x128xbf16>
    %253 = vector.extract_strided_slice %240 {offsets = [0, 128], sizes = [8, 128], strides = [1, 1]} : vector<8x384xf32> to vector<8x128xf32>
    %254 = arith.extf %252 : vector<8x128xbf16> to vector<8x128xf32>
    %255 = arith.addf %254, %253 : vector<8x128xf32>
    %256 = arith.negf %255 : vector<8x128xf32>
    %257 = math.exp %256 : vector<8x128xf32>
    %cst_77 = arith.constant 1.000000e+00 : f32
    %258 = vector.broadcast %cst_77 : f32 to vector<8x128xf32>
    %259 = arith.addf %258, %257 : vector<8x128xf32>
    %260 = arith.divf %258, %259 : vector<8x128xf32>
    %261 = vector.extract_strided_slice %236 {offsets = [0, 256], sizes = [8, 128], strides = [1, 1]} : vector<8x384xbf16> to vector<8x128xbf16>
    %262 = vector.extract_strided_slice %240 {offsets = [0, 256], sizes = [8, 128], strides = [1, 1]} : vector<8x384xf32> to vector<8x128xf32>
    %263 = arith.addf %262, %6 : vector<8x128xf32>
    %264 = arith.mulf %251, %263 : vector<8x128xf32>
    %265 = arith.extf %261 : vector<8x128xbf16> to vector<8x128xf32>
    %266 = arith.addf %265, %264 : vector<8x128xf32>
    %267 = math.tanh %266 : vector<8x128xf32>
    %cst_78 = arith.constant 1.000000e+00 : f32
    %268 = vector.broadcast %cst_78 : f32 to vector<8x128xf32>
    %269 = arith.subf %268, %260 : vector<8x128xf32>
    %270 = arith.mulf %269, %267 : vector<8x128xf32>
    %271 = arith.mulf %260, %198 : vector<8x128xf32>
    %272 = arith.addf %270, %271 : vector<8x128xf32>
    %273 = vector.extract_strided_slice %238 {offsets = [0, 0], sizes = [8, 128], strides = [1, 1]} : vector<8x384xbf16> to vector<8x128xbf16>
    %274 = vector.extract_strided_slice %242 {offsets = [0, 0], sizes = [8, 128], strides = [1, 1]} : vector<8x384xf32> to vector<8x128xf32>
    %275 = arith.extf %273 : vector<8x128xbf16> to vector<8x128xf32>
    %276 = arith.addf %275, %274 : vector<8x128xf32>
    %277 = arith.negf %276 : vector<8x128xf32>
    %278 = math.exp %277 : vector<8x128xf32>
    %cst_79 = arith.constant 1.000000e+00 : f32
    %279 = vector.broadcast %cst_79 : f32 to vector<8x128xf32>
    %280 = arith.addf %279, %278 : vector<8x128xf32>
    %281 = arith.divf %279, %280 : vector<8x128xf32>
    %282 = vector.extract_strided_slice %238 {offsets = [0, 128], sizes = [8, 128], strides = [1, 1]} : vector<8x384xbf16> to vector<8x128xbf16>
    %283 = vector.extract_strided_slice %242 {offsets = [0, 128], sizes = [8, 128], strides = [1, 1]} : vector<8x384xf32> to vector<8x128xf32>
    %284 = arith.extf %282 : vector<8x128xbf16> to vector<8x128xf32>
    %285 = arith.addf %284, %283 : vector<8x128xf32>
    %286 = arith.negf %285 : vector<8x128xf32>
    %287 = math.exp %286 : vector<8x128xf32>
    %cst_80 = arith.constant 1.000000e+00 : f32
    %288 = vector.broadcast %cst_80 : f32 to vector<8x128xf32>
    %289 = arith.addf %288, %287 : vector<8x128xf32>
    %290 = arith.divf %288, %289 : vector<8x128xf32>
    %291 = vector.extract_strided_slice %238 {offsets = [0, 256], sizes = [8, 128], strides = [1, 1]} : vector<8x384xbf16> to vector<8x128xbf16>
    %292 = vector.extract_strided_slice %242 {offsets = [0, 256], sizes = [8, 128], strides = [1, 1]} : vector<8x384xf32> to vector<8x128xf32>
    %293 = arith.addf %292, %8 : vector<8x128xf32>
    %294 = arith.mulf %281, %293 : vector<8x128xf32>
    %295 = arith.extf %291 : vector<8x128xbf16> to vector<8x128xf32>
    %296 = arith.addf %295, %294 : vector<8x128xf32>
    %297 = math.tanh %296 : vector<8x128xf32>
    %cst_81 = arith.constant 1.000000e+00 : f32
    %298 = vector.broadcast %cst_81 : f32 to vector<8x128xf32>
    %299 = arith.subf %298, %290 : vector<8x128xf32>
    %300 = arith.mulf %299, %297 : vector<8x128xf32>
    %301 = arith.mulf %290, %228 : vector<8x128xf32>
    %302 = arith.addf %300, %301 : vector<8x128xf32>
    %c3_82 = arith.constant 3 : index
    %c0_83 = arith.constant 0 : index
    %c0_84 = arith.constant 0 : index
    %303 = vector.load %arg7[%c3_82, %c0_83, %c0_84] : memref<8x8x128xf32, #tpu.memory_space<vmem>>, vector<1x8x128xf32>
    %304 = vector.shape_cast %303 : vector<1x8x128xf32> to vector<8x128xf32>
    %305 = vector.shape_cast %272 : vector<8x128xf32> to vector<1x8x128xf32>
    tpu.vector_store %arg7[%c3_82, %c0_83, %c0_84], %305 {strides = array<i32>} : memref<8x8x128xf32, #tpu.memory_space<vmem>>, vector<1x8x128xf32>,
    %c4_85 = arith.constant 4 : index
    %c0_86 = arith.constant 0 : index
    %c0_87 = arith.constant 0 : index
    %306 = vector.load %arg8[%c4_85, %c0_86, %c0_87] : memref<8x8x128xf32, #tpu.memory_space<vmem>>, vector<1x8x128xf32>
    %307 = vector.shape_cast %306 : vector<1x8x128xf32> to vector<8x128xf32>
    %308 = vector.shape_cast %302 : vector<8x128xf32> to vector<1x8x128xf32>
    tpu.vector_store %arg8[%c4_85, %c0_86, %c0_87], %308 {strides = array<i32>} : memref<8x8x128xf32, #tpu.memory_space<vmem>>, vector<1x8x128xf32>,
    %c4_88 = arith.constant 4 : index
    %c0_89 = arith.constant 0 : index
    %c0_90 = arith.constant 0 : index
    %309 = vector.load %arg1[%c4_88, %c0_89, %c0_90] : memref<8x8x384xbf16, #tpu.memory_space<vmem>>, vector<1x8x384xbf16>
    %310 = vector.shape_cast %309 : vector<1x8x384xbf16> to vector<8x384xbf16>
    %c3_91 = arith.constant 3 : index
    %c0_92 = arith.constant 0 : index
    %c0_93 = arith.constant 0 : index
    %311 = vector.load %arg2[%c3_91, %c0_92, %c0_93] : memref<8x8x384xbf16, #tpu.memory_space<vmem>>, vector<1x8x384xbf16>
    %312 = vector.shape_cast %311 : vector<1x8x384xbf16> to vector<8x384xbf16>
    %313 = arith.truncf %272 : vector<8x128xf32> to vector<8x128xbf16>
    %cst_94 = arith.constant dense<0.000000e+00> : vector<8x384xf32>
    %314 = tpu.matmul %313, %3, %cst_94 {dimension_numbers = #tpu.dot_dimension_numbers<[1], [0], [0], [1], [0, 0, 1, 1], [], []>} : vector<8x128xbf16>, vector<128x384xbf16>, vector<8x384xf32> -> vector<8x384xf32>
    %315 = arith.truncf %302 : vector<8x128xf32> to vector<8x128xbf16>
    %cst_95 = arith.constant dense<0.000000e+00> : vector<8x384xf32>
    %316 = tpu.matmul %315, %4, %cst_95 {dimension_numbers = #tpu.dot_dimension_numbers<[1], [0], [0], [1], [0, 0, 1, 1], [], []>} : vector<8x128xbf16>, vector<128x384xbf16>, vector<8x384xf32> -> vector<8x384xf32>
    %317 = vector.extract_strided_slice %310 {offsets = [0, 0], sizes = [8, 128], strides = [1, 1]} : vector<8x384xbf16> to vector<8x128xbf16>
    %318 = vector.extract_strided_slice %314 {offsets = [0, 0], sizes = [8, 128], strides = [1, 1]} : vector<8x384xf32> to vector<8x128xf32>
    %319 = arith.extf %317 : vector<8x128xbf16> to vector<8x128xf32>
    %320 = arith.addf %319, %318 : vector<8x128xf32>
    %321 = arith.negf %320 : vector<8x128xf32>
    %322 = math.exp %321 : vector<8x128xf32>
    %cst_96 = arith.constant 1.000000e+00 : f32
    %323 = vector.broadcast %cst_96 : f32 to vector<8x128xf32>
    %324 = arith.addf %323, %322 : vector<8x128xf32>
    %325 = arith.divf %323, %324 : vector<8x128xf32>
    %326 = vector.extract_strided_slice %310 {offsets = [0, 128], sizes = [8, 128], strides = [1, 1]} : vector<8x384xbf16> to vector<8x128xbf16>
    %327 = vector.extract_strided_slice %314 {offsets = [0, 128], sizes = [8, 128], strides = [1, 1]} : vector<8x384xf32> to vector<8x128xf32>
    %328 = arith.extf %326 : vector<8x128xbf16> to vector<8x128xf32>
    %329 = arith.addf %328, %327 : vector<8x128xf32>
    %330 = arith.negf %329 : vector<8x128xf32>
    %331 = math.exp %330 : vector<8x128xf32>
    %cst_97 = arith.constant 1.000000e+00 : f32
    %332 = vector.broadcast %cst_97 : f32 to vector<8x128xf32>
    %333 = arith.addf %332, %331 : vector<8x128xf32>
    %334 = arith.divf %332, %333 : vector<8x128xf32>
    %335 = vector.extract_strided_slice %310 {offsets = [0, 256], sizes = [8, 128], strides = [1, 1]} : vector<8x384xbf16> to vector<8x128xbf16>
    %336 = vector.extract_strided_slice %314 {offsets = [0, 256], sizes = [8, 128], strides = [1, 1]} : vector<8x384xf32> to vector<8x128xf32>
    %337 = arith.addf %336, %6 : vector<8x128xf32>
    %338 = arith.mulf %325, %337 : vector<8x128xf32>
    %339 = arith.extf %335 : vector<8x128xbf16> to vector<8x128xf32>
    %340 = arith.addf %339, %338 : vector<8x128xf32>
    %341 = math.tanh %340 : vector<8x128xf32>
    %cst_98 = arith.constant 1.000000e+00 : f32
    %342 = vector.broadcast %cst_98 : f32 to vector<8x128xf32>
    %343 = arith.subf %342, %334 : vector<8x128xf32>
    %344 = arith.mulf %343, %341 : vector<8x128xf32>
    %345 = arith.mulf %334, %272 : vector<8x128xf32>
    %346 = arith.addf %344, %345 : vector<8x128xf32>
    %347 = vector.extract_strided_slice %312 {offsets = [0, 0], sizes = [8, 128], strides = [1, 1]} : vector<8x384xbf16> to vector<8x128xbf16>
    %348 = vector.extract_strided_slice %316 {offsets = [0, 0], sizes = [8, 128], strides = [1, 1]} : vector<8x384xf32> to vector<8x128xf32>
    %349 = arith.extf %347 : vector<8x128xbf16> to vector<8x128xf32>
    %350 = arith.addf %349, %348 : vector<8x128xf32>
    %351 = arith.negf %350 : vector<8x128xf32>
    %352 = math.exp %351 : vector<8x128xf32>
    %cst_99 = arith.constant 1.000000e+00 : f32
    %353 = vector.broadcast %cst_99 : f32 to vector<8x128xf32>
    %354 = arith.addf %353, %352 : vector<8x128xf32>
    %355 = arith.divf %353, %354 : vector<8x128xf32>
    %356 = vector.extract_strided_slice %312 {offsets = [0, 128], sizes = [8, 128], strides = [1, 1]} : vector<8x384xbf16> to vector<8x128xbf16>
    %357 = vector.extract_strided_slice %316 {offsets = [0, 128], sizes = [8, 128], strides = [1, 1]} : vector<8x384xf32> to vector<8x128xf32>
    %358 = arith.extf %356 : vector<8x128xbf16> to vector<8x128xf32>
    %359 = arith.addf %358, %357 : vector<8x128xf32>
    %360 = arith.negf %359 : vector<8x128xf32>
    %361 = math.exp %360 : vector<8x128xf32>
    %cst_100 = arith.constant 1.000000e+00 : f32
    %362 = vector.broadcast %cst_100 : f32 to vector<8x128xf32>
    %363 = arith.addf %362, %361 : vector<8x128xf32>
    %364 = arith.divf %362, %363 : vector<8x128xf32>
    %365 = vector.extract_strided_slice %312 {offsets = [0, 256], sizes = [8, 128], strides = [1, 1]} : vector<8x384xbf16> to vector<8x128xbf16>
    %366 = vector.extract_strided_slice %316 {offsets = [0, 256], sizes = [8, 128], strides = [1, 1]} : vector<8x384xf32> to vector<8x128xf32>
    %367 = arith.addf %366, %8 : vector<8x128xf32>
    %368 = arith.mulf %355, %367 : vector<8x128xf32>
    %369 = arith.extf %365 : vector<8x128xbf16> to vector<8x128xf32>
    %370 = arith.addf %369, %368 : vector<8x128xf32>
    %371 = math.tanh %370 : vector<8x128xf32>
    %cst_101 = arith.constant 1.000000e+00 : f32
    %372 = vector.broadcast %cst_101 : f32 to vector<8x128xf32>
    %373 = arith.subf %372, %364 : vector<8x128xf32>
    %374 = arith.mulf %373, %371 : vector<8x128xf32>
    %375 = arith.mulf %364, %302 : vector<8x128xf32>
    %376 = arith.addf %374, %375 : vector<8x128xf32>
    %c4_102 = arith.constant 4 : index
    %c0_103 = arith.constant 0 : index
    %c0_104 = arith.constant 0 : index
    %377 = vector.load %arg7[%c4_102, %c0_103, %c0_104] : memref<8x8x128xf32, #tpu.memory_space<vmem>>, vector<1x8x128xf32>
    %378 = vector.shape_cast %377 : vector<1x8x128xf32> to vector<8x128xf32>
    %379 = vector.shape_cast %346 : vector<8x128xf32> to vector<1x8x128xf32>
    tpu.vector_store %arg7[%c4_102, %c0_103, %c0_104], %379 {strides = array<i32>} : memref<8x8x128xf32, #tpu.memory_space<vmem>>, vector<1x8x128xf32>,
    %c3_105 = arith.constant 3 : index
    %c0_106 = arith.constant 0 : index
    %c0_107 = arith.constant 0 : index
    %380 = vector.load %arg8[%c3_105, %c0_106, %c0_107] : memref<8x8x128xf32, #tpu.memory_space<vmem>>, vector<1x8x128xf32>
    %381 = vector.shape_cast %380 : vector<1x8x128xf32> to vector<8x128xf32>
    %382 = vector.shape_cast %376 : vector<8x128xf32> to vector<1x8x128xf32>
    tpu.vector_store %arg8[%c3_105, %c0_106, %c0_107], %382 {strides = array<i32>} : memref<8x8x128xf32, #tpu.memory_space<vmem>>, vector<1x8x128xf32>,
    %c5_108 = arith.constant 5 : index
    %c0_109 = arith.constant 0 : index
    %c0_110 = arith.constant 0 : index
    %383 = vector.load %arg1[%c5_108, %c0_109, %c0_110] : memref<8x8x384xbf16, #tpu.memory_space<vmem>>, vector<1x8x384xbf16>
    %384 = vector.shape_cast %383 : vector<1x8x384xbf16> to vector<8x384xbf16>
    %c2_111 = arith.constant 2 : index
    %c0_112 = arith.constant 0 : index
    %c0_113 = arith.constant 0 : index
    %385 = vector.load %arg2[%c2_111, %c0_112, %c0_113] : memref<8x8x384xbf16, #tpu.memory_space<vmem>>, vector<1x8x384xbf16>
    %386 = vector.shape_cast %385 : vector<1x8x384xbf16> to vector<8x384xbf16>
    %387 = arith.truncf %346 : vector<8x128xf32> to vector<8x128xbf16>
    %cst_114 = arith.constant dense<0.000000e+00> : vector<8x384xf32>
    %388 = tpu.matmul %387, %3, %cst_114 {dimension_numbers = #tpu.dot_dimension_numbers<[1], [0], [0], [1], [0, 0, 1, 1], [], []>} : vector<8x128xbf16>, vector<128x384xbf16>, vector<8x384xf32> -> vector<8x384xf32>
    %389 = arith.truncf %376 : vector<8x128xf32> to vector<8x128xbf16>
    %cst_115 = arith.constant dense<0.000000e+00> : vector<8x384xf32>
    %390 = tpu.matmul %389, %4, %cst_115 {dimension_numbers = #tpu.dot_dimension_numbers<[1], [0], [0], [1], [0, 0, 1, 1], [], []>} : vector<8x128xbf16>, vector<128x384xbf16>, vector<8x384xf32> -> vector<8x384xf32>
    %391 = vector.extract_strided_slice %384 {offsets = [0, 0], sizes = [8, 128], strides = [1, 1]} : vector<8x384xbf16> to vector<8x128xbf16>
    %392 = vector.extract_strided_slice %388 {offsets = [0, 0], sizes = [8, 128], strides = [1, 1]} : vector<8x384xf32> to vector<8x128xf32>
    %393 = arith.extf %391 : vector<8x128xbf16> to vector<8x128xf32>
    %394 = arith.addf %393, %392 : vector<8x128xf32>
    %395 = arith.negf %394 : vector<8x128xf32>
    %396 = math.exp %395 : vector<8x128xf32>
    %cst_116 = arith.constant 1.000000e+00 : f32
    %397 = vector.broadcast %cst_116 : f32 to vector<8x128xf32>
    %398 = arith.addf %397, %396 : vector<8x128xf32>
    %399 = arith.divf %397, %398 : vector<8x128xf32>
    %400 = vector.extract_strided_slice %384 {offsets = [0, 128], sizes = [8, 128], strides = [1, 1]} : vector<8x384xbf16> to vector<8x128xbf16>
    %401 = vector.extract_strided_slice %388 {offsets = [0, 128], sizes = [8, 128], strides = [1, 1]} : vector<8x384xf32> to vector<8x128xf32>
    %402 = arith.extf %400 : vector<8x128xbf16> to vector<8x128xf32>
    %403 = arith.addf %402, %401 : vector<8x128xf32>
    %404 = arith.negf %403 : vector<8x128xf32>
    %405 = math.exp %404 : vector<8x128xf32>
    %cst_117 = arith.constant 1.000000e+00 : f32
    %406 = vector.broadcast %cst_117 : f32 to vector<8x128xf32>
    %407 = arith.addf %406, %405 : vector<8x128xf32>
    %408 = arith.divf %406, %407 : vector<8x128xf32>
    %409 = vector.extract_strided_slice %384 {offsets = [0, 256], sizes = [8, 128], strides = [1, 1]} : vector<8x384xbf16> to vector<8x128xbf16>
    %410 = vector.extract_strided_slice %388 {offsets = [0, 256], sizes = [8, 128], strides = [1, 1]} : vector<8x384xf32> to vector<8x128xf32>
    %411 = arith.addf %410, %6 : vector<8x128xf32>
    %412 = arith.mulf %399, %411 : vector<8x128xf32>
    %413 = arith.extf %409 : vector<8x128xbf16> to vector<8x128xf32>
    %414 = arith.addf %413, %412 : vector<8x128xf32>
    %415 = math.tanh %414 : vector<8x128xf32>
    %cst_118 = arith.constant 1.000000e+00 : f32
    %416 = vector.broadcast %cst_118 : f32 to vector<8x128xf32>
    %417 = arith.subf %416, %408 : vector<8x128xf32>
    %418 = arith.mulf %417, %415 : vector<8x128xf32>
    %419 = arith.mulf %408, %346 : vector<8x128xf32>
    %420 = arith.addf %418, %419 : vector<8x128xf32>
    %421 = vector.extract_strided_slice %386 {offsets = [0, 0], sizes = [8, 128], strides = [1, 1]} : vector<8x384xbf16> to vector<8x128xbf16>
    %422 = vector.extract_strided_slice %390 {offsets = [0, 0], sizes = [8, 128], strides = [1, 1]} : vector<8x384xf32> to vector<8x128xf32>
    %423 = arith.extf %421 : vector<8x128xbf16> to vector<8x128xf32>
    %424 = arith.addf %423, %422 : vector<8x128xf32>
    %425 = arith.negf %424 : vector<8x128xf32>
    %426 = math.exp %425 : vector<8x128xf32>
    %cst_119 = arith.constant 1.000000e+00 : f32
    %427 = vector.broadcast %cst_119 : f32 to vector<8x128xf32>
    %428 = arith.addf %427, %426 : vector<8x128xf32>
    %429 = arith.divf %427, %428 : vector<8x128xf32>
    %430 = vector.extract_strided_slice %386 {offsets = [0, 128], sizes = [8, 128], strides = [1, 1]} : vector<8x384xbf16> to vector<8x128xbf16>
    %431 = vector.extract_strided_slice %390 {offsets = [0, 128], sizes = [8, 128], strides = [1, 1]} : vector<8x384xf32> to vector<8x128xf32>
    %432 = arith.extf %430 : vector<8x128xbf16> to vector<8x128xf32>
    %433 = arith.addf %432, %431 : vector<8x128xf32>
    %434 = arith.negf %433 : vector<8x128xf32>
    %435 = math.exp %434 : vector<8x128xf32>
    %cst_120 = arith.constant 1.000000e+00 : f32
    %436 = vector.broadcast %cst_120 : f32 to vector<8x128xf32>
    %437 = arith.addf %436, %435 : vector<8x128xf32>
    %438 = arith.divf %436, %437 : vector<8x128xf32>
    %439 = vector.extract_strided_slice %386 {offsets = [0, 256], sizes = [8, 128], strides = [1, 1]} : vector<8x384xbf16> to vector<8x128xbf16>
    %440 = vector.extract_strided_slice %390 {offsets = [0, 256], sizes = [8, 128], strides = [1, 1]} : vector<8x384xf32> to vector<8x128xf32>
    %441 = arith.addf %440, %8 : vector<8x128xf32>
    %442 = arith.mulf %429, %441 : vector<8x128xf32>
    %443 = arith.extf %439 : vector<8x128xbf16> to vector<8x128xf32>
    %444 = arith.addf %443, %442 : vector<8x128xf32>
    %445 = math.tanh %444 : vector<8x128xf32>
    %cst_121 = arith.constant 1.000000e+00 : f32
    %446 = vector.broadcast %cst_121 : f32 to vector<8x128xf32>
    %447 = arith.subf %446, %438 : vector<8x128xf32>
    %448 = arith.mulf %447, %445 : vector<8x128xf32>
    %449 = arith.mulf %438, %376 : vector<8x128xf32>
    %450 = arith.addf %448, %449 : vector<8x128xf32>
    %c5_122 = arith.constant 5 : index
    %c0_123 = arith.constant 0 : index
    %c0_124 = arith.constant 0 : index
    %451 = vector.load %arg7[%c5_122, %c0_123, %c0_124] : memref<8x8x128xf32, #tpu.memory_space<vmem>>, vector<1x8x128xf32>
    %452 = vector.shape_cast %451 : vector<1x8x128xf32> to vector<8x128xf32>
    %453 = vector.shape_cast %420 : vector<8x128xf32> to vector<1x8x128xf32>
    tpu.vector_store %arg7[%c5_122, %c0_123, %c0_124], %453 {strides = array<i32>} : memref<8x8x128xf32, #tpu.memory_space<vmem>>, vector<1x8x128xf32>,
    %c2_125 = arith.constant 2 : index
    %c0_126 = arith.constant 0 : index
    %c0_127 = arith.constant 0 : index
    %454 = vector.load %arg8[%c2_125, %c0_126, %c0_127] : memref<8x8x128xf32, #tpu.memory_space<vmem>>, vector<1x8x128xf32>
    %455 = vector.shape_cast %454 : vector<1x8x128xf32> to vector<8x128xf32>
    %456 = vector.shape_cast %450 : vector<8x128xf32> to vector<1x8x128xf32>
    tpu.vector_store %arg8[%c2_125, %c0_126, %c0_127], %456 {strides = array<i32>} : memref<8x8x128xf32, #tpu.memory_space<vmem>>, vector<1x8x128xf32>,
    %c6_128 = arith.constant 6 : index
    %c0_129 = arith.constant 0 : index
    %c0_130 = arith.constant 0 : index
    %457 = vector.load %arg1[%c6_128, %c0_129, %c0_130] : memref<8x8x384xbf16, #tpu.memory_space<vmem>>, vector<1x8x384xbf16>
    %458 = vector.shape_cast %457 : vector<1x8x384xbf16> to vector<8x384xbf16>
    %c1_131 = arith.constant 1 : index
    %c0_132 = arith.constant 0 : index
    %c0_133 = arith.constant 0 : index
    %459 = vector.load %arg2[%c1_131, %c0_132, %c0_133] : memref<8x8x384xbf16, #tpu.memory_space<vmem>>, vector<1x8x384xbf16>
    %460 = vector.shape_cast %459 : vector<1x8x384xbf16> to vector<8x384xbf16>
    %461 = arith.truncf %420 : vector<8x128xf32> to vector<8x128xbf16>
    %cst_134 = arith.constant dense<0.000000e+00> : vector<8x384xf32>
    %462 = tpu.matmul %461, %3, %cst_134 {dimension_numbers = #tpu.dot_dimension_numbers<[1], [0], [0], [1], [0, 0, 1, 1], [], []>} : vector<8x128xbf16>, vector<128x384xbf16>, vector<8x384xf32> -> vector<8x384xf32>
    %463 = arith.truncf %450 : vector<8x128xf32> to vector<8x128xbf16>
    %cst_135 = arith.constant dense<0.000000e+00> : vector<8x384xf32>
    %464 = tpu.matmul %463, %4, %cst_135 {dimension_numbers = #tpu.dot_dimension_numbers<[1], [0], [0], [1], [0, 0, 1, 1], [], []>} : vector<8x128xbf16>, vector<128x384xbf16>, vector<8x384xf32> -> vector<8x384xf32>
    %465 = vector.extract_strided_slice %458 {offsets = [0, 0], sizes = [8, 128], strides = [1, 1]} : vector<8x384xbf16> to vector<8x128xbf16>
    %466 = vector.extract_strided_slice %462 {offsets = [0, 0], sizes = [8, 128], strides = [1, 1]} : vector<8x384xf32> to vector<8x128xf32>
    %467 = arith.extf %465 : vector<8x128xbf16> to vector<8x128xf32>
    %468 = arith.addf %467, %466 : vector<8x128xf32>
    %469 = arith.negf %468 : vector<8x128xf32>
    %470 = math.exp %469 : vector<8x128xf32>
    %cst_136 = arith.constant 1.000000e+00 : f32
    %471 = vector.broadcast %cst_136 : f32 to vector<8x128xf32>
    %472 = arith.addf %471, %470 : vector<8x128xf32>
    %473 = arith.divf %471, %472 : vector<8x128xf32>
    %474 = vector.extract_strided_slice %458 {offsets = [0, 128], sizes = [8, 128], strides = [1, 1]} : vector<8x384xbf16> to vector<8x128xbf16>
    %475 = vector.extract_strided_slice %462 {offsets = [0, 128], sizes = [8, 128], strides = [1, 1]} : vector<8x384xf32> to vector<8x128xf32>
    %476 = arith.extf %474 : vector<8x128xbf16> to vector<8x128xf32>
    %477 = arith.addf %476, %475 : vector<8x128xf32>
    %478 = arith.negf %477 : vector<8x128xf32>
    %479 = math.exp %478 : vector<8x128xf32>
    %cst_137 = arith.constant 1.000000e+00 : f32
    %480 = vector.broadcast %cst_137 : f32 to vector<8x128xf32>
    %481 = arith.addf %480, %479 : vector<8x128xf32>
    %482 = arith.divf %480, %481 : vector<8x128xf32>
    %483 = vector.extract_strided_slice %458 {offsets = [0, 256], sizes = [8, 128], strides = [1, 1]} : vector<8x384xbf16> to vector<8x128xbf16>
    %484 = vector.extract_strided_slice %462 {offsets = [0, 256], sizes = [8, 128], strides = [1, 1]} : vector<8x384xf32> to vector<8x128xf32>
    %485 = arith.addf %484, %6 : vector<8x128xf32>
    %486 = arith.mulf %473, %485 : vector<8x128xf32>
    %487 = arith.extf %483 : vector<8x128xbf16> to vector<8x128xf32>
    %488 = arith.addf %487, %486 : vector<8x128xf32>
    %489 = math.tanh %488 : vector<8x128xf32>
    %cst_138 = arith.constant 1.000000e+00 : f32
    %490 = vector.broadcast %cst_138 : f32 to vector<8x128xf32>
    %491 = arith.subf %490, %482 : vector<8x128xf32>
    %492 = arith.mulf %491, %489 : vector<8x128xf32>
    %493 = arith.mulf %482, %420 : vector<8x128xf32>
    %494 = arith.addf %492, %493 : vector<8x128xf32>
    %495 = vector.extract_strided_slice %460 {offsets = [0, 0], sizes = [8, 128], strides = [1, 1]} : vector<8x384xbf16> to vector<8x128xbf16>
    %496 = vector.extract_strided_slice %464 {offsets = [0, 0], sizes = [8, 128], strides = [1, 1]} : vector<8x384xf32> to vector<8x128xf32>
    %497 = arith.extf %495 : vector<8x128xbf16> to vector<8x128xf32>
    %498 = arith.addf %497, %496 : vector<8x128xf32>
    %499 = arith.negf %498 : vector<8x128xf32>
    %500 = math.exp %499 : vector<8x128xf32>
    %cst_139 = arith.constant 1.000000e+00 : f32
    %501 = vector.broadcast %cst_139 : f32 to vector<8x128xf32>
    %502 = arith.addf %501, %500 : vector<8x128xf32>
    %503 = arith.divf %501, %502 : vector<8x128xf32>
    %504 = vector.extract_strided_slice %460 {offsets = [0, 128], sizes = [8, 128], strides = [1, 1]} : vector<8x384xbf16> to vector<8x128xbf16>
    %505 = vector.extract_strided_slice %464 {offsets = [0, 128], sizes = [8, 128], strides = [1, 1]} : vector<8x384xf32> to vector<8x128xf32>
    %506 = arith.extf %504 : vector<8x128xbf16> to vector<8x128xf32>
    %507 = arith.addf %506, %505 : vector<8x128xf32>
    %508 = arith.negf %507 : vector<8x128xf32>
    %509 = math.exp %508 : vector<8x128xf32>
    %cst_140 = arith.constant 1.000000e+00 : f32
    %510 = vector.broadcast %cst_140 : f32 to vector<8x128xf32>
    %511 = arith.addf %510, %509 : vector<8x128xf32>
    %512 = arith.divf %510, %511 : vector<8x128xf32>
    %513 = vector.extract_strided_slice %460 {offsets = [0, 256], sizes = [8, 128], strides = [1, 1]} : vector<8x384xbf16> to vector<8x128xbf16>
    %514 = vector.extract_strided_slice %464 {offsets = [0, 256], sizes = [8, 128], strides = [1, 1]} : vector<8x384xf32> to vector<8x128xf32>
    %515 = arith.addf %514, %8 : vector<8x128xf32>
    %516 = arith.mulf %503, %515 : vector<8x128xf32>
    %517 = arith.extf %513 : vector<8x128xbf16> to vector<8x128xf32>
    %518 = arith.addf %517, %516 : vector<8x128xf32>
    %519 = math.tanh %518 : vector<8x128xf32>
    %cst_141 = arith.constant 1.000000e+00 : f32
    %520 = vector.broadcast %cst_141 : f32 to vector<8x128xf32>
    %521 = arith.subf %520, %512 : vector<8x128xf32>
    %522 = arith.mulf %521, %519 : vector<8x128xf32>
    %523 = arith.mulf %512, %450 : vector<8x128xf32>
    %524 = arith.addf %522, %523 : vector<8x128xf32>
    %c6_142 = arith.constant 6 : index
    %c0_143 = arith.constant 0 : index
    %c0_144 = arith.constant 0 : index
    %525 = vector.load %arg7[%c6_142, %c0_143, %c0_144] : memref<8x8x128xf32, #tpu.memory_space<vmem>>, vector<1x8x128xf32>
    %526 = vector.shape_cast %525 : vector<1x8x128xf32> to vector<8x128xf32>
    %527 = vector.shape_cast %494 : vector<8x128xf32> to vector<1x8x128xf32>
    tpu.vector_store %arg7[%c6_142, %c0_143, %c0_144], %527 {strides = array<i32>} : memref<8x8x128xf32, #tpu.memory_space<vmem>>, vector<1x8x128xf32>,
    %c1_145 = arith.constant 1 : index
    %c0_146 = arith.constant 0 : index
    %c0_147 = arith.constant 0 : index
    %528 = vector.load %arg8[%c1_145, %c0_146, %c0_147] : memref<8x8x128xf32, #tpu.memory_space<vmem>>, vector<1x8x128xf32>
    %529 = vector.shape_cast %528 : vector<1x8x128xf32> to vector<8x128xf32>
    %530 = vector.shape_cast %524 : vector<8x128xf32> to vector<1x8x128xf32>
    tpu.vector_store %arg8[%c1_145, %c0_146, %c0_147], %530 {strides = array<i32>} : memref<8x8x128xf32, #tpu.memory_space<vmem>>, vector<1x8x128xf32>,
    %c7_148 = arith.constant 7 : index
    %c0_149 = arith.constant 0 : index
    %c0_150 = arith.constant 0 : index
    %531 = vector.load %arg1[%c7_148, %c0_149, %c0_150] : memref<8x8x384xbf16, #tpu.memory_space<vmem>>, vector<1x8x384xbf16>
    %532 = vector.shape_cast %531 : vector<1x8x384xbf16> to vector<8x384xbf16>
    %c0_151 = arith.constant 0 : index
    %c0_152 = arith.constant 0 : index
    %c0_153 = arith.constant 0 : index
    %533 = vector.load %arg2[%c0_151, %c0_152, %c0_153] : memref<8x8x384xbf16, #tpu.memory_space<vmem>>, vector<1x8x384xbf16>
    %534 = vector.shape_cast %533 : vector<1x8x384xbf16> to vector<8x384xbf16>
    %535 = arith.truncf %494 : vector<8x128xf32> to vector<8x128xbf16>
    %cst_154 = arith.constant dense<0.000000e+00> : vector<8x384xf32>
    %536 = tpu.matmul %535, %3, %cst_154 {dimension_numbers = #tpu.dot_dimension_numbers<[1], [0], [0], [1], [0, 0, 1, 1], [], []>} : vector<8x128xbf16>, vector<128x384xbf16>, vector<8x384xf32> -> vector<8x384xf32>
    %537 = arith.truncf %524 : vector<8x128xf32> to vector<8x128xbf16>
    %cst_155 = arith.constant dense<0.000000e+00> : vector<8x384xf32>
    %538 = tpu.matmul %537, %4, %cst_155 {dimension_numbers = #tpu.dot_dimension_numbers<[1], [0], [0], [1], [0, 0, 1, 1], [], []>} : vector<8x128xbf16>, vector<128x384xbf16>, vector<8x384xf32> -> vector<8x384xf32>
    %539 = vector.extract_strided_slice %532 {offsets = [0, 0], sizes = [8, 128], strides = [1, 1]} : vector<8x384xbf16> to vector<8x128xbf16>
    %540 = vector.extract_strided_slice %536 {offsets = [0, 0], sizes = [8, 128], strides = [1, 1]} : vector<8x384xf32> to vector<8x128xf32>
    %541 = arith.extf %539 : vector<8x128xbf16> to vector<8x128xf32>
    %542 = arith.addf %541, %540 : vector<8x128xf32>
    %543 = arith.negf %542 : vector<8x128xf32>
    %544 = math.exp %543 : vector<8x128xf32>
    %cst_156 = arith.constant 1.000000e+00 : f32
    %545 = vector.broadcast %cst_156 : f32 to vector<8x128xf32>
    %546 = arith.addf %545, %544 : vector<8x128xf32>
    %547 = arith.divf %545, %546 : vector<8x128xf32>
    %548 = vector.extract_strided_slice %532 {offsets = [0, 128], sizes = [8, 128], strides = [1, 1]} : vector<8x384xbf16> to vector<8x128xbf16>
    %549 = vector.extract_strided_slice %536 {offsets = [0, 128], sizes = [8, 128], strides = [1, 1]} : vector<8x384xf32> to vector<8x128xf32>
    %550 = arith.extf %548 : vector<8x128xbf16> to vector<8x128xf32>
    %551 = arith.addf %550, %549 : vector<8x128xf32>
    %552 = arith.negf %551 : vector<8x128xf32>
    %553 = math.exp %552 : vector<8x128xf32>
    %cst_157 = arith.constant 1.000000e+00 : f32
    %554 = vector.broadcast %cst_157 : f32 to vector<8x128xf32>
    %555 = arith.addf %554, %553 : vector<8x128xf32>
    %556 = arith.divf %554, %555 : vector<8x128xf32>
    %557 = vector.extract_strided_slice %532 {offsets = [0, 256], sizes = [8, 128], strides = [1, 1]} : vector<8x384xbf16> to vector<8x128xbf16>
    %558 = vector.extract_strided_slice %536 {offsets = [0, 256], sizes = [8, 128], strides = [1, 1]} : vector<8x384xf32> to vector<8x128xf32>
    %559 = arith.addf %558, %6 : vector<8x128xf32>
    %560 = arith.mulf %547, %559 : vector<8x128xf32>
    %561 = arith.extf %557 : vector<8x128xbf16> to vector<8x128xf32>
    %562 = arith.addf %561, %560 : vector<8x128xf32>
    %563 = math.tanh %562 : vector<8x128xf32>
    %cst_158 = arith.constant 1.000000e+00 : f32
    %564 = vector.broadcast %cst_158 : f32 to vector<8x128xf32>
    %565 = arith.subf %564, %556 : vector<8x128xf32>
    %566 = arith.mulf %565, %563 : vector<8x128xf32>
    %567 = arith.mulf %556, %494 : vector<8x128xf32>
    %568 = arith.addf %566, %567 : vector<8x128xf32>
    %569 = vector.extract_strided_slice %534 {offsets = [0, 0], sizes = [8, 128], strides = [1, 1]} : vector<8x384xbf16> to vector<8x128xbf16>
    %570 = vector.extract_strided_slice %538 {offsets = [0, 0], sizes = [8, 128], strides = [1, 1]} : vector<8x384xf32> to vector<8x128xf32>
    %571 = arith.extf %569 : vector<8x128xbf16> to vector<8x128xf32>
    %572 = arith.addf %571, %570 : vector<8x128xf32>
    %573 = arith.negf %572 : vector<8x128xf32>
    %574 = math.exp %573 : vector<8x128xf32>
    %cst_159 = arith.constant 1.000000e+00 : f32
    %575 = vector.broadcast %cst_159 : f32 to vector<8x128xf32>
    %576 = arith.addf %575, %574 : vector<8x128xf32>
    %577 = arith.divf %575, %576 : vector<8x128xf32>
    %578 = vector.extract_strided_slice %534 {offsets = [0, 128], sizes = [8, 128], strides = [1, 1]} : vector<8x384xbf16> to vector<8x128xbf16>
    %579 = vector.extract_strided_slice %538 {offsets = [0, 128], sizes = [8, 128], strides = [1, 1]} : vector<8x384xf32> to vector<8x128xf32>
    %580 = arith.extf %578 : vector<8x128xbf16> to vector<8x128xf32>
    %581 = arith.addf %580, %579 : vector<8x128xf32>
    %582 = arith.negf %581 : vector<8x128xf32>
    %583 = math.exp %582 : vector<8x128xf32>
    %cst_160 = arith.constant 1.000000e+00 : f32
    %584 = vector.broadcast %cst_160 : f32 to vector<8x128xf32>
    %585 = arith.addf %584, %583 : vector<8x128xf32>
    %586 = arith.divf %584, %585 : vector<8x128xf32>
    %587 = vector.extract_strided_slice %534 {offsets = [0, 256], sizes = [8, 128], strides = [1, 1]} : vector<8x384xbf16> to vector<8x128xbf16>
    %588 = vector.extract_strided_slice %538 {offsets = [0, 256], sizes = [8, 128], strides = [1, 1]} : vector<8x384xf32> to vector<8x128xf32>
    %589 = arith.addf %588, %8 : vector<8x128xf32>
    %590 = arith.mulf %577, %589 : vector<8x128xf32>
    %591 = arith.extf %587 : vector<8x128xbf16> to vector<8x128xf32>
    %592 = arith.addf %591, %590 : vector<8x128xf32>
    %593 = math.tanh %592 : vector<8x128xf32>
    %cst_161 = arith.constant 1.000000e+00 : f32
    %594 = vector.broadcast %cst_161 : f32 to vector<8x128xf32>
    %595 = arith.subf %594, %586 : vector<8x128xf32>
    %596 = arith.mulf %595, %593 : vector<8x128xf32>
    %597 = arith.mulf %586, %524 : vector<8x128xf32>
    %598 = arith.addf %596, %597 : vector<8x128xf32>
    %c7_162 = arith.constant 7 : index
    %c0_163 = arith.constant 0 : index
    %c0_164 = arith.constant 0 : index
    %599 = vector.load %arg7[%c7_162, %c0_163, %c0_164] : memref<8x8x128xf32, #tpu.memory_space<vmem>>, vector<1x8x128xf32>
    %600 = vector.shape_cast %599 : vector<1x8x128xf32> to vector<8x128xf32>
    %601 = vector.shape_cast %568 : vector<8x128xf32> to vector<1x8x128xf32>
    tpu.vector_store %arg7[%c7_162, %c0_163, %c0_164], %601 {strides = array<i32>} : memref<8x8x128xf32, #tpu.memory_space<vmem>>, vector<1x8x128xf32>,
    %c0_165 = arith.constant 0 : index
    %c0_166 = arith.constant 0 : index
    %c0_167 = arith.constant 0 : index
    %602 = vector.load %arg8[%c0_165, %c0_166, %c0_167] : memref<8x8x128xf32, #tpu.memory_space<vmem>>, vector<1x8x128xf32>
    %603 = vector.shape_cast %602 : vector<1x8x128xf32> to vector<8x128xf32>
    %604 = vector.shape_cast %598 : vector<8x128xf32> to vector<1x8x128xf32>
    tpu.vector_store %arg8[%c0_165, %c0_166, %c0_167], %604 {strides = array<i32>} : memref<8x8x128xf32, #tpu.memory_space<vmem>>, vector<1x8x128xf32>,
    %c0_168 = arith.constant 0 : index
    %c0_169 = arith.constant 0 : index
    %c0_170 = arith.constant 0 : index
    %605 = vector.load %arg10[%c0_168, %c0_169, %c0_170] : memref<2x8x128xf32, #tpu.memory_space<vmem>>, vector<1x8x128xf32>
    %606 = vector.shape_cast %605 : vector<1x8x128xf32> to vector<8x128xf32>
    %607 = vector.shape_cast %568 : vector<8x128xf32> to vector<1x8x128xf32>
    tpu.vector_store %arg10[%c0_168, %c0_169, %c0_170], %607 {strides = array<i32>} : memref<2x8x128xf32, #tpu.memory_space<vmem>>, vector<1x8x128xf32>,
    %c1_171 = arith.constant 1 : index
    %c0_172 = arith.constant 0 : index
    %c0_173 = arith.constant 0 : index
    %608 = vector.load %arg10[%c1_171, %c0_172, %c0_173] : memref<2x8x128xf32, #tpu.memory_space<vmem>>, vector<1x8x128xf32>
    %609 = vector.shape_cast %608 : vector<1x8x128xf32> to vector<8x128xf32>
    %610 = vector.shape_cast %598 : vector<8x128xf32> to vector<1x8x128xf32>
    tpu.vector_store %arg10[%c1_171, %c0_172, %c0_173], %610 {strides = array<i32>} : memref<2x8x128xf32, #tpu.memory_space<vmem>>, vector<1x8x128xf32>,
    %c0_i32_174 = arith.constant 0 : i32
    %611 = arith.cmpi eq, %arg0, %c0_i32_174 : i32
    %612 = arith.extui %611 : i1 to i32
    %c0_i32_175 = arith.constant 0 : i32
    %613 = arith.cmpi ne, %612, %c0_i32_175 : i32
    scf.if %613 {
      %c0_176 = arith.constant 0 : index
      %c0_177 = arith.constant 0 : index
      %c0_178 = arith.constant 0 : index
      %614 = vector.load %arg9[%c0_176, %c0_177, %c0_178] : memref<2x8x128xf32, #tpu.memory_space<vmem>>, vector<1x8x128xf32>
      %615 = vector.shape_cast %614 : vector<1x8x128xf32> to vector<8x128xf32>
      %616 = vector.shape_cast %568 : vector<8x128xf32> to vector<1x8x128xf32>
      tpu.vector_store %arg9[%c0_176, %c0_177, %c0_178], %616 {strides = array<i32>} : memref<2x8x128xf32, #tpu.memory_space<vmem>>, vector<1x8x128xf32>,
      %c1_179 = arith.constant 1 : index
      %c0_180 = arith.constant 0 : index
      %c0_181 = arith.constant 0 : index
      %617 = vector.load %arg9[%c1_179, %c0_180, %c0_181] : memref<2x8x128xf32, #tpu.memory_space<vmem>>, vector<1x8x128xf32>
      %618 = vector.shape_cast %617 : vector<1x8x128xf32> to vector<8x128xf32>
      %619 = vector.shape_cast %598 : vector<8x128xf32> to vector<1x8x128xf32>
      tpu.vector_store %arg9[%c1_179, %c0_180, %c0_181], %619 {strides = array<i32>} : memref<2x8x128xf32, #tpu.memory_space<vmem>>, vector<1x8x128xf32>,
    } else {
    }
    return
  }
  func.func @transform_0(%arg0: i32) -> (i32, i32, i32) {
    %c0_i32 = arith.constant 0 : i32
    %c0_i32_0 = arith.constant 0 : i32
    %c0_i32_1 = arith.constant 0 : i32
    return %arg0, %c0_i32, %c0_i32_0 : i32, i32, i32
  }
  func.func @transform_1(%arg0: i32) -> (i32, i32, i32) {
    %c0_i32 = arith.constant 0 : i32
    %0 = arith.subi %c0_i32, %arg0 : i32
    %c0_i32_0 = arith.constant 0 : i32
    %c0_i32_1 = arith.constant 0 : i32
    %c0_i32_2 = arith.constant 0 : i32
    return %0, %c0_i32_0, %c0_i32_1 : i32, i32, i32
  }
  func.func @transform_2(%arg0: i32) -> (i32, i32, i32) {
    %c0_i32 = arith.constant 0 : i32
    %c0_i32_0 = arith.constant 0 : i32
    %c0_i32_1 = arith.constant 0 : i32
    %c0_i32_2 = arith.constant 0 : i32
    return %c0_i32, %c0_i32_0, %c0_i32_1 : i32, i32, i32
  }
  func.func @transform_3(%arg0: i32) -> (i32, i32) {
    %c0_i32 = arith.constant 0 : i32
    %c0_i32_0 = arith.constant 0 : i32
    %c0_i32_1 = arith.constant 0 : i32
    return %c0_i32, %c0_i32_0 : i32, i32
  }
  func.func @transform_4(%arg0: i32) -> (i32, i32) {
    %c0_i32 = arith.constant 0 : i32
    %c0_i32_0 = arith.constant 0 : i32
    %c0_i32_1 = arith.constant 0 : i32
    return %c0_i32, %c0_i32_0 : i32, i32
  }
  func.func @transform_5(%arg0: i32) -> (i32, i32, i32) {
    %c0_i32 = arith.constant 0 : i32
    %c0_i32_0 = arith.constant 0 : i32
    %c0_i32_1 = arith.constant 0 : i32
    %c0_i32_2 = arith.constant 0 : i32
    return %c0_i32, %c0_i32_0, %c0_i32_1 : i32, i32, i32
  }
  func.func @transform_6(%arg0: i32) -> (i32, i32, i32) {
    %c0_i32 = arith.constant 0 : i32
    %c0_i32_0 = arith.constant 0 : i32
    %c0_i32_1 = arith.constant 0 : i32
    return %arg0, %c0_i32, %c0_i32_0 : i32, i32, i32
  }
  func.func @transform_7(%arg0: i32) -> (i32, i32, i32) {
    %c0_i32 = arith.constant 0 : i32
    %0 = arith.subi %c0_i32, %arg0 : i32
    %c0_i32_0 = arith.constant 0 : i32
    %c0_i32_1 = arith.constant 0 : i32
    %c0_i32_2 = arith.constant 0 : i32
    return %0, %c0_i32_0, %c0_i32_1 : i32, i32, i32
  }
  func.func @transform_8(%arg0: i32) -> (i32, i32, i32) {
    %c0_i32 = arith.constant 0 : i32
    %c0_i32_0 = arith.constant 0 : i32
    %c0_i32_1 = arith.constant 0 : i32
    %c0_i32_2 = arith.constant 0 : i32
    return %c0_i32, %c0_i32_0, %c0_i32_1 : i32, i32, i32
  }
}

</mosaic_0001>

<llo_original>
// kernel: encoder_rnn_forward.1
$region0: #{encoder_rnn_forward.1}
  #allocation0 [shape = 'u32[]', space=smem, size = 0x4, offset = 0x4, fixed_abs, tag = 'smem constant byte address 0x4 - core index']
  #allocation1 [shape = 'u32[72,128]{1,0:T(1,128)}', space=vmem, size = 0x9000, scoped, tag = 'internal scratch']
  #allocation2 [shape = 'f32[2,8,128]{2,1,0:T(8,128)}', space=vmem, size = 0x2000, scoped, tag = 'scratch operand']
  %s0 = inlined_call_operand.vmem [shape: bf16[8,8,384], index: 0, kind: input, shape index: {}]
  %s1 = inlined_call_operand.vmem [shape: bf16[8,8,384], index: 1, kind: input, shape index: {}]
  %s2 = inlined_call_operand.vmem [shape: f32[2,8,128], index: 2, kind: input, shape index: {}]
  %s3 = inlined_call_operand.vmem [shape: bf16[128,384], index: 3, kind: input, shape index: {}]
  %s4 = inlined_call_operand.vmem [shape: bf16[128,384], index: 4, kind: input, shape index: {}]
  %s5 = inlined_call_operand.vmem [shape: f32[2,8,128], index: 5, kind: input, shape index: {}]
  %s6 = inlined_call_operand.vmem [shape: f32[8,8,128], index: 6, kind: output, shape index: {0}]
  %s7 = inlined_call_operand.vmem [shape: f32[8,8,128], index: 7, kind: output, shape index: {1}]
  %s8 = inlined_call_operand.vmem [shape: f32[2,8,128], index: 8, kind: output, shape index: {2}]
  %9 = xla_tuple %s6, %s7, %s8
  %s10 = sld [smem:[#allocation0]]
  $region58: #{encoder_rnn_forward.1} parent=0
    _
  %s12 = ssub.s32 1, %s10
  %s13 = scalar_select 0, %s12, %s10
  // Predicated region
  $region2: #{encoder_rnn_forward.1} parent=0 // pred_check
    _
  $region3: #{encoder_rnn_forward.1} parent=0 // pred_check_branch
    %15 = sbr.rel (0) target = $region5
  $region4: #{encoder_rnn_forward.1} parent=0 // pred_region
    _
  $region5: #{encoder_rnn_forward.1} parent=0 // pred_fallthru
    _
  // Predicated region
  $region6: #{encoder_rnn_forward.1} parent=0 // pred_check
    _
  $region7: #{encoder_rnn_forward.1} parent=0 // pred_check_branch
    %17 = sbr.rel (0) target = $region9
  $region8: #{encoder_rnn_forward.1} parent=0 // pred_region
    %s18 = ssub.s32 0, 0
    %s19 = smul.u32 8, %s18
    %p20 = scmp.lt.s32.totalorder %s19, 7
    %s21 = scalar_select %p20, %s19, 7
    %s22 = smul.addr %s21, 3
    %s23 = smul.addr %s22, 4
    %s24 = scalar_lea.vmem %s1, %s23
    %s25 = ssub.s32 0, 0
    %s26 = smul.u32 8, %s25
  $region9: #{encoder_rnn_forward.1} parent=0 // pred_fallthru
    _
  // Predicated region
  $region10: #{encoder_rnn_forward.1} parent=0 // pred_check
    _
  $region11: #{encoder_rnn_forward.1} parent=0 // pred_check_branch
    %28 = sbr.rel (0) target = $region13
  $region12: #{encoder_rnn_forward.1} parent=0 // pred_region
    _
  $region13: #{encoder_rnn_forward.1} parent=0 // pred_fallthru
    _
  // Predicated region
  $region14: #{encoder_rnn_forward.1} parent=0 // pred_check
    _
  $region15: #{encoder_rnn_forward.1} parent=0 // pred_check_branch
    %30 = sbr.rel (0) target = $region17
  $region16: #{encoder_rnn_forward.1} parent=0 // pred_region
    _
  $region17: #{encoder_rnn_forward.1} parent=0 // pred_fallthru
    _
  // Predicated region
  $region18: #{encoder_rnn_forward.1} parent=0 // pred_check
    _
  $region19: #{encoder_rnn_forward.1} parent=0 // pred_check_branch
    %32 = sbr.rel (0) target = $region21
  $region20: #{encoder_rnn_forward.1} parent=0 // pred_region
    _
  $region21: #{encoder_rnn_forward.1} parent=0 // pred_fallthru
    _
  // Predicated region
  $region22: #{encoder_rnn_forward.1} parent=0 // pred_check
    _
  $region23: #{encoder_rnn_forward.1} parent=0 // pred_check_branch
    %34 = sbr.rel (0) target = $region25
  $region24: #{encoder_rnn_forward.1} parent=0 // pred_region
    _
  $region25: #{encoder_rnn_forward.1} parent=0 // pred_fallthru
    _
  %s35 = ssub.s32 0, 0
  %s36 = smul.u32 8, %s35
  %p37 = scmp.lt.s32.totalorder %s36, 7
  %s38 = scalar_select %p37, %s36, 7
  %s39 = smul.addr %s38, 3
  %s40 = smul.addr %s39, 4
  %s41 = scalar_lea.vmem %s1, %s40
  %s42 = ssub.s32 0, 0
  %s43 = smul.u32 8, %s42
  %p44 = scmp.lt.s32.totalorder %s43, 7
  %s45 = scalar_select %p44, %s43, 7
  %s46 = smul.addr %s45, 8
  %s47 = scalar_lea.vmem %s7, %s46
  %s48 = ssub.s32 0, 0
  %s49 = smul.u32 8, %s48
  %p50 = scmp.lt.s32.totalorder %s49, 7
  %s51 = scalar_select %p50, %s49, 7
  %s52 = smul.addr %s51, 3
  %s53 = smul.addr %s52, 4
  %s54 = scalar_lea.vmem %s1, %s53
  %s55 = ssub.s32 0, 0
  %s56 = smul.u32 8, %s55
  %s57 = ssub.s32 0, 0
  %s58 = smul.u32 8, %s57
  %p59 = scmp.lt.s32.totalorder %s58, 7
  %s60 = scalar_select %p59, %s58, 7
  %s61 = smul.addr %s60, 8
  %s62 = scalar_lea.vmem %s7, %s61
  %s63 = ssub.s32 0, 0
  %s64 = smul.u32 8, %s63
  %p65 = scmp.eq.s32.totalorder 0, 0
  // Predicated region
  $region26: #{encoder_rnn_forward.1} parent=0 // pred_check
    %p66 = pneg %p65
  $region27: #{encoder_rnn_forward.1} parent=0 // pred_check_branch
    %68 = sbr.rel (%p66) target = $region29
  $region28: #{encoder_rnn_forward.1} parent=0 // pred_region
    %v69 = vld [vmem:[%s2] sm:$0xff]
    %v70 = vld [vmem:[%s2 + $0x8] sm:$0xff]
    %71 = vst [vmem:[#allocation2] sm:$0xff] %v69
    %72 = vst [vmem:[#allocation2 + $0x8] sm:$0xff] %v70
  $region29: #{encoder_rnn_forward.1} parent=0 // pred_fallthru
    _
  %v73 = vld [vmem:[%s3] sm:$0xff]
  %v74 = vld [vmem:[%s3 + $0x8] sm:$0xf]
  %v75 = vld [vmem:[%s3 + $0xc] sm:$0xff]
  %v76 = vld [vmem:[%s3 + $0x14] sm:$0xf]
  %v77 = vld [vmem:[%s3 + $0x18] sm:$0xff]
  %v78 = vld [vmem:[%s3 + $0x20] sm:$0xf]
  %v79 = vld [vmem:[%s3 + $0x24] sm:$0xff]
  %v80 = vld [vmem:[%s3 + $0x2c] sm:$0xf]
  %v81 = vld [vmem:[%s3 + $0x30] sm:$0xff]
  %v82 = vld [vmem:[%s3 + $0x38] sm:$0xf]
  %v83 = vld [vmem:[%s3 + $0x3c] sm:$0xff]
  %v84 = vld [vmem:[%s3 + $0x44] sm:$0xf]
  %v85 = vld [vmem:[%s3 + $0x48] sm:$0xff]
  %v86 = vld [vmem:[%s3 + $0x50] sm:$0xf]
  %v87 = vld [vmem:[%s3 + $0x54] sm:$0xff]
  %v88 = vld [vmem:[%s3 + $0x5c] sm:$0xf]
  %v89 = vld [vmem:[%s3 + $0x60] sm:$0xff]
  %v90 = vld [vmem:[%s3 + $0x68] sm:$0xf]
  %v91 = vld [vmem:[%s3 + $0x6c] sm:$0xff]
  %v92 = vld [vmem:[%s3 + $0x74] sm:$0xf]
  %v93 = vld [vmem:[%s3 + $0x78] sm:$0xff]
  %v94 = vld [vmem:[%s3 + $0x80] sm:$0xf]
  %v95 = vld [vmem:[%s3 + $0x84] sm:$0xff]
  %v96 = vld [vmem:[%s3 + $0x8c] sm:$0xf]
  %v97 = vld [vmem:[%s3 + $0x90] sm:$0xff]
  %v98 = vld [vmem:[%s3 + $0x98] sm:$0xf]
  %v99 = vld [vmem:[%s3 + $0x9c] sm:$0xff]
  %v100 = vld [vmem:[%s3 + $0xa4] sm:$0xf]
  %v101 = vld [vmem:[%s3 + $0xa8] sm:$0xff]
  %v102 = vld [vmem:[%s3 + $0xb0] sm:$0xf]
  %v103 = vld [vmem:[%s3 + $0xb4] sm:$0xff]
  %v104 = vld [vmem:[%s3 + $0xbc] sm:$0xf]
  %v105 = vld [vmem:[%s4] sm:$0xff]
  %v106 = vld [vmem:[%s4 + $0x8] sm:$0xf]
  %v107 = vld [vmem:[%s4 + $0xc] sm:$0xff]
  %v108 = vld [vmem:[%s4 + $0x14] sm:$0xf]
  %v109 = vld [vmem:[%s4 + $0x18] sm:$0xff]
  %v110 = vld [vmem:[%s4 + $0x20] sm:$0xf]
  %v111 = vld [vmem:[%s4 + $0x24] sm:$0xff]
  %v112 = vld [vmem:[%s4 + $0x2c] sm:$0xf]
  %v113 = vld [vmem:[%s4 + $0x30] sm:$0xff]
  %v114 = vld [vmem:[%s4 + $0x38] sm:$0xf]
  %v115 = vld [vmem:[%s4 + $0x3c] sm:$0xff]
  %v116 = vld [vmem:[%s4 + $0x44] sm:$0xf]
  %v117 = vld [vmem:[%s4 + $0x48] sm:$0xff]
  %v118 = vld [vmem:[%s4 + $0x50] sm:$0xf]
  %v119 = vld [vmem:[%s4 + $0x54] sm:$0xff]
  %v120 = vld [vmem:[%s4 + $0x5c] sm:$0xf]
  %v121 = vld [vmem:[%s4 + $0x60] sm:$0xff]
  %v122 = vld [vmem:[%s4 + $0x68] sm:$0xf]
  %v123 = vld [vmem:[%s4 + $0x6c] sm:$0xff]
  %v124 = vld [vmem:[%s4 + $0x74] sm:$0xf]
  %v125 = vld [vmem:[%s4 + $0x78] sm:$0xff]
  %v126 = vld [vmem:[%s4 + $0x80] sm:$0xf]
  %v127 = vld [vmem:[%s4 + $0x84] sm:$0xff]
  %v128 = vld [vmem:[%s4 + $0x8c] sm:$0xf]
  %v129 = vld [vmem:[%s4 + $0x90] sm:$0xff]
  %v130 = vld [vmem:[%s4 + $0x98] sm:$0xf]
  %v131 = vld [vmem:[%s4 + $0x9c] sm:$0xff]
  %v132 = vld [vmem:[%s4 + $0xa4] sm:$0xf]
  %v133 = vld [vmem:[%s4 + $0xa8] sm:$0xff]
  %v134 = vld [vmem:[%s4 + $0xb0] sm:$0xf]
  %v135 = vld [vmem:[%s4 + $0xb4] sm:$0xff]
  %v136 = vld [vmem:[%s4 + $0xbc] sm:$0xf]
  %v137 = vld [vmem:[%s5] sm:$0xff]
  %s138 = scalar_lea.vmem %s5, 8
  %v139 = vld [vmem:[%s138] sm:$0xff]
  %v140 = vld [vmem:[#allocation2] sm:$0xff]
  %s141 = scalar_lea.vmem [#allocation2], 8
  %v142 = vld [vmem:[%s141] sm:$0xff]
  %v143 = vld [vmem:[%s0] sm:$0xff]
  %v144 = vld [vmem:[%s0 + $0x8] sm:$0xf]
  %s145 = scalar_lea.vmem %s54, 84
  %v146 = vld [vmem:[%s145] sm:$0xff]
  %v147 = vld [vmem:[%s145 + $0x8] sm:$0xf]
  %v148 = vpack.c.bf16 %v140, %v140
  %v181 = vunpack.c.l.b16 %v73
  %v182 = vunpack.c.h.b16 %v73
  %v183 = vunpack.c.l.b16 %v74
  %v184 = vunpack.c.l.b16 %v75
  %v185 = vunpack.c.h.b16 %v75
  %v186 = vunpack.c.l.b16 %v76
  %v187 = vunpack.c.l.b16 %v77
  %v188 = vunpack.c.h.b16 %v77
  %v189 = vunpack.c.l.b16 %v78
  %v190 = vunpack.c.l.b16 %v79
  %v191 = vunpack.c.h.b16 %v79
  %v192 = vunpack.c.l.b16 %v80
  %v193 = vunpack.c.l.b16 %v81
  %v194 = vunpack.c.h.b16 %v81
  %v195 = vunpack.c.l.b16 %v82
  %v196 = vunpack.c.l.b16 %v83
  %v197 = vunpack.c.h.b16 %v83
  %v198 = vunpack.c.l.b16 %v84
  %v199 = vunpack.c.l.b16 %v85
  %v200 = vunpack.c.h.b16 %v85
  %v201 = vunpack.c.l.b16 %v86
  %v202 = vunpack.c.l.b16 %v87
  %v203 = vunpack.c.h.b16 %v87
  %v204 = vunpack.c.l.b16 %v88
  %v205 = vunpack.c.l.b16 %v89
  %v206 = vunpack.c.h.b16 %v89
  %v207 = vunpack.c.l.b16 %v90
  %v208 = vunpack.c.l.b16 %v91
  %v209 = vunpack.c.h.b16 %v91
  %v210 = vunpack.c.l.b16 %v92
  %v211 = vunpack.c.l.b16 %v93
  %v212 = vunpack.c.h.b16 %v93
  %v213 = vunpack.c.l.b16 %v94
  %v214 = vunpack.c.l.b16 %v95
  %v215 = vunpack.c.h.b16 %v95
  %v216 = vunpack.c.l.b16 %v96
  %v217 = vunpack.c.l.b16 %v97
  %v218 = vunpack.c.h.b16 %v97
  %v219 = vunpack.c.l.b16 %v98
  %v220 = vunpack.c.l.b16 %v99
  %v221 = vunpack.c.h.b16 %v99
  %v222 = vunpack.c.l.b16 %v100
  %v223 = vunpack.c.l.b16 %v101
  %v224 = vunpack.c.h.b16 %v101
  %v225 = vunpack.c.l.b16 %v102
  %v226 = vunpack.c.l.b16 %v103
  %v227 = vunpack.c.h.b16 %v103
  %v228 = vunpack.c.l.b16 %v104
  %v229 = vpack.c.b16 %v184, %v181
  %v230 = vpack.c.b16 %v185, %v182
  %v231 = vpack.c.b16 %v186, %v183
  %v232 = vpack.c.b16 %v190, %v187
  %v233 = vpack.c.b16 %v191, %v188
  %v234 = vpack.c.b16 %v192, %v189
  %v235 = vpack.c.b16 %v196, %v193
  %v236 = vpack.c.b16 %v197, %v194
  %v237 = vpack.c.b16 %v198, %v195
  %v238 = vpack.c.b16 %v202, %v199
  %v239 = vpack.c.b16 %v203, %v200
  %v240 = vpack.c.b16 %v204, %v201
  %v241 = vpack.c.b16 %v208, %v205
  %v242 = vpack.c.b16 %v209, %v206
  %v243 = vpack.c.b16 %v210, %v207
  %v244 = vpack.c.b16 %v214, %v211
  %v245 = vpack.c.b16 %v215, %v212
  %v246 = vpack.c.b16 %v216, %v213
  %v247 = vpack.c.b16 %v220, %v217
  %v248 = vpack.c.b16 %v221, %v218
  %v249 = vpack.c.b16 %v222, %v219
  %v250 = vpack.c.b16 %v226, %v223
  %v251 = vpack.c.b16 %v227, %v224
  %v252 = vpack.c.b16 %v228, %v225
  %277 = vmatpush.bf16.msra.mxu0 %v250
  %278 = vmatpush.bf16.msra.mxu0 %v247
  %279 = vmatpush.bf16.msra.mxu0 %v244
  %280 = vmatpush.bf16.msra.mxu0 %v241
  %281 = vmatpush.bf16.msra.mxu0 %v238
  %282 = vmatpush.bf16.msra.mxu0 %v235
  %283 = vmatpush.bf16.msra.mxu0 %v232
  %284 = vmatpush.bf16.msra.mxu0 %v229
  %285 = vmatmul.bf16.gmra.mxu0 %v148
  %v286 = vpop.f32.mrf.mxu0
  %v287 = vadd.f32 0.0, %v286
  %v288 = vpop.f32.mrf.mxu0
  %289 = vdwg.mxu0
  %290 = vmatpush.bf16.msra.mxu0 %v251
  %291 = vmatpush.bf16.msra.mxu0 %v248
  %292 = vmatpush.bf16.msra.mxu0 %v245
  %293 = vmatpush.bf16.msra.mxu0 %v242
  %294 = vmatpush.bf16.msra.mxu0 %v239
  %295 = vmatpush.bf16.msra.mxu0 %v236
  %296 = vmatpush.bf16.msra.mxu0 %v233
  %297 = vmatpush.bf16.msra.mxu0 %v230
  %298 = vmatmul.bf16.gmra.mxu0 %v148
  %v299 = vpop.f32.mrf.mxu0
  %v300 = vadd.f32 0.0, %v299
  %v301 = vpop.f32.mrf.mxu0
  %302 = vdwg.mxu0
  %303 = vmatpush.bf16.msra.mxu0 %v252
  %304 = vmatpush.bf16.msra.mxu0 %v249
  %305 = vmatpush.bf16.msra.mxu0 %v246
  %306 = vmatpush.bf16.msra.mxu0 %v243
  %307 = vmatpush.bf16.msra.mxu0 %v240
  %308 = vmatpush.bf16.msra.mxu0 %v237
  %309 = vmatpush.bf16.msra.mxu0 %v234
  %310 = vmatpush.bf16.msra.mxu0 %v231
  %311 = vmatmul.bf16.gmra.mxu0 %v148
  %v312 = vpop.f32.mrf.mxu0
  %v313 = vadd.f32 0.0, %v312
  %v314 = vpop.f32.mrf.mxu0
  %315 = vdwg.mxu0
  %v316 = vpack.c.bf16 %v142, %v142
  %v349 = vunpack.c.l.b16 %v105
  %v350 = vunpack.c.h.b16 %v105
  %v351 = vunpack.c.l.b16 %v106
  %v352 = vunpack.c.l.b16 %v107
  %v353 = vunpack.c.h.b16 %v107
  %v354 = vunpack.c.l.b16 %v108
  %v355 = vunpack.c.l.b16 %v109
  %v356 = vunpack.c.h.b16 %v109
  %v357 = vunpack.c.l.b16 %v110
  %v358 = vunpack.c.l.b16 %v111
  %v359 = vunpack.c.h.b16 %v111
  %v360 = vunpack.c.l.b16 %v112
  %v361 = vunpack.c.l.b16 %v113
  %v362 = vunpack.c.h.b16 %v113
  %v363 = vunpack.c.l.b16 %v114
  %v364 = vunpack.c.l.b16 %v115
  %v365 = vunpack.c.h.b16 %v115
  %v366 = vunpack.c.l.b16 %v116
  %v367 = vunpack.c.l.b16 %v117
  %v368 = vunpack.c.h.b16 %v117
  %v369 = vunpack.c.l.b16 %v118
  %v370 = vunpack.c.l.b16 %v119
  %v371 = vunpack.c.h.b16 %v119
  %v372 = vunpack.c.l.b16 %v120
  %v373 = vunpack.c.l.b16 %v121
  %v374 = vunpack.c.h.b16 %v121
  %v375 = vunpack.c.l.b16 %v122
  %v376 = vunpack.c.l.b16 %v123
  %v377 = vunpack.c.h.b16 %v123
  %v378 = vunpack.c.l.b16 %v124
  %v379 = vunpack.c.l.b16 %v125
  %v380 = vunpack.c.h.b16 %v125
  %v381 = vunpack.c.l.b16 %v126
  %v382 = vunpack.c.l.b16 %v127
  %v383 = vunpack.c.h.b16 %v127
  %v384 = vunpack.c.l.b16 %v128
  %v385 = vunpack.c.l.b16 %v129
  %v386 = vunpack.c.h.b16 %v129
  %v387 = vunpack.c.l.b16 %v130
  %v388 = vunpack.c.l.b16 %v131
  %v389 = vunpack.c.h.b16 %v131
  %v390 = vunpack.c.l.b16 %v132
  %v391 = vunpack.c.l.b16 %v133
  %v392 = vunpack.c.h.b16 %v133
  %v393 = vunpack.c.l.b16 %v134
  %v394 = vunpack.c.l.b16 %v135
  %v395 = vunpack.c.h.b16 %v135
  %v396 = vunpack.c.l.b16 %v136
  %v397 = vpack.c.b16 %v352, %v349
  %v398 = vpack.c.b16 %v353, %v350
  %v399 = vpack.c.b16 %v354, %v351
  %v400 = vpack.c.b16 %v358, %v355
  %v401 = vpack.c.b16 %v359, %v356
  %v402 = vpack.c.b16 %v360, %v357
  %v403 = vpack.c.b16 %v364, %v361
  %v404 = vpack.c.b16 %v365, %v362
  %v405 = vpack.c.b16 %v366, %v363
  %v406 = vpack.c.b16 %v370, %v367
  %v407 = vpack.c.b16 %v371, %v368
  %v408 = vpack.c.b16 %v372, %v369
  %v409 = vpack.c.b16 %v376, %v373
  %v410 = vpack.c.b16 %v377, %v374
  %v411 = vpack.c.b16 %v378, %v375
  %v412 = vpack.c.b16 %v382, %v379
  %v413 = vpack.c.b16 %v383, %v380
  %v414 = vpack.c.b16 %v384, %v381
  %v415 = vpack.c.b16 %v388, %v385
  %v416 = vpack.c.b16 %v389, %v386
  %v417 = vpack.c.b16 %v390, %v387
  %v418 = vpack.c.b16 %v394, %v391
  %v419 = vpack.c.b16 %v395, %v392
  %v420 = vpack.c.b16 %v396, %v393
  %445 = vmatpush.bf16.msra.mxu0 %v418
  %446 = vmatpush.bf16.msra.mxu0 %v415
  %447 = vmatpush.bf16.msra.mxu0 %v412
  %448 = vmatpush.bf16.msra.mxu0 %v409
  %449 = vmatpush.bf16.msra.mxu0 %v406
  %450 = vmatpush.bf16.msra.mxu0 %v403
  %451 = vmatpush.bf16.msra.mxu0 %v400
  %452 = vmatpush.bf16.msra.mxu0 %v397
  %453 = vmatmul.bf16.gmra.mxu0 %v316
  %v454 = vpop.f32.mrf.mxu0
  %v455 = vadd.f32 0.0, %v454
  %v456 = vpop.f32.mrf.mxu0
  %457 = vdwg.mxu0
  %458 = vmatpush.bf16.msra.mxu0 %v419
  %459 = vmatpush.bf16.msra.mxu0 %v416
  %460 = vmatpush.bf16.msra.mxu0 %v413
  %461 = vmatpush.bf16.msra.mxu0 %v410
  %462 = vmatpush.bf16.msra.mxu0 %v407
  %463 = vmatpush.bf16.msra.mxu0 %v404
  %464 = vmatpush.bf16.msra.mxu0 %v401
  %465 = vmatpush.bf16.msra.mxu0 %v398
  %466 = vmatmul.bf16.gmra.mxu0 %v316
  %v467 = vpop.f32.mrf.mxu0
  %v468 = vadd.f32 0.0, %v467
  %v469 = vpop.f32.mrf.mxu0
  %470 = vdwg.mxu0
  %471 = vmatpush.bf16.msra.mxu0 %v420
  %472 = vmatpush.bf16.msra.mxu0 %v417
  %473 = vmatpush.bf16.msra.mxu0 %v414
  %474 = vmatpush.bf16.msra.mxu0 %v411
  %475 = vmatpush.bf16.msra.mxu0 %v408
  %476 = vmatpush.bf16.msra.mxu0 %v405
  %477 = vmatpush.bf16.msra.mxu0 %v402
  %478 = vmatpush.bf16.msra.mxu0 %v399
  %479 = vmatmul.bf16.gmra.mxu0 %v316
  %v480 = vpop.f32.mrf.mxu0
  %v481 = vadd.f32 0.0, %v480
  %v482 = vpop.f32.mrf.mxu0
  %483 = vdwg.mxu0
  %v484 = vunpack.c.l.bf16 %v143
  %v485 = vadd.f32 %v484, %v287
  %v486 = vxor.u32 %v485, 2147483648
  %v487 = vmul.f32 %v486, 1.442695
  %v488 = vpow.pop %v487
  %v489 = vadd.f32 %v488, 1.0
  %v490 = vrcp.pop %v489
  %v491 = vmul.f32 %v489, %v490
  %v492 = vsub.f32 1.0, %v491
  %v493 = vmul.f32 %v490, %v492
  %v494 = vadd.f32 %v490, %v493
  %vm495 = vweird.f32 %v489
  %vm496 = vweird.f32 %v490
  %vm497 = vmor %vm495, %vm496
  %v498 = vsel %vm497, %v490, %v494
  %v499 = vand.u32 2147483647, %v489
  %vm500 = vcmp.eq.f32.partialorder %v499, 8.507059e+37
  %v501 = vand.u32 %v489, 2147483648
  %v502 = vor.u32 1.1754944e-38, %v501
  %v503 = vsel %vm500, %v502, %v498
  %v504 = vmul.f32 1.0, %v503
  %v506 = vrot.slane %v143, 4
  %v508 = vunpack.c.l.bf16 %v506
  %v509 = vadd.f32 %v508, %v300
  %v510 = vxor.u32 %v509, 2147483648
  %v511 = vmul.f32 %v510, 1.442695
  %v512 = vpow.pop %v511
  %v513 = vadd.f32 %v512, 1.0
  %v514 = vrcp.pop %v513
  %v515 = vmul.f32 %v513, %v514
  %v516 = vsub.f32 1.0, %v515
  %v517 = vmul.f32 %v514, %v516
  %v518 = vadd.f32 %v514, %v517
  %vm519 = vweird.f32 %v513
  %vm520 = vweird.f32 %v514
  %vm521 = vmor %vm519, %vm520
  %v522 = vsel %vm521, %v514, %v518
  %v523 = vand.u32 2147483647, %v513
  %vm524 = vcmp.eq.f32.partialorder %v523, 8.507059e+37
  %v525 = vand.u32 %v513, 2147483648
  %v526 = vor.u32 1.1754944e-38, %v525
  %v527 = vsel %vm524, %v526, %v522
  %v528 = vmul.f32 1.0, %v527
  %v529 = vadd.f32 %v313, %v137
  %v530 = vmul.f32 %v504, %v529
  %v531 = vunpack.c.l.bf16 %v144
  %v532 = vadd.f32 %v531, %v530
  %v533 = vtanh.pop %v532
  %v534 = vsub.f32 1.0, %v528
  %v535 = vmul.f32 %v534, %v533
  %v536 = vmul.f32 %v528, %v140
  %v537 = vadd.f32 %v535, %v536
  %v538 = vunpack.c.l.bf16 %v146
  %v539 = vadd.f32 %v538, %v455
  %v540 = vxor.u32 %v539, 2147483648
  %v541 = vmul.f32 %v540, 1.442695
  %v542 = vpow.pop %v541
  %v543 = vadd.f32 %v542, 1.0
  %v544 = vrcp.pop %v543
  %v545 = vmul.f32 %v543, %v544
  %v546 = vsub.f32 1.0, %v545
  %v547 = vmul.f32 %v544, %v546
  %v548 = vadd.f32 %v544, %v547
  %vm549 = vweird.f32 %v543
  %vm550 = vweird.f32 %v544
  %vm551 = vmor %vm549, %vm550
  %v552 = vsel %vm551, %v544, %v548
  %v553 = vand.u32 2147483647, %v543
  %vm554 = vcmp.eq.f32.partialorder %v553, 8.507059e+37
  %v555 = vand.u32 %v543, 2147483648
  %v556 = vor.u32 1.1754944e-38, %v555
  %v557 = vsel %vm554, %v556, %v552
  %v558 = vmul.f32 1.0, %v557
  %v560 = vrot.slane %v146, 4
  %v562 = vunpack.c.l.bf16 %v560
  %v563 = vadd.f32 %v562, %v468
  %v564 = vxor.u32 %v563, 2147483648
  %v565 = vmul.f32 %v564, 1.442695
  %v566 = vpow.pop %v565
  %v567 = vadd.f32 %v566, 1.0
  %v568 = vrcp.pop %v567
  %v569 = vmul.f32 %v567, %v568
  %v570 = vsub.f32 1.0, %v569
  %v571 = vmul.f32 %v568, %v570
  %v572 = vadd.f32 %v568, %v571
  %vm573 = vweird.f32 %v567
  %vm574 = vweird.f32 %v568
  %vm575 = vmor %vm573, %vm574
  %v576 = vsel %vm575, %v568, %v572
  %v577 = vand.u32 2147483647, %v567
  %vm578 = vcmp.eq.f32.partialorder %v577, 8.507059e+37
  %v579 = vand.u32 %v567, 2147483648
  %v580 = vor.u32 1.1754944e-38, %v579
  %v581 = vsel %vm578, %v580, %v576
  %v582 = vmul.f32 1.0, %v581
  %v583 = vadd.f32 %v481, %v139
  %v584 = vmul.f32 %v558, %v583
  %v585 = vunpack.c.l.bf16 %v147
  %v586 = vadd.f32 %v585, %v584
  %v587 = vtanh.pop %v586
  %v588 = vsub.f32 1.0, %v582
  %v589 = vmul.f32 %v588, %v587
  %v590 = vmul.f32 %v582, %v142
  %v591 = vadd.f32 %v589, %v590
  %592 = vst [vmem:[%s6] sm:$0xff] %v537
  %s593 = scalar_lea.vmem %s62, 56
  %594 = vst [vmem:[%s593] sm:$0xff] %v591
  %s595 = scalar_lea.vmem %s0, 12
  %v596 = vld [vmem:[%s595] sm:$0xff]
  %v597 = vld [vmem:[%s595 + $0x8] sm:$0xf]
  %s598 = scalar_lea.vmem %s54, 72
  %v599 = vld [vmem:[%s598] sm:$0xff]
  %v600 = vld [vmem:[%s598 + $0x8] sm:$0xf]
  %v601 = vpack.c.bf16 %v537, %v537
  %602 = vmatpush.bf16.msra.mxu0 %v250
  %603 = vmatpush.bf16.msra.mxu0 %v247
  %604 = vmatpush.bf16.msra.mxu0 %v244
  %605 = vmatpush.bf16.msra.mxu0 %v241
  %606 = vmatpush.bf16.msra.mxu0 %v238
  %607 = vmatpush.bf16.msra.mxu0 %v235
  %608 = vmatpush.bf16.msra.mxu0 %v232
  %609 = vmatpush.bf16.msra.mxu0 %v229
  %610 = vmatmul.bf16.gmra.mxu0 %v601
  %v611 = vpop.f32.mrf.mxu0
  %v612 = vadd.f32 0.0, %v611
  %v613 = vpop.f32.mrf.mxu0
  %614 = vdwg.mxu0
  %615 = vmatpush.bf16.msra.mxu0 %v251
  %616 = vmatpush.bf16.msra.mxu0 %v248
  %617 = vmatpush.bf16.msra.mxu0 %v245
  %618 = vmatpush.bf16.msra.mxu0 %v242
  %619 = vmatpush.bf16.msra.mxu0 %v239
  %620 = vmatpush.bf16.msra.mxu0 %v236
  %621 = vmatpush.bf16.msra.mxu0 %v233
  %622 = vmatpush.bf16.msra.mxu0 %v230
  %623 = vmatmul.bf16.gmra.mxu0 %v601
  %v624 = vpop.f32.mrf.mxu0
  %v625 = vadd.f32 0.0, %v624
  %v626 = vpop.f32.mrf.mxu0
  %627 = vdwg.mxu0
  %628 = vmatpush.bf16.msra.mxu0 %v252
  %629 = vmatpush.bf16.msra.mxu0 %v249
  %630 = vmatpush.bf16.msra.mxu0 %v246
  %631 = vmatpush.bf16.msra.mxu0 %v243
  %632 = vmatpush.bf16.msra.mxu0 %v240
  %633 = vmatpush.bf16.msra.mxu0 %v237
  %634 = vmatpush.bf16.msra.mxu0 %v234
  %635 = vmatpush.bf16.msra.mxu0 %v231
  %636 = vmatmul.bf16.gmra.mxu0 %v601
  %v637 = vpop.f32.mrf.mxu0
  %v638 = vadd.f32 0.0, %v637
  %v639 = vpop.f32.mrf.mxu0
  %640 = vdwg.mxu0
  %v641 = vpack.c.bf16 %v591, %v591
  %642 = vmatpush.bf16.msra.mxu0 %v418
  %643 = vmatpush.bf16.msra.mxu0 %v415
  %644 = vmatpush.bf16.msra.mxu0 %v412
  %645 = vmatpush.bf16.msra.mxu0 %v409
  %646 = vmatpush.bf16.msra.mxu0 %v406
  %647 = vmatpush.bf16.msra.mxu0 %v403
  %648 = vmatpush.bf16.msra.mxu0 %v400
  %649 = vmatpush.bf16.msra.mxu0 %v397
  %650 = vmatmul.bf16.gmra.mxu0 %v641
  %v651 = vpop.f32.mrf.mxu0
  %v652 = vadd.f32 0.0, %v651
  %v653 = vpop.f32.mrf.mxu0
  %654 = vdwg.mxu0
  %655 = vmatpush.bf16.msra.mxu0 %v419
  %656 = vmatpush.bf16.msra.mxu0 %v416
  %657 = vmatpush.bf16.msra.mxu0 %v413
  %658 = vmatpush.bf16.msra.mxu0 %v410
  %659 = vmatpush.bf16.msra.mxu0 %v407
  %660 = vmatpush.bf16.msra.mxu0 %v404
  %661 = vmatpush.bf16.msra.mxu0 %v401
  %662 = vmatpush.bf16.msra.mxu0 %v398
  %663 = vmatmul.bf16.gmra.mxu0 %v641
  %v664 = vpop.f32.mrf.mxu0
  %v665 = vadd.f32 0.0, %v664
  %v666 = vpop.f32.mrf.mxu0
  %667 = vdwg.mxu0
  %668 = vmatpush.bf16.msra.mxu0 %v420
  %669 = vmatpush.bf16.msra.mxu0 %v417
  %670 = vmatpush.bf16.msra.mxu0 %v414
  %671 = vmatpush.bf16.msra.mxu0 %v411
  %672 = vmatpush.bf16.msra.mxu0 %v408
  %673 = vmatpush.bf16.msra.mxu0 %v405
  %674 = vmatpush.bf16.msra.mxu0 %v402
  %675 = vmatpush.bf16.msra.mxu0 %v399
  %676 = vmatmul.bf16.gmra.mxu0 %v641
  %v677 = vpop.f32.mrf.mxu0
  %v678 = vadd.f32 0.0, %v677
  %v679 = vpop.f32.mrf.mxu0
  %680 = vdwg.mxu0
  %v681 = vunpack.c.l.bf16 %v596
  %v682 = vadd.f32 %v681, %v612
  %v683 = vxor.u32 %v682, 2147483648
  %v684 = vmul.f32 %v683, 1.442695
  %v685 = vpow.pop %v684
  %v686 = vadd.f32 %v685, 1.0
  %v687 = vrcp.pop %v686
  %v688 = vmul.f32 %v686, %v687
  %v689 = vsub.f32 1.0, %v688
  %v690 = vmul.f32 %v687, %v689
  %v691 = vadd.f32 %v687, %v690
  %vm692 = vweird.f32 %v686
  %vm693 = vweird.f32 %v687
  %vm694 = vmor %vm692, %vm693
  %v695 = vsel %vm694, %v687, %v691
  %v696 = vand.u32 2147483647, %v686
  %vm697 = vcmp.eq.f32.partialorder %v696, 8.507059e+37
  %v698 = vand.u32 %v686, 2147483648
  %v699 = vor.u32 1.1754944e-38, %v698
  %v700 = vsel %vm697, %v699, %v695
  %v701 = vmul.f32 1.0, %v700
  %v703 = vrot.slane %v596, 4
  %v705 = vunpack.c.l.bf16 %v703
  %v706 = vadd.f32 %v705, %v625
  %v707 = vxor.u32 %v706, 2147483648
  %v708 = vmul.f32 %v707, 1.442695
  %v709 = vpow.pop %v708
  %v710 = vadd.f32 %v709, 1.0
  %v711 = vrcp.pop %v710
  %v712 = vmul.f32 %v710, %v711
  %v713 = vsub.f32 1.0, %v712
  %v714 = vmul.f32 %v711, %v713
  %v715 = vadd.f32 %v711, %v714
  %vm716 = vweird.f32 %v710
  %vm717 = vweird.f32 %v711
  %vm718 = vmor %vm716, %vm717
  %v719 = vsel %vm718, %v711, %v715
  %v720 = vand.u32 2147483647, %v710
  %vm721 = vcmp.eq.f32.partialorder %v720, 8.507059e+37
  %v722 = vand.u32 %v710, 2147483648
  %v723 = vor.u32 1.1754944e-38, %v722
  %v724 = vsel %vm721, %v723, %v719
  %v725 = vmul.f32 1.0, %v724
  %v726 = vadd.f32 %v638, %v137
  %v727 = vmul.f32 %v701, %v726
  %v728 = vunpack.c.l.bf16 %v597
  %v729 = vadd.f32 %v728, %v727
  %v730 = vtanh.pop %v729
  %v731 = vsub.f32 1.0, %v725
  %v732 = vmul.f32 %v731, %v730
  %v733 = vmul.f32 %v725, %v537
  %v734 = vadd.f32 %v732, %v733
  %v735 = vunpack.c.l.bf16 %v599
  %v736 = vadd.f32 %v735, %v652
  %v737 = vxor.u32 %v736, 2147483648
  %v738 = vmul.f32 %v737, 1.442695
  %v739 = vpow.pop %v738
  %v740 = vadd.f32 %v739, 1.0
  %v741 = vrcp.pop %v740
  %v742 = vmul.f32 %v740, %v741
  %v743 = vsub.f32 1.0, %v742
  %v744 = vmul.f32 %v741, %v743
  %v745 = vadd.f32 %v741, %v744
  %vm746 = vweird.f32 %v740
  %vm747 = vweird.f32 %v741
  %vm748 = vmor %vm746, %vm747
  %v749 = vsel %vm748, %v741, %v745
  %v750 = vand.u32 2147483647, %v740
  %vm751 = vcmp.eq.f32.partialorder %v750, 8.507059e+37
  %v752 = vand.u32 %v740, 2147483648
  %v753 = vor.u32 1.1754944e-38, %v752
  %v754 = vsel %vm751, %v753, %v749
  %v755 = vmul.f32 1.0, %v754
  %v757 = vrot.slane %v599, 4
  %v759 = vunpack.c.l.bf16 %v757
  %v760 = vadd.f32 %v759, %v665
  %v761 = vxor.u32 %v760, 2147483648
  %v762 = vmul.f32 %v761, 1.442695
  %v763 = vpow.pop %v762
  %v764 = vadd.f32 %v763, 1.0
  %v765 = vrcp.pop %v764
  %v766 = vmul.f32 %v764, %v765
  %v767 = vsub.f32 1.0, %v766
  %v768 = vmul.f32 %v765, %v767
  %v769 = vadd.f32 %v765, %v768
  %vm770 = vweird.f32 %v764
  %vm771 = vweird.f32 %v765
  %vm772 = vmor %vm770, %vm771
  %v773 = vsel %vm772, %v765, %v769
  %v774 = vand.u32 2147483647, %v764
  %vm775 = vcmp.eq.f32.partialorder %v774, 8.507059e+37
  %v776 = vand.u32 %v764, 2147483648
  %v777 = vor.u32 1.1754944e-38, %v776
  %v778 = vsel %vm775, %v777, %v773
  %v779 = vmul.f32 1.0, %v778
  %v780 = vadd.f32 %v678, %v139
  %v781 = vmul.f32 %v755, %v780
  %v782 = vunpack.c.l.bf16 %v600
  %v783 = vadd.f32 %v782, %v781
  %v784 = vtanh.pop %v783
  %v785 = vsub.f32 1.0, %v779
  %v786 = vmul.f32 %v785, %v784
  %v787 = vmul.f32 %v779, %v591
  %v788 = vadd.f32 %v786, %v787
  %s789 = scalar_lea.vmem %s6, 8
  %790 = vst [vmem:[%s789] sm:$0xff] %v734
  %s791 = scalar_lea.vmem %s62, 48
  %792 = vst [vmem:[%s791] sm:$0xff] %v788
  %s793 = scalar_lea.vmem %s0, 24
  %v794 = vld [vmem:[%s793] sm:$0xff]
  %v795 = vld [vmem:[%s793 + $0x8] sm:$0xf]
  %s796 = scalar_lea.vmem %s54, 60
  %v797 = vld [vmem:[%s796] sm:$0xff]
  %v798 = vld [vmem:[%s796 + $0x8] sm:$0xf]
  %v799 = vpack.c.bf16 %v734, %v734
  %800 = vmatpush.bf16.msra.mxu0 %v250
  %801 = vmatpush.bf16.msra.mxu0 %v247
  %802 = vmatpush.bf16.msra.mxu0 %v244
  %803 = vmatpush.bf16.msra.mxu0 %v241
  %804 = vmatpush.bf16.msra.mxu0 %v238
  %805 = vmatpush.bf16.msra.mxu0 %v235
  %806 = vmatpush.bf16.msra.mxu0 %v232
  %807 = vmatpush.bf16.msra.mxu0 %v229
  %808 = vmatmul.bf16.gmra.mxu0 %v799
  %v809 = vpop.f32.mrf.mxu0
  %v810 = vadd.f32 0.0, %v809
  %v811 = vpop.f32.mrf.mxu0
  %812 = vdwg.mxu0
  %813 = vmatpush.bf16.msra.mxu0 %v251
  %814 = vmatpush.bf16.msra.mxu0 %v248
  %815 = vmatpush.bf16.msra.mxu0 %v245
  %816 = vmatpush.bf16.msra.mxu0 %v242
  %817 = vmatpush.bf16.msra.mxu0 %v239
  %818 = vmatpush.bf16.msra.mxu0 %v236
  %819 = vmatpush.bf16.msra.mxu0 %v233
  %820 = vmatpush.bf16.msra.mxu0 %v230
  %821 = vmatmul.bf16.gmra.mxu0 %v799
  %v822 = vpop.f32.mrf.mxu0
  %v823 = vadd.f32 0.0, %v822
  %v824 = vpop.f32.mrf.mxu0
  %825 = vdwg.mxu0
  %826 = vmatpush.bf16.msra.mxu0 %v252
  %827 = vmatpush.bf16.msra.mxu0 %v249
  %828 = vmatpush.bf16.msra.mxu0 %v246
  %829 = vmatpush.bf16.msra.mxu0 %v243
  %830 = vmatpush.bf16.msra.mxu0 %v240
  %831 = vmatpush.bf16.msra.mxu0 %v237
  %832 = vmatpush.bf16.msra.mxu0 %v234
  %833 = vmatpush.bf16.msra.mxu0 %v231
  %834 = vmatmul.bf16.gmra.mxu0 %v799
  %v835 = vpop.f32.mrf.mxu0
  %v836 = vadd.f32 0.0, %v835
  %v837 = vpop.f32.mrf.mxu0
  %838 = vdwg.mxu0
  %v839 = vpack.c.bf16 %v788, %v788
  %840 = vmatpush.bf16.msra.mxu0 %v418
  %841 = vmatpush.bf16.msra.mxu0 %v415
  %842 = vmatpush.bf16.msra.mxu0 %v412
  %843 = vmatpush.bf16.msra.mxu0 %v409
  %844 = vmatpush.bf16.msra.mxu0 %v406
  %845 = vmatpush.bf16.msra.mxu0 %v403
  %846 = vmatpush.bf16.msra.mxu0 %v400
  %847 = vmatpush.bf16.msra.mxu0 %v397
  %848 = vmatmul.bf16.gmra.mxu0 %v839
  %v849 = vpop.f32.mrf.mxu0
  %v850 = vadd.f32 0.0, %v849
  %v851 = vpop.f32.mrf.mxu0
  %852 = vdwg.mxu0
  %853 = vmatpush.bf16.msra.mxu0 %v419
  %854 = vmatpush.bf16.msra.mxu0 %v416
  %855 = vmatpush.bf16.msra.mxu0 %v413
  %856 = vmatpush.bf16.msra.mxu0 %v410
  %857 = vmatpush.bf16.msra.mxu0 %v407
  %858 = vmatpush.bf16.msra.mxu0 %v404
  %859 = vmatpush.bf16.msra.mxu0 %v401
  %860 = vmatpush.bf16.msra.mxu0 %v398
  %861 = vmatmul.bf16.gmra.mxu0 %v839
  %v862 = vpop.f32.mrf.mxu0
  %v863 = vadd.f32 0.0, %v862
  %v864 = vpop.f32.mrf.mxu0
  %865 = vdwg.mxu0
  %866 = vmatpush.bf16.msra.mxu0 %v420
  %867 = vmatpush.bf16.msra.mxu0 %v417
  %868 = vmatpush.bf16.msra.mxu0 %v414
  %869 = vmatpush.bf16.msra.mxu0 %v411
  %870 = vmatpush.bf16.msra.mxu0 %v408
  %871 = vmatpush.bf16.msra.mxu0 %v405
  %872 = vmatpush.bf16.msra.mxu0 %v402
  %873 = vmatpush.bf16.msra.mxu0 %v399
  %874 = vmatmul.bf16.gmra.mxu0 %v839
  %v875 = vpop.f32.mrf.mxu0
  %v876 = vadd.f32 0.0, %v875
  %v877 = vpop.f32.mrf.mxu0
  %878 = vdwg.mxu0
  %v879 = vunpack.c.l.bf16 %v794
  %v880 = vadd.f32 %v879, %v810
  %v881 = vxor.u32 %v880, 2147483648
  %v882 = vmul.f32 %v881, 1.442695
  %v883 = vpow.pop %v882
  %v884 = vadd.f32 %v883, 1.0
  %v885 = vrcp.pop %v884
  %v886 = vmul.f32 %v884, %v885
  %v887 = vsub.f32 1.0, %v886
  %v888 = vmul.f32 %v885, %v887
  %v889 = vadd.f32 %v885, %v888
  %vm890 = vweird.f32 %v884
  %vm891 = vweird.f32 %v885
  %vm892 = vmor %vm890, %vm891
  %v893 = vsel %vm892, %v885, %v889
  %v894 = vand.u32 2147483647, %v884
  %vm895 = vcmp.eq.f32.partialorder %v894, 8.507059e+37
  %v896 = vand.u32 %v884, 2147483648
  %v897 = vor.u32 1.1754944e-38, %v896
  %v898 = vsel %vm895, %v897, %v893
  %v899 = vmul.f32 1.0, %v898
  %v901 = vrot.slane %v794, 4
  %v903 = vunpack.c.l.bf16 %v901
  %v904 = vadd.f32 %v903, %v823
  %v905 = vxor.u32 %v904, 2147483648
  %v906 = vmul.f32 %v905, 1.442695
  %v907 = vpow.pop %v906
  %v908 = vadd.f32 %v907, 1.0
  %v909 = vrcp.pop %v908
  %v910 = vmul.f32 %v908, %v909
  %v911 = vsub.f32 1.0, %v910
  %v912 = vmul.f32 %v909, %v911
  %v913 = vadd.f32 %v909, %v912
  %vm914 = vweird.f32 %v908
  %vm915 = vweird.f32 %v909
  %vm916 = vmor %vm914, %vm915
  %v917 = vsel %vm916, %v909, %v913
  %v918 = vand.u32 2147483647, %v908
  %vm919 = vcmp.eq.f32.partialorder %v918, 8.507059e+37
  %v920 = vand.u32 %v908, 2147483648
  %v921 = vor.u32 1.1754944e-38, %v920
  %v922 = vsel %vm919, %v921, %v917
  %v923 = vmul.f32 1.0, %v922
  %v924 = vadd.f32 %v836, %v137
  %v925 = vmul.f32 %v899, %v924
  %v926 = vunpack.c.l.bf16 %v795
  %v927 = vadd.f32 %v926, %v925
  %v928 = vtanh.pop %v927
  %v929 = vsub.f32 1.0, %v923
  %v930 = vmul.f32 %v929, %v928
  %v931 = vmul.f32 %v923, %v734
  %v932 = vadd.f32 %v930, %v931
  %v933 = vunpack.c.l.bf16 %v797
  %v934 = vadd.f32 %v933, %v850
  %v935 = vxor.u32 %v934, 2147483648
  %v936 = vmul.f32 %v935, 1.442695
  %v937 = vpow.pop %v936
  %v938 = vadd.f32 %v937, 1.0
  %v939 = vrcp.pop %v938
  %v940 = vmul.f32 %v938, %v939
  %v941 = vsub.f32 1.0, %v940
  %v942 = vmul.f32 %v939, %v941
  %v943 = vadd.f32 %v939, %v942
  %vm944 = vweird.f32 %v938
  %vm945 = vweird.f32 %v939
  %vm946 = vmor %vm944, %vm945
  %v947 = vsel %vm946, %v939, %v943
  %v948 = vand.u32 2147483647, %v938
  %vm949 = vcmp.eq.f32.partialorder %v948, 8.507059e+37
  %v950 = vand.u32 %v938, 2147483648
  %v951 = vor.u32 1.1754944e-38, %v950
  %v952 = vsel %vm949, %v951, %v947
  %v953 = vmul.f32 1.0, %v952
  %v955 = vrot.slane %v797, 4
  %v957 = vunpack.c.l.bf16 %v955
  %v958 = vadd.f32 %v957, %v863
  %v959 = vxor.u32 %v958, 2147483648
  %v960 = vmul.f32 %v959, 1.442695
  %v961 = vpow.pop %v960
  %v962 = vadd.f32 %v961, 1.0
  %v963 = vrcp.pop %v962
  %v964 = vmul.f32 %v962, %v963
  %v965 = vsub.f32 1.0, %v964
  %v966 = vmul.f32 %v963, %v965
  %v967 = vadd.f32 %v963, %v966
  %vm968 = vweird.f32 %v962
  %vm969 = vweird.f32 %v963
  %vm970 = vmor %vm968, %vm969
  %v971 = vsel %vm970, %v963, %v967
  %v972 = vand.u32 2147483647, %v962
  %vm973 = vcmp.eq.f32.partialorder %v972, 8.507059e+37
  %v974 = vand.u32 %v962, 2147483648
  %v975 = vor.u32 1.1754944e-38, %v974
  %v976 = vsel %vm973, %v975, %v971
  %v977 = vmul.f32 1.0, %v976
  %v978 = vadd.f32 %v876, %v139
  %v979 = vmul.f32 %v953, %v978
  %v980 = vunpack.c.l.bf16 %v798
  %v981 = vadd.f32 %v980, %v979
  %v982 = vtanh.pop %v981
  %v983 = vsub.f32 1.0, %v977
  %v984 = vmul.f32 %v983, %v982
  %v985 = vmul.f32 %v977, %v788
  %v986 = vadd.f32 %v984, %v985
  %s987 = scalar_lea.vmem %s6, 16
  %988 = vst [vmem:[%s987] sm:$0xff] %v932
  %s989 = scalar_lea.vmem %s62, 40
  %990 = vst [vmem:[%s989] sm:$0xff] %v986
  %s991 = scalar_lea.vmem %s0, 36
  %v992 = vld [vmem:[%s991] sm:$0xff]
  %v993 = vld [vmem:[%s991 + $0x8] sm:$0xf]
  %s994 = scalar_lea.vmem %s54, 48
  %v995 = vld [vmem:[%s994] sm:$0xff]
  %v996 = vld [vmem:[%s994 + $0x8] sm:$0xf]
  %v997 = vpack.c.bf16 %v932, %v932
  %998 = vmatpush.bf16.msra.mxu0 %v250
  %999 = vmatpush.bf16.msra.mxu0 %v247
  %1000 = vmatpush.bf16.msra.mxu0 %v244
  %1001 = vmatpush.bf16.msra.mxu0 %v241
  %1002 = vmatpush.bf16.msra.mxu0 %v238
  %1003 = vmatpush.bf16.msra.mxu0 %v235
  %1004 = vmatpush.bf16.msra.mxu0 %v232
  %1005 = vmatpush.bf16.msra.mxu0 %v229
  %1006 = vmatmul.bf16.gmra.mxu0 %v997
  %v1007 = vpop.f32.mrf.mxu0
  %v1008 = vadd.f32 0.0, %v1007
  %v1009 = vpop.f32.mrf.mxu0
  %1010 = vdwg.mxu0
  %1011 = vmatpush.bf16.msra.mxu0 %v251
  %1012 = vmatpush.bf16.msra.mxu0 %v248
  %1013 = vmatpush.bf16.msra.mxu0 %v245
  %1014 = vmatpush.bf16.msra.mxu0 %v242
  %1015 = vmatpush.bf16.msra.mxu0 %v239
  %1016 = vmatpush.bf16.msra.mxu0 %v236
  %1017 = vmatpush.bf16.msra.mxu0 %v233
  %1018 = vmatpush.bf16.msra.mxu0 %v230
  %1019 = vmatmul.bf16.gmra.mxu0 %v997
  %v1020 = vpop.f32.mrf.mxu0
  %v1021 = vadd.f32 0.0, %v1020
  %v1022 = vpop.f32.mrf.mxu0
  %1023 = vdwg.mxu0
  %1024 = vmatpush.bf16.msra.mxu0 %v252
  %1025 = vmatpush.bf16.msra.mxu0 %v249
  %1026 = vmatpush.bf16.msra.mxu0 %v246
  %1027 = vmatpush.bf16.msra.mxu0 %v243
  %1028 = vmatpush.bf16.msra.mxu0 %v240
  %1029 = vmatpush.bf16.msra.mxu0 %v237
  %1030 = vmatpush.bf16.msra.mxu0 %v234
  %1031 = vmatpush.bf16.msra.mxu0 %v231
  %1032 = vmatmul.bf16.gmra.mxu0 %v997
  %v1033 = vpop.f32.mrf.mxu0
  %v1034 = vadd.f32 0.0, %v1033
  %v1035 = vpop.f32.mrf.mxu0
  %1036 = vdwg.mxu0
  %v1037 = vpack.c.bf16 %v986, %v986
  %1038 = vmatpush.bf16.msra.mxu0 %v418
  %1039 = vmatpush.bf16.msra.mxu0 %v415
  %1040 = vmatpush.bf16.msra.mxu0 %v412
  %1041 = vmatpush.bf16.msra.mxu0 %v409
  %1042 = vmatpush.bf16.msra.mxu0 %v406
  %1043 = vmatpush.bf16.msra.mxu0 %v403
  %1044 = vmatpush.bf16.msra.mxu0 %v400
  %1045 = vmatpush.bf16.msra.mxu0 %v397
  %1046 = vmatmul.bf16.gmra.mxu0 %v1037
  %v1047 = vpop.f32.mrf.mxu0
  %v1048 = vadd.f32 0.0, %v1047
  %v1049 = vpop.f32.mrf.mxu0
  %1050 = vdwg.mxu0
  %1051 = vmatpush.bf16.msra.mxu0 %v419
  %1052 = vmatpush.bf16.msra.mxu0 %v416
  %1053 = vmatpush.bf16.msra.mxu0 %v413
  %1054 = vmatpush.bf16.msra.mxu0 %v410
  %1055 = vmatpush.bf16.msra.mxu0 %v407
  %1056 = vmatpush.bf16.msra.mxu0 %v404
  %1057 = vmatpush.bf16.msra.mxu0 %v401
  %1058 = vmatpush.bf16.msra.mxu0 %v398
  %1059 = vmatmul.bf16.gmra.mxu0 %v1037
  %v1060 = vpop.f32.mrf.mxu0
  %v1061 = vadd.f32 0.0, %v1060
  %v1062 = vpop.f32.mrf.mxu0
  %1063 = vdwg.mxu0
  %1064 = vmatpush.bf16.msra.mxu0 %v420
  %1065 = vmatpush.bf16.msra.mxu0 %v417
  %1066 = vmatpush.bf16.msra.mxu0 %v414
  %1067 = vmatpush.bf16.msra.mxu0 %v411
  %1068 = vmatpush.bf16.msra.mxu0 %v408
  %1069 = vmatpush.bf16.msra.mxu0 %v405
  %1070 = vmatpush.bf16.msra.mxu0 %v402
  %1071 = vmatpush.bf16.msra.mxu0 %v399
  %1072 = vmatmul.bf16.gmra.mxu0 %v1037
  %v1073 = vpop.f32.mrf.mxu0
  %v1074 = vadd.f32 0.0, %v1073
  %v1075 = vpop.f32.mrf.mxu0
  %1076 = vdwg.mxu0
  %v1077 = vunpack.c.l.bf16 %v992
  %v1078 = vadd.f32 %v1077, %v1008
  %v1079 = vxor.u32 %v1078, 2147483648
  %v1080 = vmul.f32 %v1079, 1.442695
  %v1081 = vpow.pop %v1080
  %v1082 = vadd.f32 %v1081, 1.0
  %v1083 = vrcp.pop %v1082
  %v1084 = vmul.f32 %v1082, %v1083
  %v1085 = vsub.f32 1.0, %v1084
  %v1086 = vmul.f32 %v1083, %v1085
  %v1087 = vadd.f32 %v1083, %v1086
  %vm1088 = vweird.f32 %v1082
  %vm1089 = vweird.f32 %v1083
  %vm1090 = vmor %vm1088, %vm1089
  %v1091 = vsel %vm1090, %v1083, %v1087
  %v1092 = vand.u32 2147483647, %v1082
  %vm1093 = vcmp.eq.f32.partialorder %v1092, 8.507059e+37
  %v1094 = vand.u32 %v1082, 2147483648
  %v1095 = vor.u32 1.1754944e-38, %v1094
  %v1096 = vsel %vm1093, %v1095, %v1091
  %v1097 = vmul.f32 1.0, %v1096
  %v1099 = vrot.slane %v992, 4
  %v1101 = vunpack.c.l.bf16 %v1099
  %v1102 = vadd.f32 %v1101, %v1021
  %v1103 = vxor.u32 %v1102, 2147483648
  %v1104 = vmul.f32 %v1103, 1.442695
  %v1105 = vpow.pop %v1104
  %v1106 = vadd.f32 %v1105, 1.0
  %v1107 = vrcp.pop %v1106
  %v1108 = vmul.f32 %v1106, %v1107
  %v1109 = vsub.f32 1.0, %v1108
  %v1110 = vmul.f32 %v1107, %v1109
  %v1111 = vadd.f32 %v1107, %v1110
  %vm1112 = vweird.f32 %v1106
  %vm1113 = vweird.f32 %v1107
  %vm1114 = vmor %vm1112, %vm1113
  %v1115 = vsel %vm1114, %v1107, %v1111
  %v1116 = vand.u32 2147483647, %v1106
  %vm1117 = vcmp.eq.f32.partialorder %v1116, 8.507059e+37
  %v1118 = vand.u32 %v1106, 2147483648
  %v1119 = vor.u32 1.1754944e-38, %v1118
  %v1120 = vsel %vm1117, %v1119, %v1115
  %v1121 = vmul.f32 1.0, %v1120
  %v1122 = vadd.f32 %v1034, %v137
  %v1123 = vmul.f32 %v1097, %v1122
  %v1124 = vunpack.c.l.bf16 %v993
  %v1125 = vadd.f32 %v1124, %v1123
  %v1126 = vtanh.pop %v1125
  %v1127 = vsub.f32 1.0, %v1121
  %v1128 = vmul.f32 %v1127, %v1126
  %v1129 = vmul.f32 %v1121, %v932
  %v1130 = vadd.f32 %v1128, %v1129
  %v1131 = vunpack.c.l.bf16 %v995
  %v1132 = vadd.f32 %v1131, %v1048
  %v1133 = vxor.u32 %v1132, 2147483648
  %v1134 = vmul.f32 %v1133, 1.442695
  %v1135 = vpow.pop %v1134
  %v1136 = vadd.f32 %v1135, 1.0
  %v1137 = vrcp.pop %v1136
  %v1138 = vmul.f32 %v1136, %v1137
  %v1139 = vsub.f32 1.0, %v1138
  %v1140 = vmul.f32 %v1137, %v1139
  %v1141 = vadd.f32 %v1137, %v1140
  %vm1142 = vweird.f32 %v1136
  %vm1143 = vweird.f32 %v1137
  %vm1144 = vmor %vm1142, %vm1143
  %v1145 = vsel %vm1144, %v1137, %v1141
  %v1146 = vand.u32 2147483647, %v1136
  %vm1147 = vcmp.eq.f32.partialorder %v1146, 8.507059e+37
  %v1148 = vand.u32 %v1136, 2147483648
  %v1149 = vor.u32 1.1754944e-38, %v1148
  %v1150 = vsel %vm1147, %v1149, %v1145
  %v1151 = vmul.f32 1.0, %v1150
  %v1153 = vrot.slane %v995, 4
  %v1155 = vunpack.c.l.bf16 %v1153
  %v1156 = vadd.f32 %v1155, %v1061
  %v1157 = vxor.u32 %v1156, 2147483648
  %v1158 = vmul.f32 %v1157, 1.442695
  %v1159 = vpow.pop %v1158
  %v1160 = vadd.f32 %v1159, 1.0
  %v1161 = vrcp.pop %v1160
  %v1162 = vmul.f32 %v1160, %v1161
  %v1163 = vsub.f32 1.0, %v1162
  %v1164 = vmul.f32 %v1161, %v1163
  %v1165 = vadd.f32 %v1161, %v1164
  %vm1166 = vweird.f32 %v1160
  %vm1167 = vweird.f32 %v1161
  %vm1168 = vmor %vm1166, %vm1167
  %v1169 = vsel %vm1168, %v1161, %v1165
  %v1170 = vand.u32 2147483647, %v1160
  %vm1171 = vcmp.eq.f32.partialorder %v1170, 8.507059e+37
  %v1172 = vand.u32 %v1160, 2147483648
  %v1173 = vor.u32 1.1754944e-38, %v1172
  %v1174 = vsel %vm1171, %v1173, %v1169
  %v1175 = vmul.f32 1.0, %v1174
  %v1176 = vadd.f32 %v1074, %v139
  %v1177 = vmul.f32 %v1151, %v1176
  %v1178 = vunpack.c.l.bf16 %v996
  %v1179 = vadd.f32 %v1178, %v1177
  %v1180 = vtanh.pop %v1179
  %v1181 = vsub.f32 1.0, %v1175
  %v1182 = vmul.f32 %v1181, %v1180
  %v1183 = vmul.f32 %v1175, %v986
  %v1184 = vadd.f32 %v1182, %v1183
  %s1185 = scalar_lea.vmem %s6, 24
  %1186 = vst [vmem:[%s1185] sm:$0xff] %v1130
  %s1187 = scalar_lea.vmem %s62, 32
  %1188 = vst [vmem:[%s1187] sm:$0xff] %v1184
  %s1189 = scalar_lea.vmem %s0, 48
  %v1190 = vld [vmem:[%s1189] sm:$0xff]
  %v1191 = vld [vmem:[%s1189 + $0x8] sm:$0xf]
  %s1192 = scalar_lea.vmem %s54, 36
  %v1193 = vld [vmem:[%s1192] sm:$0xff]
  %v1194 = vld [vmem:[%s1192 + $0x8] sm:$0xf]
  %v1195 = vpack.c.bf16 %v1130, %v1130
  %1196 = vmatpush.bf16.msra.mxu0 %v250
  %1197 = vmatpush.bf16.msra.mxu0 %v247
  %1198 = vmatpush.bf16.msra.mxu0 %v244
  %1199 = vmatpush.bf16.msra.mxu0 %v241
  %1200 = vmatpush.bf16.msra.mxu0 %v238
  %1201 = vmatpush.bf16.msra.mxu0 %v235
  %1202 = vmatpush.bf16.msra.mxu0 %v232
  %1203 = vmatpush.bf16.msra.mxu0 %v229
  %1204 = vmatmul.bf16.gmra.mxu0 %v1195
  %v1205 = vpop.f32.mrf.mxu0
  %v1206 = vadd.f32 0.0, %v1205
  %v1207 = vpop.f32.mrf.mxu0
  %1208 = vdwg.mxu0
  %1209 = vmatpush.bf16.msra.mxu0 %v251
  %1210 = vmatpush.bf16.msra.mxu0 %v248
  %1211 = vmatpush.bf16.msra.mxu0 %v245
  %1212 = vmatpush.bf16.msra.mxu0 %v242
  %1213 = vmatpush.bf16.msra.mxu0 %v239
  %1214 = vmatpush.bf16.msra.mxu0 %v236
  %1215 = vmatpush.bf16.msra.mxu0 %v233
  %1216 = vmatpush.bf16.msra.mxu0 %v230
  %1217 = vmatmul.bf16.gmra.mxu0 %v1195
  %v1218 = vpop.f32.mrf.mxu0
  %v1219 = vadd.f32 0.0, %v1218
  %v1220 = vpop.f32.mrf.mxu0
  %1221 = vdwg.mxu0
  %1222 = vmatpush.bf16.msra.mxu0 %v252
  %1223 = vmatpush.bf16.msra.mxu0 %v249
  %1224 = vmatpush.bf16.msra.mxu0 %v246
  %1225 = vmatpush.bf16.msra.mxu0 %v243
  %1226 = vmatpush.bf16.msra.mxu0 %v240
  %1227 = vmatpush.bf16.msra.mxu0 %v237
  %1228 = vmatpush.bf16.msra.mxu0 %v234
  %1229 = vmatpush.bf16.msra.mxu0 %v231
  %1230 = vmatmul.bf16.gmra.mxu0 %v1195
  %v1231 = vpop.f32.mrf.mxu0
  %v1232 = vadd.f32 0.0, %v1231
  %v1233 = vpop.f32.mrf.mxu0
  %1234 = vdwg.mxu0
  %v1235 = vpack.c.bf16 %v1184, %v1184
  %1236 = vmatpush.bf16.msra.mxu0 %v418
  %1237 = vmatpush.bf16.msra.mxu0 %v415
  %1238 = vmatpush.bf16.msra.mxu0 %v412
  %1239 = vmatpush.bf16.msra.mxu0 %v409
  %1240 = vmatpush.bf16.msra.mxu0 %v406
  %1241 = vmatpush.bf16.msra.mxu0 %v403
  %1242 = vmatpush.bf16.msra.mxu0 %v400
  %1243 = vmatpush.bf16.msra.mxu0 %v397
  %1244 = vmatmul.bf16.gmra.mxu0 %v1235
  %v1245 = vpop.f32.mrf.mxu0
  %v1246 = vadd.f32 0.0, %v1245
  %v1247 = vpop.f32.mrf.mxu0
  %1248 = vdwg.mxu0
  %1249 = vmatpush.bf16.msra.mxu0 %v419
  %1250 = vmatpush.bf16.msra.mxu0 %v416
  %1251 = vmatpush.bf16.msra.mxu0 %v413
  %1252 = vmatpush.bf16.msra.mxu0 %v410
  %1253 = vmatpush.bf16.msra.mxu0 %v407
  %1254 = vmatpush.bf16.msra.mxu0 %v404
  %1255 = vmatpush.bf16.msra.mxu0 %v401
  %1256 = vmatpush.bf16.msra.mxu0 %v398
  %1257 = vmatmul.bf16.gmra.mxu0 %v1235
  %v1258 = vpop.f32.mrf.mxu0
  %v1259 = vadd.f32 0.0, %v1258
  %v1260 = vpop.f32.mrf.mxu0
  %1261 = vdwg.mxu0
  %1262 = vmatpush.bf16.msra.mxu0 %v420
  %1263 = vmatpush.bf16.msra.mxu0 %v417
  %1264 = vmatpush.bf16.msra.mxu0 %v414
  %1265 = vmatpush.bf16.msra.mxu0 %v411
  %1266 = vmatpush.bf16.msra.mxu0 %v408
  %1267 = vmatpush.bf16.msra.mxu0 %v405
  %1268 = vmatpush.bf16.msra.mxu0 %v402
  %1269 = vmatpush.bf16.msra.mxu0 %v399
  %1270 = vmatmul.bf16.gmra.mxu0 %v1235
  %v1271 = vpop.f32.mrf.mxu0
  %v1272 = vadd.f32 0.0, %v1271
  %v1273 = vpop.f32.mrf.mxu0
  %1274 = vdwg.mxu0
  %v1275 = vunpack.c.l.bf16 %v1190
  %v1276 = vadd.f32 %v1275, %v1206
  %v1277 = vxor.u32 %v1276, 2147483648
  %v1278 = vmul.f32 %v1277, 1.442695
  %v1279 = vpow.pop %v1278
  %v1280 = vadd.f32 %v1279, 1.0
  %v1281 = vrcp.pop %v1280
  %v1282 = vmul.f32 %v1280, %v1281
  %v1283 = vsub.f32 1.0, %v1282
  %v1284 = vmul.f32 %v1281, %v1283
  %v1285 = vadd.f32 %v1281, %v1284
  %vm1286 = vweird.f32 %v1280
  %vm1287 = vweird.f32 %v1281
  %vm1288 = vmor %vm1286, %vm1287
  %v1289 = vsel %vm1288, %v1281, %v1285
  %v1290 = vand.u32 2147483647, %v1280
  %vm1291 = vcmp.eq.f32.partialorder %v1290, 8.507059e+37
  %v1292 = vand.u32 %v1280, 2147483648
  %v1293 = vor.u32 1.1754944e-38, %v1292
  %v1294 = vsel %vm1291, %v1293, %v1289
  %v1295 = vmul.f32 1.0, %v1294
  %v1297 = vrot.slane %v1190, 4
  %v1299 = vunpack.c.l.bf16 %v1297
  %v1300 = vadd.f32 %v1299, %v1219
  %v1301 = vxor.u32 %v1300, 2147483648
  %v1302 = vmul.f32 %v1301, 1.442695
  %v1303 = vpow.pop %v1302
  %v1304 = vadd.f32 %v1303, 1.0
  %v1305 = vrcp.pop %v1304
  %v1306 = vmul.f32 %v1304, %v1305
  %v1307 = vsub.f32 1.0, %v1306
  %v1308 = vmul.f32 %v1305, %v1307
  %v1309 = vadd.f32 %v1305, %v1308
  %vm1310 = vweird.f32 %v1304
  %vm1311 = vweird.f32 %v1305
  %vm1312 = vmor %vm1310, %vm1311
  %v1313 = vsel %vm1312, %v1305, %v1309
  %v1314 = vand.u32 2147483647, %v1304
  %vm1315 = vcmp.eq.f32.partialorder %v1314, 8.507059e+37
  %v1316 = vand.u32 %v1304, 2147483648
  %v1317 = vor.u32 1.1754944e-38, %v1316
  %v1318 = vsel %vm1315, %v1317, %v1313
  %v1319 = vmul.f32 1.0, %v1318
  %v1320 = vadd.f32 %v1232, %v137
  %v1321 = vmul.f32 %v1295, %v1320
  %v1322 = vunpack.c.l.bf16 %v1191
  %v1323 = vadd.f32 %v1322, %v1321
  %v1324 = vtanh.pop %v1323
  %v1325 = vsub.f32 1.0, %v1319
  %v1326 = vmul.f32 %v1325, %v1324
  %v1327 = vmul.f32 %v1319, %v1130
  %v1328 = vadd.f32 %v1326, %v1327
  %v1329 = vunpack.c.l.bf16 %v1193
  %v1330 = vadd.f32 %v1329, %v1246
  %v1331 = vxor.u32 %v1330, 2147483648
  %v1332 = vmul.f32 %v1331, 1.442695
  %v1333 = vpow.pop %v1332
  %v1334 = vadd.f32 %v1333, 1.0
  %v1335 = vrcp.pop %v1334
  %v1336 = vmul.f32 %v1334, %v1335
  %v1337 = vsub.f32 1.0, %v1336
  %v1338 = vmul.f32 %v1335, %v1337
  %v1339 = vadd.f32 %v1335, %v1338
  %vm1340 = vweird.f32 %v1334
  %vm1341 = vweird.f32 %v1335
  %vm1342 = vmor %vm1340, %vm1341
  %v1343 = vsel %vm1342, %v1335, %v1339
  %v1344 = vand.u32 2147483647, %v1334
  %vm1345 = vcmp.eq.f32.partialorder %v1344, 8.507059e+37
  %v1346 = vand.u32 %v1334, 2147483648
  %v1347 = vor.u32 1.1754944e-38, %v1346
  %v1348 = vsel %vm1345, %v1347, %v1343
  %v1349 = vmul.f32 1.0, %v1348
  %v1351 = vrot.slane %v1193, 4
  %v1353 = vunpack.c.l.bf16 %v1351
  %v1354 = vadd.f32 %v1353, %v1259
  %v1355 = vxor.u32 %v1354, 2147483648
  %v1356 = vmul.f32 %v1355, 1.442695
  %v1357 = vpow.pop %v1356
  %v1358 = vadd.f32 %v1357, 1.0
  %v1359 = vrcp.pop %v1358
  %v1360 = vmul.f32 %v1358, %v1359
  %v1361 = vsub.f32 1.0, %v1360
  %v1362 = vmul.f32 %v1359, %v1361
  %v1363 = vadd.f32 %v1359, %v1362
  %vm1364 = vweird.f32 %v1358
  %vm1365 = vweird.f32 %v1359
  %vm1366 = vmor %vm1364, %vm1365
  %v1367 = vsel %vm1366, %v1359, %v1363
  %v1368 = vand.u32 2147483647, %v1358
  %vm1369 = vcmp.eq.f32.partialorder %v1368, 8.507059e+37
  %v1370 = vand.u32 %v1358, 2147483648
  %v1371 = vor.u32 1.1754944e-38, %v1370
  %v1372 = vsel %vm1369, %v1371, %v1367
  %v1373 = vmul.f32 1.0, %v1372
  %v1374 = vadd.f32 %v1272, %v139
  %v1375 = vmul.f32 %v1349, %v1374
  %v1376 = vunpack.c.l.bf16 %v1194
  %v1377 = vadd.f32 %v1376, %v1375
  %v1378 = vtanh.pop %v1377
  %v1379 = vsub.f32 1.0, %v1373
  %v1380 = vmul.f32 %v1379, %v1378
  %v1381 = vmul.f32 %v1373, %v1184
  %v1382 = vadd.f32 %v1380, %v1381
  %s1383 = scalar_lea.vmem %s6, 32
  %1384 = vst [vmem:[%s1383] sm:$0xff] %v1328
  %s1385 = scalar_lea.vmem %s62, 24
  %1386 = vst [vmem:[%s1385] sm:$0xff] %v1382
  %s1387 = scalar_lea.vmem %s0, 60
  %v1388 = vld [vmem:[%s1387] sm:$0xff]
  %v1389 = vld [vmem:[%s1387 + $0x8] sm:$0xf]
  %s1390 = scalar_lea.vmem %s54, 24
  %v1391 = vld [vmem:[%s1390] sm:$0xff]
  %v1392 = vld [vmem:[%s1390 + $0x8] sm:$0xf]
  %v1393 = vpack.c.bf16 %v1328, %v1328
  %1394 = vmatpush.bf16.msra.mxu0 %v250
  %1395 = vmatpush.bf16.msra.mxu0 %v247
  %1396 = vmatpush.bf16.msra.mxu0 %v244
  %1397 = vmatpush.bf16.msra.mxu0 %v241
  %1398 = vmatpush.bf16.msra.mxu0 %v238
  %1399 = vmatpush.bf16.msra.mxu0 %v235
  %1400 = vmatpush.bf16.msra.mxu0 %v232
  %1401 = vmatpush.bf16.msra.mxu0 %v229
  %1402 = vmatmul.bf16.gmra.mxu0 %v1393
  %v1403 = vpop.f32.mrf.mxu0
  %v1404 = vadd.f32 0.0, %v1403
  %v1405 = vpop.f32.mrf.mxu0
  %1406 = vdwg.mxu0
  %1407 = vmatpush.bf16.msra.mxu0 %v251
  %1408 = vmatpush.bf16.msra.mxu0 %v248
  %1409 = vmatpush.bf16.msra.mxu0 %v245
  %1410 = vmatpush.bf16.msra.mxu0 %v242
  %1411 = vmatpush.bf16.msra.mxu0 %v239
  %1412 = vmatpush.bf16.msra.mxu0 %v236
  %1413 = vmatpush.bf16.msra.mxu0 %v233
  %1414 = vmatpush.bf16.msra.mxu0 %v230
  %1415 = vmatmul.bf16.gmra.mxu0 %v1393
  %v1416 = vpop.f32.mrf.mxu0
  %v1417 = vadd.f32 0.0, %v1416
  %v1418 = vpop.f32.mrf.mxu0
  %1419 = vdwg.mxu0
  %1420 = vmatpush.bf16.msra.mxu0 %v252
  %1421 = vmatpush.bf16.msra.mxu0 %v249
  %1422 = vmatpush.bf16.msra.mxu0 %v246
  %1423 = vmatpush.bf16.msra.mxu0 %v243
  %1424 = vmatpush.bf16.msra.mxu0 %v240
  %1425 = vmatpush.bf16.msra.mxu0 %v237
  %1426 = vmatpush.bf16.msra.mxu0 %v234
  %1427 = vmatpush.bf16.msra.mxu0 %v231
  %1428 = vmatmul.bf16.gmra.mxu0 %v1393
  %v1429 = vpop.f32.mrf.mxu0
  %v1430 = vadd.f32 0.0, %v1429
  %v1431 = vpop.f32.mrf.mxu0
  %1432 = vdwg.mxu0
  %v1433 = vpack.c.bf16 %v1382, %v1382
  %1434 = vmatpush.bf16.msra.mxu0 %v418
  %1435 = vmatpush.bf16.msra.mxu0 %v415
  %1436 = vmatpush.bf16.msra.mxu0 %v412
  %1437 = vmatpush.bf16.msra.mxu0 %v409
  %1438 = vmatpush.bf16.msra.mxu0 %v406
  %1439 = vmatpush.bf16.msra.mxu0 %v403
  %1440 = vmatpush.bf16.msra.mxu0 %v400
  %1441 = vmatpush.bf16.msra.mxu0 %v397
  %1442 = vmatmul.bf16.gmra.mxu0 %v1433
  %v1443 = vpop.f32.mrf.mxu0
  %v1444 = vadd.f32 0.0, %v1443
  %v1445 = vpop.f32.mrf.mxu0
  %1446 = vdwg.mxu0
  %1447 = vmatpush.bf16.msra.mxu0 %v419
  %1448 = vmatpush.bf16.msra.mxu0 %v416
  %1449 = vmatpush.bf16.msra.mxu0 %v413
  %1450 = vmatpush.bf16.msra.mxu0 %v410
  %1451 = vmatpush.bf16.msra.mxu0 %v407
  %1452 = vmatpush.bf16.msra.mxu0 %v404
  %1453 = vmatpush.bf16.msra.mxu0 %v401
  %1454 = vmatpush.bf16.msra.mxu0 %v398
  %1455 = vmatmul.bf16.gmra.mxu0 %v1433
  %v1456 = vpop.f32.mrf.mxu0
  %v1457 = vadd.f32 0.0, %v1456
  %v1458 = vpop.f32.mrf.mxu0
  %1459 = vdwg.mxu0
  %1460 = vmatpush.bf16.msra.mxu0 %v420
  %1461 = vmatpush.bf16.msra.mxu0 %v417
  %1462 = vmatpush.bf16.msra.mxu0 %v414
  %1463 = vmatpush.bf16.msra.mxu0 %v411
  %1464 = vmatpush.bf16.msra.mxu0 %v408
  %1465 = vmatpush.bf16.msra.mxu0 %v405
  %1466 = vmatpush.bf16.msra.mxu0 %v402
  %1467 = vmatpush.bf16.msra.mxu0 %v399
  %1468 = vmatmul.bf16.gmra.mxu0 %v1433
  %v1469 = vpop.f32.mrf.mxu0
  %v1470 = vadd.f32 0.0, %v1469
  %v1471 = vpop.f32.mrf.mxu0
  %1472 = vdwg.mxu0
  %v1473 = vunpack.c.l.bf16 %v1388
  %v1474 = vadd.f32 %v1473, %v1404
  %v1475 = vxor.u32 %v1474, 2147483648
  %v1476 = vmul.f32 %v1475, 1.442695
  %v1477 = vpow.pop %v1476
  %v1478 = vadd.f32 %v1477, 1.0
  %v1479 = vrcp.pop %v1478
  %v1480 = vmul.f32 %v1478, %v1479
  %v1481 = vsub.f32 1.0, %v1480
  %v1482 = vmul.f32 %v1479, %v1481
  %v1483 = vadd.f32 %v1479, %v1482
  %vm1484 = vweird.f32 %v1478
  %vm1485 = vweird.f32 %v1479
  %vm1486 = vmor %vm1484, %vm1485
  %v1487 = vsel %vm1486, %v1479, %v1483
  %v1488 = vand.u32 2147483647, %v1478
  %vm1489 = vcmp.eq.f32.partialorder %v1488, 8.507059e+37
  %v1490 = vand.u32 %v1478, 2147483648
  %v1491 = vor.u32 1.1754944e-38, %v1490
  %v1492 = vsel %vm1489, %v1491, %v1487
  %v1493 = vmul.f32 1.0, %v1492
  %v1495 = vrot.slane %v1388, 4
  %v1497 = vunpack.c.l.bf16 %v1495
  %v1498 = vadd.f32 %v1497, %v1417
  %v1499 = vxor.u32 %v1498, 2147483648
  %v1500 = vmul.f32 %v1499, 1.442695
  %v1501 = vpow.pop %v1500
  %v1502 = vadd.f32 %v1501, 1.0
  %v1503 = vrcp.pop %v1502
  %v1504 = vmul.f32 %v1502, %v1503
  %v1505 = vsub.f32 1.0, %v1504
  %v1506 = vmul.f32 %v1503, %v1505
  %v1507 = vadd.f32 %v1503, %v1506
  %vm1508 = vweird.f32 %v1502
  %vm1509 = vweird.f32 %v1503
  %vm1510 = vmor %vm1508, %vm1509
  %v1511 = vsel %vm1510, %v1503, %v1507
  %v1512 = vand.u32 2147483647, %v1502
  %vm1513 = vcmp.eq.f32.partialorder %v1512, 8.507059e+37
  %v1514 = vand.u32 %v1502, 2147483648
  %v1515 = vor.u32 1.1754944e-38, %v1514
  %v1516 = vsel %vm1513, %v1515, %v1511
  %v1517 = vmul.f32 1.0, %v1516
  %v1518 = vadd.f32 %v1430, %v137
  %v1519 = vmul.f32 %v1493, %v1518
  %v1520 = vunpack.c.l.bf16 %v1389
  %v1521 = vadd.f32 %v1520, %v1519
  %v1522 = vtanh.pop %v1521
  %v1523 = vsub.f32 1.0, %v1517
  %v1524 = vmul.f32 %v1523, %v1522
  %v1525 = vmul.f32 %v1517, %v1328
  %v1526 = vadd.f32 %v1524, %v1525
  %v1527 = vunpack.c.l.bf16 %v1391
  %v1528 = vadd.f32 %v1527, %v1444
  %v1529 = vxor.u32 %v1528, 2147483648
  %v1530 = vmul.f32 %v1529, 1.442695
  %v1531 = vpow.pop %v1530
  %v1532 = vadd.f32 %v1531, 1.0
  %v1533 = vrcp.pop %v1532
  %v1534 = vmul.f32 %v1532, %v1533
  %v1535 = vsub.f32 1.0, %v1534
  %v1536 = vmul.f32 %v1533, %v1535
  %v1537 = vadd.f32 %v1533, %v1536
  %vm1538 = vweird.f32 %v1532
  %vm1539 = vweird.f32 %v1533
  %vm1540 = vmor %vm1538, %vm1539
  %v1541 = vsel %vm1540, %v1533, %v1537
  %v1542 = vand.u32 2147483647, %v1532
  %vm1543 = vcmp.eq.f32.partialorder %v1542, 8.507059e+37
  %v1544 = vand.u32 %v1532, 2147483648
  %v1545 = vor.u32 1.1754944e-38, %v1544
  %v1546 = vsel %vm1543, %v1545, %v1541
  %v1547 = vmul.f32 1.0, %v1546
  %v1549 = vrot.slane %v1391, 4
  %v1551 = vunpack.c.l.bf16 %v1549
  %v1552 = vadd.f32 %v1551, %v1457
  %v1553 = vxor.u32 %v1552, 2147483648
  %v1554 = vmul.f32 %v1553, 1.442695
  %v1555 = vpow.pop %v1554
  %v1556 = vadd.f32 %v1555, 1.0
  %v1557 = vrcp.pop %v1556
  %v1558 = vmul.f32 %v1556, %v1557
  %v1559 = vsub.f32 1.0, %v1558
  %v1560 = vmul.f32 %v1557, %v1559
  %v1561 = vadd.f32 %v1557, %v1560
  %vm1562 = vweird.f32 %v1556
  %vm1563 = vweird.f32 %v1557
  %vm1564 = vmor %vm1562, %vm1563
  %v1565 = vsel %vm1564, %v1557, %v1561
  %v1566 = vand.u32 2147483647, %v1556
  %vm1567 = vcmp.eq.f32.partialorder %v1566, 8.507059e+37
  %v1568 = vand.u32 %v1556, 2147483648
  %v1569 = vor.u32 1.1754944e-38, %v1568
  %v1570 = vsel %vm1567, %v1569, %v1565
  %v1571 = vmul.f32 1.0, %v1570
  %v1572 = vadd.f32 %v1470, %v139
  %v1573 = vmul.f32 %v1547, %v1572
  %v1574 = vunpack.c.l.bf16 %v1392
  %v1575 = vadd.f32 %v1574, %v1573
  %v1576 = vtanh.pop %v1575
  %v1577 = vsub.f32 1.0, %v1571
  %v1578 = vmul.f32 %v1577, %v1576
  %v1579 = vmul.f32 %v1571, %v1382
  %v1580 = vadd.f32 %v1578, %v1579
  %s1581 = scalar_lea.vmem %s6, 40
  %1582 = vst [vmem:[%s1581] sm:$0xff] %v1526
  %s1583 = scalar_lea.vmem %s62, 16
  %1584 = vst [vmem:[%s1583] sm:$0xff] %v1580
  %s1585 = scalar_lea.vmem %s0, 72
  %v1586 = vld [vmem:[%s1585] sm:$0xff]
  %v1587 = vld [vmem:[%s1585 + $0x8] sm:$0xf]
  %s1588 = scalar_lea.vmem %s54, 12
  %v1589 = vld [vmem:[%s1588] sm:$0xff]
  %v1590 = vld [vmem:[%s1588 + $0x8] sm:$0xf]
  %v1591 = vpack.c.bf16 %v1526, %v1526
  %1592 = vmatpush.bf16.msra.mxu0 %v250
  %1593 = vmatpush.bf16.msra.mxu0 %v247
  %1594 = vmatpush.bf16.msra.mxu0 %v244
  %1595 = vmatpush.bf16.msra.mxu0 %v241
  %1596 = vmatpush.bf16.msra.mxu0 %v238
  %1597 = vmatpush.bf16.msra.mxu0 %v235
  %1598 = vmatpush.bf16.msra.mxu0 %v232
  %1599 = vmatpush.bf16.msra.mxu0 %v229
  %1600 = vmatmul.bf16.gmra.mxu0 %v1591
  %v1601 = vpop.f32.mrf.mxu0
  %v1602 = vadd.f32 0.0, %v1601
  %v1603 = vpop.f32.mrf.mxu0
  %1604 = vdwg.mxu0
  %1605 = vmatpush.bf16.msra.mxu0 %v251
  %1606 = vmatpush.bf16.msra.mxu0 %v248
  %1607 = vmatpush.bf16.msra.mxu0 %v245
  %1608 = vmatpush.bf16.msra.mxu0 %v242
  %1609 = vmatpush.bf16.msra.mxu0 %v239
  %1610 = vmatpush.bf16.msra.mxu0 %v236
  %1611 = vmatpush.bf16.msra.mxu0 %v233
  %1612 = vmatpush.bf16.msra.mxu0 %v230
  %1613 = vmatmul.bf16.gmra.mxu0 %v1591
  %v1614 = vpop.f32.mrf.mxu0
  %v1615 = vadd.f32 0.0, %v1614
  %v1616 = vpop.f32.mrf.mxu0
  %1617 = vdwg.mxu0
  %1618 = vmatpush.bf16.msra.mxu0 %v252
  %1619 = vmatpush.bf16.msra.mxu0 %v249
  %1620 = vmatpush.bf16.msra.mxu0 %v246
  %1621 = vmatpush.bf16.msra.mxu0 %v243
  %1622 = vmatpush.bf16.msra.mxu0 %v240
  %1623 = vmatpush.bf16.msra.mxu0 %v237
  %1624 = vmatpush.bf16.msra.mxu0 %v234
  %1625 = vmatpush.bf16.msra.mxu0 %v231
  %1626 = vmatmul.bf16.gmra.mxu0 %v1591
  %v1627 = vpop.f32.mrf.mxu0
  %v1628 = vadd.f32 0.0, %v1627
  %v1629 = vpop.f32.mrf.mxu0
  %1630 = vdwg.mxu0
  %v1631 = vpack.c.bf16 %v1580, %v1580
  %1632 = vmatpush.bf16.msra.mxu0 %v418
  %1633 = vmatpush.bf16.msra.mxu0 %v415
  %1634 = vmatpush.bf16.msra.mxu0 %v412
  %1635 = vmatpush.bf16.msra.mxu0 %v409
  %1636 = vmatpush.bf16.msra.mxu0 %v406
  %1637 = vmatpush.bf16.msra.mxu0 %v403
  %1638 = vmatpush.bf16.msra.mxu0 %v400
  %1639 = vmatpush.bf16.msra.mxu0 %v397
  %1640 = vmatmul.bf16.gmra.mxu0 %v1631
  %v1641 = vpop.f32.mrf.mxu0
  %v1642 = vadd.f32 0.0, %v1641
  %v1643 = vpop.f32.mrf.mxu0
  %1644 = vdwg.mxu0
  %1645 = vmatpush.bf16.msra.mxu0 %v419
  %1646 = vmatpush.bf16.msra.mxu0 %v416
  %1647 = vmatpush.bf16.msra.mxu0 %v413
  %1648 = vmatpush.bf16.msra.mxu0 %v410
  %1649 = vmatpush.bf16.msra.mxu0 %v407
  %1650 = vmatpush.bf16.msra.mxu0 %v404
  %1651 = vmatpush.bf16.msra.mxu0 %v401
  %1652 = vmatpush.bf16.msra.mxu0 %v398
  %1653 = vmatmul.bf16.gmra.mxu0 %v1631
  %v1654 = vpop.f32.mrf.mxu0
  %v1655 = vadd.f32 0.0, %v1654
  %v1656 = vpop.f32.mrf.mxu0
  %1657 = vdwg.mxu0
  %1658 = vmatpush.bf16.msra.mxu0 %v420
  %1659 = vmatpush.bf16.msra.mxu0 %v417
  %1660 = vmatpush.bf16.msra.mxu0 %v414
  %1661 = vmatpush.bf16.msra.mxu0 %v411
  %1662 = vmatpush.bf16.msra.mxu0 %v408
  %1663 = vmatpush.bf16.msra.mxu0 %v405
  %1664 = vmatpush.bf16.msra.mxu0 %v402
  %1665 = vmatpush.bf16.msra.mxu0 %v399
  %1666 = vmatmul.bf16.gmra.mxu0 %v1631
  %v1667 = vpop.f32.mrf.mxu0
  %v1668 = vadd.f32 0.0, %v1667
  %v1669 = vpop.f32.mrf.mxu0
  %1670 = vdwg.mxu0
  %v1671 = vunpack.c.l.bf16 %v1586
  %v1672 = vadd.f32 %v1671, %v1602
  %v1673 = vxor.u32 %v1672, 2147483648
  %v1674 = vmul.f32 %v1673, 1.442695
  %v1675 = vpow.pop %v1674
  %v1676 = vadd.f32 %v1675, 1.0
  %v1677 = vrcp.pop %v1676
  %v1678 = vmul.f32 %v1676, %v1677
  %v1679 = vsub.f32 1.0, %v1678
  %v1680 = vmul.f32 %v1677, %v1679
  %v1681 = vadd.f32 %v1677, %v1680
  %vm1682 = vweird.f32 %v1676
  %vm1683 = vweird.f32 %v1677
  %vm1684 = vmor %vm1682, %vm1683
  %v1685 = vsel %vm1684, %v1677, %v1681
  %v1686 = vand.u32 2147483647, %v1676
  %vm1687 = vcmp.eq.f32.partialorder %v1686, 8.507059e+37
  %v1688 = vand.u32 %v1676, 2147483648
  %v1689 = vor.u32 1.1754944e-38, %v1688
  %v1690 = vsel %vm1687, %v1689, %v1685
  %v1691 = vmul.f32 1.0, %v1690
  %v1693 = vrot.slane %v1586, 4
  %v1695 = vunpack.c.l.bf16 %v1693
  %v1696 = vadd.f32 %v1695, %v1615
  %v1697 = vxor.u32 %v1696, 2147483648
  %v1698 = vmul.f32 %v1697, 1.442695
  %v1699 = vpow.pop %v1698
  %v1700 = vadd.f32 %v1699, 1.0
  %v1701 = vrcp.pop %v1700
  %v1702 = vmul.f32 %v1700, %v1701
  %v1703 = vsub.f32 1.0, %v1702
  %v1704 = vmul.f32 %v1701, %v1703
  %v1705 = vadd.f32 %v1701, %v1704
  %vm1706 = vweird.f32 %v1700
  %vm1707 = vweird.f32 %v1701
  %vm1708 = vmor %vm1706, %vm1707
  %v1709 = vsel %vm1708, %v1701, %v1705
  %v1710 = vand.u32 2147483647, %v1700
  %vm1711 = vcmp.eq.f32.partialorder %v1710, 8.507059e+37
  %v1712 = vand.u32 %v1700, 2147483648
  %v1713 = vor.u32 1.1754944e-38, %v1712
  %v1714 = vsel %vm1711, %v1713, %v1709
  %v1715 = vmul.f32 1.0, %v1714
  %v1716 = vadd.f32 %v1628, %v137
  %v1717 = vmul.f32 %v1691, %v1716
  %v1718 = vunpack.c.l.bf16 %v1587
  %v1719 = vadd.f32 %v1718, %v1717
  %v1720 = vtanh.pop %v1719
  %v1721 = vsub.f32 1.0, %v1715
  %v1722 = vmul.f32 %v1721, %v1720
  %v1723 = vmul.f32 %v1715, %v1526
  %v1724 = vadd.f32 %v1722, %v1723
  %v1725 = vunpack.c.l.bf16 %v1589
  %v1726 = vadd.f32 %v1725, %v1642
  %v1727 = vxor.u32 %v1726, 2147483648
  %v1728 = vmul.f32 %v1727, 1.442695
  %v1729 = vpow.pop %v1728
  %v1730 = vadd.f32 %v1729, 1.0
  %v1731 = vrcp.pop %v1730
  %v1732 = vmul.f32 %v1730, %v1731
  %v1733 = vsub.f32 1.0, %v1732
  %v1734 = vmul.f32 %v1731, %v1733
  %v1735 = vadd.f32 %v1731, %v1734
  %vm1736 = vweird.f32 %v1730
  %vm1737 = vweird.f32 %v1731
  %vm1738 = vmor %vm1736, %vm1737
  %v1739 = vsel %vm1738, %v1731, %v1735
  %v1740 = vand.u32 2147483647, %v1730
  %vm1741 = vcmp.eq.f32.partialorder %v1740, 8.507059e+37
  %v1742 = vand.u32 %v1730, 2147483648
  %v1743 = vor.u32 1.1754944e-38, %v1742
  %v1744 = vsel %vm1741, %v1743, %v1739
  %v1745 = vmul.f32 1.0, %v1744
  %v1747 = vrot.slane %v1589, 4
  %v1749 = vunpack.c.l.bf16 %v1747
  %v1750 = vadd.f32 %v1749, %v1655
  %v1751 = vxor.u32 %v1750, 2147483648
  %v1752 = vmul.f32 %v1751, 1.442695
  %v1753 = vpow.pop %v1752
  %v1754 = vadd.f32 %v1753, 1.0
  %v1755 = vrcp.pop %v1754
  %v1756 = vmul.f32 %v1754, %v1755
  %v1757 = vsub.f32 1.0, %v1756
  %v1758 = vmul.f32 %v1755, %v1757
  %v1759 = vadd.f32 %v1755, %v1758
  %vm1760 = vweird.f32 %v1754
  %vm1761 = vweird.f32 %v1755
  %vm1762 = vmor %vm1760, %vm1761
  %v1763 = vsel %vm1762, %v1755, %v1759
  %v1764 = vand.u32 2147483647, %v1754
  %vm1765 = vcmp.eq.f32.partialorder %v1764, 8.507059e+37
  %v1766 = vand.u32 %v1754, 2147483648
  %v1767 = vor.u32 1.1754944e-38, %v1766
  %v1768 = vsel %vm1765, %v1767, %v1763
  %v1769 = vmul.f32 1.0, %v1768
  %v1770 = vadd.f32 %v1668, %v139
  %v1771 = vmul.f32 %v1745, %v1770
  %v1772 = vunpack.c.l.bf16 %v1590
  %v1773 = vadd.f32 %v1772, %v1771
  %v1774 = vtanh.pop %v1773
  %v1775 = vsub.f32 1.0, %v1769
  %v1776 = vmul.f32 %v1775, %v1774
  %v1777 = vmul.f32 %v1769, %v1580
  %v1778 = vadd.f32 %v1776, %v1777
  %s1779 = scalar_lea.vmem %s6, 48
  %1780 = vst [vmem:[%s1779] sm:$0xff] %v1724
  %s1781 = scalar_lea.vmem %s62, 8
  %1782 = vst [vmem:[%s1781] sm:$0xff] %v1778
  %s1783 = scalar_lea.vmem %s0, 84
  %v1784 = vld [vmem:[%s1783] sm:$0xff]
  %v1785 = vld [vmem:[%s1783 + $0x8] sm:$0xf]
  %v1786 = vld [vmem:[%s54] sm:$0xff]
  %v1787 = vld [vmem:[%s54 + $0x8] sm:$0xf]
  %v1788 = vpack.c.bf16 %v1724, %v1724
  %1789 = vmatpush.bf16.msra.mxu0 %v250
  %1790 = vmatpush.bf16.msra.mxu0 %v247
  %1791 = vmatpush.bf16.msra.mxu0 %v244
  %1792 = vmatpush.bf16.msra.mxu0 %v241
  %1793 = vmatpush.bf16.msra.mxu0 %v238
  %1794 = vmatpush.bf16.msra.mxu0 %v235
  %1795 = vmatpush.bf16.msra.mxu0 %v232
  %1796 = vmatpush.bf16.msra.mxu0 %v229
  %1797 = vmatmul.bf16.gmra.mxu0 %v1788
  %v1798 = vpop.f32.mrf.mxu0
  %v1799 = vadd.f32 0.0, %v1798
  %v1800 = vpop.f32.mrf.mxu0
  %1801 = vdwg.mxu0
  %1802 = vmatpush.bf16.msra.mxu0 %v251
  %1803 = vmatpush.bf16.msra.mxu0 %v248
  %1804 = vmatpush.bf16.msra.mxu0 %v245
  %1805 = vmatpush.bf16.msra.mxu0 %v242
  %1806 = vmatpush.bf16.msra.mxu0 %v239
  %1807 = vmatpush.bf16.msra.mxu0 %v236
  %1808 = vmatpush.bf16.msra.mxu0 %v233
  %1809 = vmatpush.bf16.msra.mxu0 %v230
  %1810 = vmatmul.bf16.gmra.mxu0 %v1788
  %v1811 = vpop.f32.mrf.mxu0
  %v1812 = vadd.f32 0.0, %v1811
  %v1813 = vpop.f32.mrf.mxu0
  %1814 = vdwg.mxu0
  %1815 = vmatpush.bf16.msra.mxu0 %v252
  %1816 = vmatpush.bf16.msra.mxu0 %v249
  %1817 = vmatpush.bf16.msra.mxu0 %v246
  %1818 = vmatpush.bf16.msra.mxu0 %v243
  %1819 = vmatpush.bf16.msra.mxu0 %v240
  %1820 = vmatpush.bf16.msra.mxu0 %v237
  %1821 = vmatpush.bf16.msra.mxu0 %v234
  %1822 = vmatpush.bf16.msra.mxu0 %v231
  %1823 = vmatmul.bf16.gmra.mxu0 %v1788
  %v1824 = vpop.f32.mrf.mxu0
  %v1825 = vadd.f32 0.0, %v1824
  %v1826 = vpop.f32.mrf.mxu0
  %1827 = vdwg.mxu0
  %v1828 = vpack.c.bf16 %v1778, %v1778
  %1829 = vmatpush.bf16.msra.mxu0 %v418
  %1830 = vmatpush.bf16.msra.mxu0 %v415
  %1831 = vmatpush.bf16.msra.mxu0 %v412
  %1832 = vmatpush.bf16.msra.mxu0 %v409
  %1833 = vmatpush.bf16.msra.mxu0 %v406
  %1834 = vmatpush.bf16.msra.mxu0 %v403
  %1835 = vmatpush.bf16.msra.mxu0 %v400
  %1836 = vmatpush.bf16.msra.mxu0 %v397
  %1837 = vmatmul.bf16.gmra.mxu0 %v1828
  %v1838 = vpop.f32.mrf.mxu0
  %v1839 = vadd.f32 0.0, %v1838
  %v1840 = vpop.f32.mrf.mxu0
  %1841 = vdwg.mxu0
  %1842 = vmatpush.bf16.msra.mxu0 %v419
  %1843 = vmatpush.bf16.msra.mxu0 %v416
  %1844 = vmatpush.bf16.msra.mxu0 %v413
  %1845 = vmatpush.bf16.msra.mxu0 %v410
  %1846 = vmatpush.bf16.msra.mxu0 %v407
  %1847 = vmatpush.bf16.msra.mxu0 %v404
  %1848 = vmatpush.bf16.msra.mxu0 %v401
  %1849 = vmatpush.bf16.msra.mxu0 %v398
  %1850 = vmatmul.bf16.gmra.mxu0 %v1828
  %v1851 = vpop.f32.mrf.mxu0
  %v1852 = vadd.f32 0.0, %v1851
  %v1853 = vpop.f32.mrf.mxu0
  %1854 = vdwg.mxu0
  %1855 = vmatpush.bf16.msra.mxu0 %v420
  %1856 = vmatpush.bf16.msra.mxu0 %v417
  %1857 = vmatpush.bf16.msra.mxu0 %v414
  %1858 = vmatpush.bf16.msra.mxu0 %v411
  %1859 = vmatpush.bf16.msra.mxu0 %v408
  %1860 = vmatpush.bf16.msra.mxu0 %v405
  %1861 = vmatpush.bf16.msra.mxu0 %v402
  %1862 = vmatpush.bf16.msra.mxu0 %v399
  %1863 = vmatmul.bf16.gmra.mxu0 %v1828
  %v1864 = vpop.f32.mrf.mxu0
  %v1865 = vadd.f32 0.0, %v1864
  %v1866 = vpop.f32.mrf.mxu0
  %1867 = vdwg.mxu0
  %v1868 = vunpack.c.l.bf16 %v1784
  %v1869 = vadd.f32 %v1868, %v1799
  %v1870 = vxor.u32 %v1869, 2147483648
  %v1871 = vmul.f32 %v1870, 1.442695
  %v1872 = vpow.pop %v1871
  %v1873 = vadd.f32 %v1872, 1.0
  %v1874 = vrcp.pop %v1873
  %v1875 = vmul.f32 %v1873, %v1874
  %v1876 = vsub.f32 1.0, %v1875
  %v1877 = vmul.f32 %v1874, %v1876
  %v1878 = vadd.f32 %v1874, %v1877
  %vm1879 = vweird.f32 %v1873
  %vm1880 = vweird.f32 %v1874
  %vm1881 = vmor %vm1879, %vm1880
  %v1882 = vsel %vm1881, %v1874, %v1878
  %v1883 = vand.u32 2147483647, %v1873
  %vm1884 = vcmp.eq.f32.partialorder %v1883, 8.507059e+37
  %v1885 = vand.u32 %v1873, 2147483648
  %v1886 = vor.u32 1.1754944e-38, %v1885
  %v1887 = vsel %vm1884, %v1886, %v1882
  %v1888 = vmul.f32 1.0, %v1887
  %v1890 = vrot.slane %v1784, 4
  %v1892 = vunpack.c.l.bf16 %v1890
  %v1893 = vadd.f32 %v1892, %v1812
  %v1894 = vxor.u32 %v1893, 2147483648
  %v1895 = vmul.f32 %v1894, 1.442695
  %v1896 = vpow.pop %v1895
  %v1897 = vadd.f32 %v1896, 1.0
  %v1898 = vrcp.pop %v1897
  %v1899 = vmul.f32 %v1897, %v1898
  %v1900 = vsub.f32 1.0, %v1899
  %v1901 = vmul.f32 %v1898, %v1900
  %v1902 = vadd.f32 %v1898, %v1901
  %vm1903 = vweird.f32 %v1897
  %vm1904 = vweird.f32 %v1898
  %vm1905 = vmor %vm1903, %vm1904
  %v1906 = vsel %vm1905, %v1898, %v1902
  %v1907 = vand.u32 2147483647, %v1897
  %vm1908 = vcmp.eq.f32.partialorder %v1907, 8.507059e+37
  %v1909 = vand.u32 %v1897, 2147483648
  %v1910 = vor.u32 1.1754944e-38, %v1909
  %v1911 = vsel %vm1908, %v1910, %v1906
  %v1912 = vmul.f32 1.0, %v1911
  %v1913 = vadd.f32 %v1825, %v137
  %v1914 = vmul.f32 %v1888, %v1913
  %v1915 = vunpack.c.l.bf16 %v1785
  %v1916 = vadd.f32 %v1915, %v1914
  %v1917 = vtanh.pop %v1916
  %v1918 = vsub.f32 1.0, %v1912
  %v1919 = vmul.f32 %v1918, %v1917
  %v1920 = vmul.f32 %v1912, %v1724
  %v1921 = vadd.f32 %v1919, %v1920
  %v1922 = vunpack.c.l.bf16 %v1786
  %v1923 = vadd.f32 %v1922, %v1839
  %v1924 = vxor.u32 %v1923, 2147483648
  %v1925 = vmul.f32 %v1924, 1.442695
  %v1926 = vpow.pop %v1925
  %v1927 = vadd.f32 %v1926, 1.0
  %v1928 = vrcp.pop %v1927
  %v1929 = vmul.f32 %v1927, %v1928
  %v1930 = vsub.f32 1.0, %v1929
  %v1931 = vmul.f32 %v1928, %v1930
  %v1932 = vadd.f32 %v1928, %v1931
  %vm1933 = vweird.f32 %v1927
  %vm1934 = vweird.f32 %v1928
  %vm1935 = vmor %vm1933, %vm1934
  %v1936 = vsel %vm1935, %v1928, %v1932
  %v1937 = vand.u32 2147483647, %v1927
  %vm1938 = vcmp.eq.f32.partialorder %v1937, 8.507059e+37
  %v1939 = vand.u32 %v1927, 2147483648
  %v1940 = vor.u32 1.1754944e-38, %v1939
  %v1941 = vsel %vm1938, %v1940, %v1936
  %v1942 = vmul.f32 1.0, %v1941
  %v1944 = vrot.slane %v1786, 4
  %v1946 = vunpack.c.l.bf16 %v1944
  %v1947 = vadd.f32 %v1946, %v1852
  %v1948 = vxor.u32 %v1947, 2147483648
  %v1949 = vmul.f32 %v1948, 1.442695
  %v1950 = vpow.pop %v1949
  %v1951 = vadd.f32 %v1950, 1.0
  %v1952 = vrcp.pop %v1951
  %v1953 = vmul.f32 %v1951, %v1952
  %v1954 = vsub.f32 1.0, %v1953
  %v1955 = vmul.f32 %v1952, %v1954
  %v1956 = vadd.f32 %v1952, %v1955
  %vm1957 = vweird.f32 %v1951
  %vm1958 = vweird.f32 %v1952
  %vm1959 = vmor %vm1957, %vm1958
  %v1960 = vsel %vm1959, %v1952, %v1956
  %v1961 = vand.u32 2147483647, %v1951
  %vm1962 = vcmp.eq.f32.partialorder %v1961, 8.507059e+37
  %v1963 = vand.u32 %v1951, 2147483648
  %v1964 = vor.u32 1.1754944e-38, %v1963
  %v1965 = vsel %vm1962, %v1964, %v1960
  %v1966 = vmul.f32 1.0, %v1965
  %v1967 = vadd.f32 %v1865, %v139
  %v1968 = vmul.f32 %v1942, %v1967
  %v1969 = vunpack.c.l.bf16 %v1787
  %v1970 = vadd.f32 %v1969, %v1968
  %v1971 = vtanh.pop %v1970
  %v1972 = vsub.f32 1.0, %v1966
  %v1973 = vmul.f32 %v1972, %v1971
  %v1974 = vmul.f32 %v1966, %v1778
  %v1975 = vadd.f32 %v1973, %v1974
  %s1976 = scalar_lea.vmem %s6, 56
  %1977 = vst [vmem:[%s1976] sm:$0xff] %v1921
  %1978 = vst [vmem:[%s62] sm:$0xff] %v1975
  %1979 = vst [vmem:[#allocation2] sm:$0xff] %v1921
  %1980 = vst [vmem:[%s141] sm:$0xff] %v1975
  // Predicated region
  $region30: #{encoder_rnn_forward.1} parent=0 // pred_check
    %p1981 = pneg %p65
  $region31: #{encoder_rnn_forward.1} parent=0 // pred_check_branch
    %1983 = sbr.rel (%p1981) target = $region33
  $region32: #{encoder_rnn_forward.1} parent=0 // pred_region
    %1984 = vst [vmem:[%s8] sm:$0xff] %v1921
    %s1985 = scalar_lea.vmem %s8, 8
    %1986 = vst [vmem:[%s1985] sm:$0xff] %v1975
  $region33: #{encoder_rnn_forward.1} parent=0 // pred_fallthru
    _
  %s1987 = ssub.s32 0, 0
  %s1988 = smul.u32 8, %s1987
  %p1989 = scmp.lt.s32.totalorder %s1988, 7
  %s1990 = scalar_select %p1989, %s1988, 7
  %s1991 = smul.addr %s1990, 8
  %s1992 = scalar_lea.vmem %s7, %s1991
  // Predicated region
  $region34: #{encoder_rnn_forward.1} parent=0 // pred_check
    _
  $region35: #{encoder_rnn_forward.1} parent=0 // pred_check_branch
    %1994 = sbr.rel (0) target = $region37
  $region36: #{encoder_rnn_forward.1} parent=0 // pred_region
    _
  $region37: #{encoder_rnn_forward.1} parent=0 // pred_fallthru
    _
  // Predicated region
  $region38: #{encoder_rnn_forward.1} parent=0 // pred_check
    _
  $region39: #{encoder_rnn_forward.1} parent=0 // pred_check_branch
    %1996 = sbr.rel (0) target = $region41
  $region40: #{encoder_rnn_forward.1} parent=0 // pred_region
    %s1997 = ssub.s32 0, 0
    %s1998 = smul.u32 8, %s1997
  $region41: #{encoder_rnn_forward.1} parent=0 // pred_fallthru
    _
  // Predicated region
  $region42: #{encoder_rnn_forward.1} parent=0 // pred_check
    _
  $region43: #{encoder_rnn_forward.1} parent=0 // pred_check_branch
    %2000 = sbr.rel (0) target = $region45
  $region44: #{encoder_rnn_forward.1} parent=0 // pred_region
    _
  $region45: #{encoder_rnn_forward.1} parent=0 // pred_fallthru
    _
  // Predicated region
  $region46: #{encoder_rnn_forward.1} parent=0 // pred_check
    _
  $region47: #{encoder_rnn_forward.1} parent=0 // pred_check_branch
    %2002 = sbr.rel (0) target = $region49
  $region48: #{encoder_rnn_forward.1} parent=0 // pred_region
    _
  $region49: #{encoder_rnn_forward.1} parent=0 // pred_fallthru
    _
  // Predicated region
  $region50: #{encoder_rnn_forward.1} parent=0 // pred_check
    _
  $region51: #{encoder_rnn_forward.1} parent=0 // pred_check_branch
    %2004 = sbr.rel (0) target = $region53
  $region52: #{encoder_rnn_forward.1} parent=0 // pred_region
    %s2005 = ssub.s32 0, 0
    %s2006 = smul.u32 8, %s2005
    %p2007 = scmp.lt.s32.totalorder %s2006, 7
    %s2008 = scalar_select %p2007, %s2006, 7
    %s2009 = smul.addr %s2008, 8
    %s2010 = scalar_lea.vmem %s7, %s2009
  $region53: #{encoder_rnn_forward.1} parent=0 // pred_fallthru
    _
  // Predicated region
  $region54: #{encoder_rnn_forward.1} parent=0 // pred_check
    _
  $region55: #{encoder_rnn_forward.1} parent=0 // pred_check_branch
    %2012 = sbr.rel (0) target = $region57
  $region56: #{encoder_rnn_forward.1} parent=0 // pred_region
    _
  $region57: #{encoder_rnn_forward.1} parent=0 // pred_fallthru
    _

</llo_original>
